<compile_context>
chip_gen: v6e
topology: v6e:2x2x1
jax: 0.10.0
libtpu: 0.0.40
codegen_flags: <defaults>
</compile_context>

<pallas_src>
import math
import functools

import jax
import jax.numpy as jnp
from jax.experimental import pallas as pl
from jax.experimental.pallas import tpu as pltpu  # noqa: F401  (TPU-specific tuning hooks)

# ----------------------------------------------------------------------------
# Small BERT config implied by NumCatLanguageModel hyperparameters
#   hidden_size, num_hidden_layers, num_attention_heads, intermediate_size
# ----------------------------------------------------------------------------
HIDDEN = 32
NUM_LAYERS = 2
NUM_HEADS = 2
HEAD_DIM = HIDDEN // NUM_HEADS
INTERMEDIATE = 64
VOCAB_SIZE = 50          # clncp_config.cat_vocab_size (synthetic)
MAX_POS = 512
TYPE_VOCAB = 1
LN_EPS = 1e-12
INIT_RANGE = 0.02

MXU_DTYPE = jnp.float32  # f32 operands: latency-bound matmuls, no bf16 pack/unpack cost


# ----------------------------------------------------------------------------
# Kernel helpers (f32 elementwise math, MXU matmuls with f32 accumulation)
# ----------------------------------------------------------------------------
def _ln(y, g, b):
    mu = jnp.mean(y, axis=-1, keepdims=True)
    var = jnp.mean(jnp.square(y - mu), axis=-1, keepdims=True)
    return (y - mu) * jax.lax.rsqrt(var + LN_EPS) * g + b


def _gelu(y):
    return 0.5 * y * (1.0 + jax.lax.erf(y * (1.0 / math.sqrt(2.0))))


def _mm(a, w):
    return jnp.dot(a.astype(MXU_DTYPE), w.astype(MXU_DTYPE),
                   preferred_element_type=jnp.float32)


# ----------------------------------------------------------------------------
# Fused forward kernel (single pallas_call, everything VMEM-resident)
# ----------------------------------------------------------------------------
def _fused_forward_kernel(ids_ref, amask_ref,
                          wemb_ref, pemb_ref, temb_ref,
                          emb_g_ref, emb_b_ref,
                          qkv_w_ref, qkv_b_ref,
                          ao_w_ref, ao_b_ref,
                          ln1_g_ref, ln1_b_ref,
                          i_w_ref, i_b_ref,
                          o_w_ref, o_b_ref,
                          ln2_g_ref, ln2_b_ref,
                          out_ref, *, batch, seq):
    B, S, H, nH, Dh = batch, seq, HIDDEN, NUM_HEADS, HEAD_DIM
    f32 = jnp.float32
    scale = 1.0 / math.sqrt(Dh)

    # ---- BertEmbeddings: one-hot gather on MXU + LayerNorm (no residual) ----
    ids = ids_ref[...]                                                    # (B*S, 1) int32
    vocab_iota = jax.lax.broadcasted_iota(jnp.int32, (B * S, VOCAB_SIZE), 1)
    onehot = (ids == vocab_iota).astype(f32)                              # (B*S, V)
    word = jnp.dot(onehot, wemb_ref[...], preferred_element_type=f32)     # (B*S, H)
    pos = jnp.concatenate([pemb_ref[...]] * B, axis=0)                    # (B*S, H)
    # type_vocab_size == 1  =>  token-type embedding is row 0 for every valid id
    x = _ln(word + pos + temb_ref[...], emb_g_ref[...], emb_b_ref[...])   # (B*S, H)

    # ---- HF extended attention mask, additive, shaped (nH*B, 1, S) ----
    add_mask = (1.0 - amask_ref[...]) * jnp.finfo(f32).min                # (B, S)
    m_bh = jnp.concatenate([add_mask.reshape(B, 1, S)] * nH, axis=0)      # (nH*B, 1, S)

    def attention(qkv, last_only):
        """qkv: (B*S, 3H).  Returns merged-head context: (B*S, H) or (B, H)."""
        def heads(col0, q_last):
            parts = []
            for h in range(nH):
                c = col0 + h * Dh
                blk = qkv[:, c:c + Dh].reshape(B, S, Dh)                  # (B, S, Dh)
                if q_last:
                    blk = blk[:, S - 1:S, :]                              # (B, 1, Dh)
                parts.append(blk)
            return jnp.concatenate(parts, axis=0)                         # (nH*B, Sq, Dh)

        q_bh = heads(0 * H, last_only)
        k_bh = heads(1 * H, False)
        v_bh = heads(2 * H, False)

        s = jnp.einsum('bqd,bkd->bqk', q_bh, k_bh,
                       preferred_element_type=f32) * scale                # (nH*B, Sq, S)
        s = s + m_bh
        s = s - jnp.max(s, axis=-1, keepdims=True)
        p = jnp.exp(s)
        p = p * pl.reciprocal(jnp.sum(p, axis=-1, keepdims=True), approx=True)
        ctx = jnp.einsum('bqk,bkd->bqd', p, v_bh,
                         preferred_element_type=f32)                      # (nH*B, Sq, Dh)
        Sq = 1 if last_only else S
        return jnp.concatenate(
            [ctx[h * B:(h + 1) * B].reshape(B * Sq, Dh) for h in range(nH)],
            axis=-1)                                                      # (B*Sq, H)

    # ---- encoder layers 0 .. L-2: all rows (later layers need full K/V) ----
    for l in range(NUM_LAYERS - 1):
        qkv = _mm(x, qkv_w_ref[l]) + qkv_b_ref[l]                         # (B*S, 3H)
        ctx = attention(qkv, last_only=False)                             # (B*S, H)
        x = _ln(_mm(ctx, ao_w_ref[l]) + ao_b_ref[l] + x, ln1_g_ref[l], ln1_b_ref[l])
        inter = _gelu(_mm(x, i_w_ref[l]) + i_b_ref[l])
        x = _ln(_mm(inter, o_w_ref[l]) + o_b_ref[l] + x, ln2_g_ref[l], ln2_b_ref[l])

    # ---- last layer: K/V over all rows, everything else only for last-token rows ----
    l = NUM_LAYERS - 1
    qkv = _mm(x, qkv_w_ref[l]) + qkv_b_ref[l]
    ctx = attention(qkv, last_only=True)                                  # (B, H)
    x_last = x.reshape(B, S, H)[:, S - 1:S, :].reshape(B, H)              # residual rows
    y = _ln(_mm(ctx, ao_w_ref[l]) + ao_b_ref[l] + x_last, ln1_g_ref[l], ln1_b_ref[l])
    inter = _gelu(_mm(y, i_w_ref[l]) + i_b_ref[l])
    out_ref[...] = _ln(_mm(inter, o_w_ref[l]) + o_b_ref[l] + y,
                       ln2_g_ref[l], ln2_b_ref[l])


def fused_forward(ids_flat, attention_mask, pos_emb_s, params, batch, seq):
    """Whole BERT forward in one pallas_call; returns (B, HIDDEN) f32."""
    inputs = [
        ids_flat, attention_mask,
        params["word_emb"], pos_emb_s, params["type_emb"],
        params["emb_ln_g"].reshape(1, HIDDEN), params["emb_ln_b"].reshape(1, HIDDEN),
        params["qkv_w"], params["qkv_b"],
        params["ao_w"], params["ao_b"],
        params["ln1_g"], params["ln1_b"],
        params["i_w"], params["i_b"],
        params["o_w"], params["o_b"],
        params["ln2_g"], params["ln2_b"],
    ]

    def full_spec(a):
        nd = a.ndim
        return pl.BlockSpec(a.shape, lambda: (0,) * nd)

    return pl.pallas_call(
        functools.partial(_fused_forward_kernel, batch=batch, seq=seq),
        out_shape=jax.ShapeDtypeStruct((batch, HIDDEN), jnp.float32),
        in_specs=[full_spec(a) for a in inputs],
        out_specs=pl.BlockSpec((batch, HIDDEN), lambda: (0, 0)),
    )(*inputs)


# ----------------------------------------------------------------------------
# Parameter construction (deterministic, initializer_range=0.02 like BERT)
# Per-layer weights stacked along a leading layer axis; Q/K/V fused to (H, 3H).
# ----------------------------------------------------------------------------
def init_params(key):
    def nrm(k, shape):
        return (INIT_RANGE * jax.random.normal(k, shape)).astype(jnp.float32)

    keys = jax.random.split(key, 3 + NUM_LAYERS)
    qkv_w, ao_w, i_w, o_w = [], [], [], []
    for li in range(NUM_LAYERS):
        lk = jax.random.split(keys[3 + li], 6)
        q = nrm(lk[0], (HIDDEN, HIDDEN))
        k = nrm(lk[1], (HIDDEN, HIDDEN))
        v = nrm(lk[2], (HIDDEN, HIDDEN))
        qkv_w.append(jnp.concatenate([q, k, v], axis=1))       # (H, 3H)
        ao_w.append(nrm(lk[3], (HIDDEN, HIDDEN)))
        i_w.append(nrm(lk[4], (HIDDEN, INTERMEDIATE)))
        o_w.append(nrm(lk[5], (INTERMEDIATE, HIDDEN)))

    L = NUM_LAYERS
    return {
        "word_emb": nrm(keys[0], (VOCAB_SIZE, HIDDEN)),
        "pos_emb":  nrm(keys[1], (MAX_POS, HIDDEN)),
        "type_emb": nrm(keys[2], (TYPE_VOCAB, HIDDEN)),
        "emb_ln_g": jnp.ones((HIDDEN,), jnp.float32),
        "emb_ln_b": jnp.zeros((HIDDEN,), jnp.float32),
        "qkv_w": jnp.stack(qkv_w),                              # (L, H, 3H)
        "qkv_b": jnp.zeros((L, 1, 3 * HIDDEN), jnp.float32),
        "ao_w":  jnp.stack(ao_w),                               # (L, H, H)
        "ao_b":  jnp.zeros((L, 1, HIDDEN), jnp.float32),
        "ln1_g": jnp.ones((L, 1, HIDDEN), jnp.float32),
        "ln1_b": jnp.zeros((L, 1, HIDDEN), jnp.float32),
        "i_w":   jnp.stack(i_w),                                # (L, H, I)
        "i_b":   jnp.zeros((L, 1, INTERMEDIATE), jnp.float32),
        "o_w":   jnp.stack(o_w),                                # (L, I, H)
        "o_b":   jnp.zeros((L, 1, HIDDEN), jnp.float32),
        "ln2_g": jnp.ones((L, 1, HIDDEN), jnp.float32),
        "ln2_b": jnp.zeros((L, 1, HIDDEN), jnp.float32),
    }


# ----------------------------------------------------------------------------
# Forward pass: NumCatLanguageModel.forward(inputs) -> bert_outputs[0][:, -1]
# ----------------------------------------------------------------------------
def num_cat_language_model_forward(params, input_ids, attention_mask, token_type_ids):
    # type_vocab_size == 1: token-type contribution == type_emb[0]; added inside the kernel.
    del token_type_ids
    B, S = input_ids.shape
    ids_flat = input_ids.reshape(B * S, 1).astype(jnp.int32)
    amask = attention_mask.astype(jnp.float32)
    pos_emb_s = params["pos_emb"][:S]                           # static slice (tiny)
    # dropout(p=0.1) layers -> identity in eval mode
    return fused_forward(ids_flat, amask, pos_emb_s, params, B, S)


# ----------------------------------------------------------------------------
if __name__ == "__main__":
    key = jax.random.PRNGKey(0)
    pkey, dkey = jax.random.split(key)

    params = init_params(pkey)

    B, S = 2, 8
    input_ids = jax.random.randint(dkey, (B, S), 0, VOCAB_SIZE, dtype=jnp.int32)
    attention_mask = jnp.ones((B, S), dtype=jnp.float32)
    token_type_ids = jnp.zeros((B, S), dtype=jnp.int32)

    fwd = jax.jit(num_cat_language_model_forward)
    out = jax.block_until_ready(fwd(params, input_ids, attention_mask, token_type_ids))

    assert out.shape == (B, HIDDEN), out.shape
    assert out.dtype == jnp.float32
    assert bool(jnp.all(jnp.isfinite(out)))
    print("KERNEL_OK")
</pallas_src>

<mosaic_0001>
module attributes {stable_mosaic.version = 11 : i64} {
  func.func @_fused_forward_kernel(%arg0: memref<16x1xi32, #tpu.memory_space<vmem>>, %arg1: memref<2x8xf32, #tpu.memory_space<vmem>>, %arg2: memref<50x32xf32, #tpu.memory_space<vmem>>, %arg3: memref<8x32xf32, #tpu.memory_space<vmem>>, %arg4: memref<1x32xf32, #tpu.memory_space<vmem>>, %arg5: memref<1x32xf32, #tpu.memory_space<vmem>>, %arg6: memref<1x32xf32, #tpu.memory_space<vmem>>, %arg7: memref<2x32x96xf32, #tpu.memory_space<vmem>>, %arg8: memref<2x1x96xf32, #tpu.memory_space<vmem>>, %arg9: memref<2x32x32xf32, #tpu.memory_space<vmem>>, %arg10: memref<2x1x32xf32, #tpu.memory_space<vmem>>, %arg11: memref<2x1x32xf32, #tpu.memory_space<vmem>>, %arg12: memref<2x1x32xf32, #tpu.memory_space<vmem>>, %arg13: memref<2x32x64xf32, #tpu.memory_space<vmem>>, %arg14: memref<2x1x64xf32, #tpu.memory_space<vmem>>, %arg15: memref<2x64x32xf32, #tpu.memory_space<vmem>>, %arg16: memref<2x1x32xf32, #tpu.memory_space<vmem>>, %arg17: memref<2x1x32xf32, #tpu.memory_space<vmem>>, %arg18: memref<2x1x32xf32, #tpu.memory_space<vmem>>, %arg19: memref<2x32xf32, #tpu.memory_space<vmem>>) attributes {dimension_semantics = [], scalar_prefetch = 0 : i64, scratch_operands = 0 : i64, tpu.core_type = #tpu.core_type<tc>} {
    %c0 = arith.constant 0 : index
    %c0_0 = arith.constant 0 : index
    %0 = vector.load %arg0[%c0, %c0_0] : memref<16x1xi32, #tpu.memory_space<vmem>>, vector<16x1xi32>
    %1 = tpu.iota {dimensions = array<i32: 1>} : vector<16x50xi32>
    %2 = vector.broadcast %0 : vector<16x1xi32> to vector<16x50xi32>
    %3 = arith.cmpi eq, %2, %1 : vector<16x50xi32>
    %4 = arith.extui %3 : vector<16x50xi1> to vector<16x50xi32>
    %5 = arith.sitofp %4 : vector<16x50xi32> to vector<16x50xf32>
    %c0_1 = arith.constant 0 : index
    %c0_2 = arith.constant 0 : index
    %6 = vector.load %arg2[%c0_1, %c0_2] : memref<50x32xf32, #tpu.memory_space<vmem>>, vector<50x32xf32>
    %cst = arith.constant dense<0.000000e+00> : vector<16x32xf32>
    %7 = tpu.matmul %5, %6, %cst {dimension_numbers = #tpu.dot_dimension_numbers<[1], [0], [0], [1], [0, 0, 1, 1], [], []>} : vector<16x50xf32>, vector<50x32xf32>, vector<16x32xf32> -> vector<16x32xf32>
    %c0_3 = arith.constant 0 : index
    %c0_4 = arith.constant 0 : index
    %8 = vector.load %arg3[%c0_3, %c0_4] : memref<8x32xf32, #tpu.memory_space<vmem>>, vector<8x32xf32>
    %9 = tpu.concatenate %8, %8 in 0 : vector<8x32xf32>, vector<8x32xf32> -> vector<16x32xf32>
    %10 = arith.addf %7, %9 : vector<16x32xf32>
    %c0_5 = arith.constant 0 : index
    %c0_6 = arith.constant 0 : index
    %11 = vector.load %arg4[%c0_5, %c0_6] : memref<1x32xf32, #tpu.memory_space<vmem>>, vector<1x32xf32>
    %12 = vector.broadcast %11 : vector<1x32xf32> to vector<16x32xf32>
    %13 = arith.addf %10, %12 : vector<16x32xf32>
    %c0_7 = arith.constant 0 : index
    %c0_8 = arith.constant 0 : index
    %14 = vector.load %arg5[%c0_7, %c0_8] : memref<1x32xf32, #tpu.memory_space<vmem>>, vector<1x32xf32>
    %c0_9 = arith.constant 0 : index
    %c0_10 = arith.constant 0 : index
    %15 = vector.load %arg6[%c0_9, %c0_10] : memref<1x32xf32, #tpu.memory_space<vmem>>, vector<1x32xf32>
    %cst_11 = arith.constant dense<0.000000e+00> : vector<16xf32>
    %16 = vector.multi_reduction <add>, %13, %cst_11 [1] : vector<16x32xf32> to vector<16xf32>
    %17 = vector.shape_cast %16 : vector<16xf32> to vector<16x1xf32>
    %cst_12 = arith.constant 3.200000e+01 : f32
    %18 = vector.broadcast %cst_12 : f32 to vector<16x1xf32>
    %19 = arith.divf %17, %18 : vector<16x1xf32>
    %20 = vector.broadcast %19 : vector<16x1xf32> to vector<16x32xf32>
    %21 = arith.subf %13, %20 : vector<16x32xf32>
    %22 = arith.mulf %21, %21 : vector<16x32xf32>
    %cst_13 = arith.constant dense<0.000000e+00> : vector<16xf32>
    %23 = vector.multi_reduction <add>, %22, %cst_13 [1] : vector<16x32xf32> to vector<16xf32>
    %24 = vector.shape_cast %23 : vector<16xf32> to vector<16x1xf32>
    %cst_14 = arith.constant 3.200000e+01 : f32
    %25 = vector.broadcast %cst_14 : f32 to vector<16x1xf32>
    %26 = arith.divf %24, %25 : vector<16x1xf32>
    %27 = vector.broadcast %19 : vector<16x1xf32> to vector<16x32xf32>
    %28 = arith.subf %13, %27 : vector<16x32xf32>
    %cst_15 = arith.constant 9.99999996E-13 : f32
    %29 = vector.broadcast %cst_15 : f32 to vector<16x1xf32>
    %30 = arith.addf %26, %29 : vector<16x1xf32>
    %31 = math.rsqrt %30 : vector<16x1xf32>
    %32 = vector.broadcast %31 : vector<16x1xf32> to vector<16x32xf32>
    %33 = arith.mulf %28, %32 : vector<16x32xf32>
    %34 = vector.broadcast %14 : vector<1x32xf32> to vector<16x32xf32>
    %35 = arith.mulf %33, %34 : vector<16x32xf32>
    %36 = vector.broadcast %15 : vector<1x32xf32> to vector<16x32xf32>
    %37 = arith.addf %35, %36 : vector<16x32xf32>
    %c0_16 = arith.constant 0 : index
    %c0_17 = arith.constant 0 : index
    %38 = vector.load %arg1[%c0_16, %c0_17] : memref<2x8xf32, #tpu.memory_space<vmem>>, vector<2x8xf32>
    %cst_18 = arith.constant 1.000000e+00 : f32
    %39 = vector.broadcast %cst_18 : f32 to vector<2x8xf32>
    %40 = arith.subf %39, %38 : vector<2x8xf32>
    %cst_19 = arith.constant -3.40282347E+38 : f32
    %41 = vector.broadcast %cst_19 : f32 to vector<2x8xf32>
    %42 = arith.mulf %40, %41 : vector<2x8xf32>
    %43 = vector.shape_cast %42 : vector<2x8xf32> to vector<2x1x8xf32>
    %44 = tpu.concatenate %43, %43 in 0 : vector<2x1x8xf32>, vector<2x1x8xf32> -> vector<4x1x8xf32>
    %c0_20 = arith.constant 0 : index
    %c0_21 = arith.constant 0 : index
    %c0_22 = arith.constant 0 : index
    %45 = vector.load %arg7[%c0_20, %c0_21, %c0_22] : memref<2x32x96xf32, #tpu.memory_space<vmem>>, vector<1x32x96xf32>
    %46 = vector.shape_cast %45 : vector<1x32x96xf32> to vector<32x96xf32>
    %cst_23 = arith.constant dense<0.000000e+00> : vector<16x96xf32>
    %47 = tpu.matmul %37, %46, %cst_23 {dimension_numbers = #tpu.dot_dimension_numbers<[1], [0], [0], [1], [0, 0, 1, 1], [], []>} : vector<16x32xf32>, vector<32x96xf32>, vector<16x96xf32> -> vector<16x96xf32>
    %c0_24 = arith.constant 0 : index
    %c0_25 = arith.constant 0 : index
    %c0_26 = arith.constant 0 : index
    %48 = vector.load %arg8[%c0_24, %c0_25, %c0_26] : memref<2x1x96xf32, #tpu.memory_space<vmem>>, vector<1x1x96xf32>
    %49 = vector.shape_cast %48 : vector<1x1x96xf32> to vector<1x96xf32>
    %50 = vector.broadcast %49 : vector<1x96xf32> to vector<16x96xf32>
    %51 = arith.addf %47, %50 : vector<16x96xf32>
    %52 = vector.extract_strided_slice %51 {offsets = [0, 0], sizes = [16, 16], strides = [1, 1]} : vector<16x96xf32> to vector<16x16xf32>
    %53 = vector.shape_cast %52 : vector<16x16xf32> to vector<2x8x16xf32>
    %54 = vector.extract_strided_slice %51 {offsets = [0, 16], sizes = [16, 16], strides = [1, 1]} : vector<16x96xf32> to vector<16x16xf32>
    %55 = vector.shape_cast %54 : vector<16x16xf32> to vector<2x8x16xf32>
    %56 = tpu.concatenate %53, %55 in 0 : vector<2x8x16xf32>, vector<2x8x16xf32> -> vector<4x8x16xf32>
    %57 = vector.extract_strided_slice %51 {offsets = [0, 32], sizes = [16, 16], strides = [1, 1]} : vector<16x96xf32> to vector<16x16xf32>
    %58 = vector.shape_cast %57 : vector<16x16xf32> to vector<2x8x16xf32>
    %59 = vector.extract_strided_slice %51 {offsets = [0, 48], sizes = [16, 16], strides = [1, 1]} : vector<16x96xf32> to vector<16x16xf32>
    %60 = vector.shape_cast %59 : vector<16x16xf32> to vector<2x8x16xf32>
    %61 = tpu.concatenate %58, %60 in 0 : vector<2x8x16xf32>, vector<2x8x16xf32> -> vector<4x8x16xf32>
    %62 = vector.extract_strided_slice %51 {offsets = [0, 64], sizes = [16, 16], strides = [1, 1]} : vector<16x96xf32> to vector<16x16xf32>
    %63 = vector.shape_cast %62 : vector<16x16xf32> to vector<2x8x16xf32>
    %64 = vector.extract_strided_slice %51 {offsets = [0, 80], sizes = [16, 16], strides = [1, 1]} : vector<16x96xf32> to vector<16x16xf32>
    %65 = vector.shape_cast %64 : vector<16x16xf32> to vector<2x8x16xf32>
    %66 = tpu.concatenate %63, %65 in 0 : vector<2x8x16xf32>, vector<2x8x16xf32> -> vector<4x8x16xf32>
    "tpu.trace_start"() <{level = 10 : i32, message = "bqd,bkd->bqk"}> : () -> ()
    %cst_27 = arith.constant dense<0.000000e+00> : vector<4x8x8xf32>
    %67 = tpu.matmul %56, %61, %cst_27 {dimension_numbers = #tpu.dot_dimension_numbers<[2], [2], [1], [1], [0, 0, 0, 1, 1, 1], [0], [0]>} : vector<4x8x16xf32>, vector<4x8x16xf32>, vector<4x8x8xf32> -> vector<4x8x8xf32>
    "tpu.trace_stop"() : () -> ()
    %cst_28 = arith.constant 2.500000e-01 : f32
    %68 = vector.broadcast %cst_28 : f32 to vector<4x8x8xf32>
    %69 = arith.mulf %67, %68 : vector<4x8x8xf32>
    %70 = vector.broadcast %44 : vector<4x1x8xf32> to vector<4x8x8xf32>
    %71 = arith.addf %69, %70 : vector<4x8x8xf32>
    %cst_29 = arith.constant dense<0xFF800000> : vector<4x8xf32>
    %72 = vector.multi_reduction <maximumf>, %71, %cst_29 [2] : vector<4x8x8xf32> to vector<4x8xf32>
    %73 = vector.shape_cast %72 : vector<4x8xf32> to vector<4x8x1xf32>
    %74 = vector.broadcast %73 : vector<4x8x1xf32> to vector<4x8x8xf32>
    %75 = arith.subf %71, %74 : vector<4x8x8xf32>
    %76 = math.exp %75 : vector<4x8x8xf32>
    %cst_30 = arith.constant dense<0.000000e+00> : vector<4x8xf32>
    %77 = vector.multi_reduction <add>, %76, %cst_30 [2] : vector<4x8x8xf32> to vector<4x8xf32>
    %78 = vector.shape_cast %77 : vector<4x8xf32> to vector<4x8x1xf32>
    %79 = tpu.reciprocal %78 {approx = true} : vector<4x8x1xf32> -> vector<4x8x1xf32>
    %80 = vector.broadcast %79 : vector<4x8x1xf32> to vector<4x8x8xf32>
    %81 = arith.mulf %76, %80 : vector<4x8x8xf32>
    "tpu.trace_start"() <{level = 10 : i32, message = "bqk,bkd->bqd"}> : () -> ()
    %cst_31 = arith.constant dense<0.000000e+00> : vector<4x8x16xf32>
    %82 = tpu.matmul %81, %66, %cst_31 {dimension_numbers = #tpu.dot_dimension_numbers<[2], [1], [1], [2], [0, 0, 0, 1, 1, 2], [0], [0]>} : vector<4x8x8xf32>, vector<4x8x16xf32>, vector<4x8x16xf32> -> vector<4x8x16xf32>
    "tpu.trace_stop"() : () -> ()
    %83 = vector.extract_strided_slice %82 {offsets = [0, 0, 0], sizes = [2, 8, 16], strides = [1, 1, 1]} : vector<4x8x16xf32> to vector<2x8x16xf32>
    %84 = vector.shape_cast %83 : vector<2x8x16xf32> to vector<16x16xf32>
    %85 = vector.extract_strided_slice %82 {offsets = [2, 0, 0], sizes = [2, 8, 16], strides = [1, 1, 1]} : vector<4x8x16xf32> to vector<2x8x16xf32>
    %86 = vector.shape_cast %85 : vector<2x8x16xf32> to vector<16x16xf32>
    %87 = tpu.concatenate %84, %86 in 1 : vector<16x16xf32>, vector<16x16xf32> -> vector<16x32xf32>
    %c0_32 = arith.constant 0 : index
    %c0_33 = arith.constant 0 : index
    %c0_34 = arith.constant 0 : index
    %88 = vector.load %arg9[%c0_32, %c0_33, %c0_34] : memref<2x32x32xf32, #tpu.memory_space<vmem>>, vector<1x32x32xf32>
    %89 = vector.shape_cast %88 : vector<1x32x32xf32> to vector<32x32xf32>
    %cst_35 = arith.constant dense<0.000000e+00> : vector<16x32xf32>
    %90 = tpu.matmul %87, %89, %cst_35 {dimension_numbers = #tpu.dot_dimension_numbers<[1], [0], [0], [1], [0, 0, 1, 1], [], []>} : vector<16x32xf32>, vector<32x32xf32>, vector<16x32xf32> -> vector<16x32xf32>
    %c0_36 = arith.constant 0 : index
    %c0_37 = arith.constant 0 : index
    %c0_38 = arith.constant 0 : index
    %91 = vector.load %arg10[%c0_36, %c0_37, %c0_38] : memref<2x1x32xf32, #tpu.memory_space<vmem>>, vector<1x1x32xf32>
    %92 = vector.shape_cast %91 : vector<1x1x32xf32> to vector<1x32xf32>
    %93 = vector.broadcast %92 : vector<1x32xf32> to vector<16x32xf32>
    %94 = arith.addf %90, %93 : vector<16x32xf32>
    %95 = arith.addf %94, %37 : vector<16x32xf32>
    %c0_39 = arith.constant 0 : index
    %c0_40 = arith.constant 0 : index
    %c0_41 = arith.constant 0 : index
    %96 = vector.load %arg11[%c0_39, %c0_40, %c0_41] : memref<2x1x32xf32, #tpu.memory_space<vmem>>, vector<1x1x32xf32>
    %97 = vector.shape_cast %96 : vector<1x1x32xf32> to vector<1x32xf32>
    %c0_42 = arith.constant 0 : index
    %c0_43 = arith.constant 0 : index
    %c0_44 = arith.constant 0 : index
    %98 = vector.load %arg12[%c0_42, %c0_43, %c0_44] : memref<2x1x32xf32, #tpu.memory_space<vmem>>, vector<1x1x32xf32>
    %99 = vector.shape_cast %98 : vector<1x1x32xf32> to vector<1x32xf32>
    %cst_45 = arith.constant dense<0.000000e+00> : vector<16xf32>
    %100 = vector.multi_reduction <add>, %95, %cst_45 [1] : vector<16x32xf32> to vector<16xf32>
    %101 = vector.shape_cast %100 : vector<16xf32> to vector<16x1xf32>
    %cst_46 = arith.constant 3.200000e+01 : f32
    %102 = vector.broadcast %cst_46 : f32 to vector<16x1xf32>
    %103 = arith.divf %101, %102 : vector<16x1xf32>
    %104 = vector.broadcast %103 : vector<16x1xf32> to vector<16x32xf32>
    %105 = arith.subf %95, %104 : vector<16x32xf32>
    %106 = arith.mulf %105, %105 : vector<16x32xf32>
    %cst_47 = arith.constant dense<0.000000e+00> : vector<16xf32>
    %107 = vector.multi_reduction <add>, %106, %cst_47 [1] : vector<16x32xf32> to vector<16xf32>
    %108 = vector.shape_cast %107 : vector<16xf32> to vector<16x1xf32>
    %cst_48 = arith.constant 3.200000e+01 : f32
    %109 = vector.broadcast %cst_48 : f32 to vector<16x1xf32>
    %110 = arith.divf %108, %109 : vector<16x1xf32>
    %111 = vector.broadcast %103 : vector<16x1xf32> to vector<16x32xf32>
    %112 = arith.subf %95, %111 : vector<16x32xf32>
    %cst_49 = arith.constant 9.99999996E-13 : f32
    %113 = vector.broadcast %cst_49 : f32 to vector<16x1xf32>
    %114 = arith.addf %110, %113 : vector<16x1xf32>
    %115 = math.rsqrt %114 : vector<16x1xf32>
    %116 = vector.broadcast %115 : vector<16x1xf32> to vector<16x32xf32>
    %117 = arith.mulf %112, %116 : vector<16x32xf32>
    %118 = vector.broadcast %97 : vector<1x32xf32> to vector<16x32xf32>
    %119 = arith.mulf %117, %118 : vector<16x32xf32>
    %120 = vector.broadcast %99 : vector<1x32xf32> to vector<16x32xf32>
    %121 = arith.addf %119, %120 : vector<16x32xf32>
    %c0_50 = arith.constant 0 : index
    %c0_51 = arith.constant 0 : index
    %c0_52 = arith.constant 0 : index
    %122 = vector.load %arg13[%c0_50, %c0_51, %c0_52] : memref<2x32x64xf32, #tpu.memory_space<vmem>>, vector<1x32x64xf32>
    %123 = vector.shape_cast %122 : vector<1x32x64xf32> to vector<32x64xf32>
    %cst_53 = arith.constant dense<0.000000e+00> : vector<16x64xf32>
    %124 = tpu.matmul %121, %123, %cst_53 {dimension_numbers = #tpu.dot_dimension_numbers<[1], [0], [0], [1], [0, 0, 1, 1], [], []>} : vector<16x32xf32>, vector<32x64xf32>, vector<16x64xf32> -> vector<16x64xf32>
    %c0_54 = arith.constant 0 : index
    %c0_55 = arith.constant 0 : index
    %c0_56 = arith.constant 0 : index
    %125 = vector.load %arg14[%c0_54, %c0_55, %c0_56] : memref<2x1x64xf32, #tpu.memory_space<vmem>>, vector<1x1x64xf32>
    %126 = vector.shape_cast %125 : vector<1x1x64xf32> to vector<1x64xf32>
    %127 = vector.broadcast %126 : vector<1x64xf32> to vector<16x64xf32>
    %128 = arith.addf %124, %127 : vector<16x64xf32>
    %cst_57 = arith.constant 5.000000e-01 : f32
    %129 = vector.broadcast %cst_57 : f32 to vector<16x64xf32>
    %130 = arith.mulf %129, %128 : vector<16x64xf32>
    %cst_58 = arith.constant 0.707106769 : f32
    %131 = vector.broadcast %cst_58 : f32 to vector<16x64xf32>
    %132 = arith.mulf %128, %131 : vector<16x64xf32>
    %133 = math.erf %132 : vector<16x64xf32>
    %cst_59 = arith.constant 1.000000e+00 : f32
    %134 = vector.broadcast %cst_59 : f32 to vector<16x64xf32>
    %135 = arith.addf %134, %133 : vector<16x64xf32>
    %136 = arith.mulf %130, %135 : vector<16x64xf32>
    %c0_60 = arith.constant 0 : index
    %c0_61 = arith.constant 0 : index
    %c0_62 = arith.constant 0 : index
    %137 = vector.load %arg15[%c0_60, %c0_61, %c0_62] : memref<2x64x32xf32, #tpu.memory_space<vmem>>, vector<1x64x32xf32>
    %138 = vector.shape_cast %137 : vector<1x64x32xf32> to vector<64x32xf32>
    %cst_63 = arith.constant dense<0.000000e+00> : vector<16x32xf32>
    %139 = tpu.matmul %136, %138, %cst_63 {dimension_numbers = #tpu.dot_dimension_numbers<[1], [0], [0], [1], [0, 0, 1, 1], [], []>} : vector<16x64xf32>, vector<64x32xf32>, vector<16x32xf32> -> vector<16x32xf32>
    %c0_64 = arith.constant 0 : index
    %c0_65 = arith.constant 0 : index
    %c0_66 = arith.constant 0 : index
    %140 = vector.load %arg16[%c0_64, %c0_65, %c0_66] : memref<2x1x32xf32, #tpu.memory_space<vmem>>, vector<1x1x32xf32>
    %141 = vector.shape_cast %140 : vector<1x1x32xf32> to vector<1x32xf32>
    %142 = vector.broadcast %141 : vector<1x32xf32> to vector<16x32xf32>
    %143 = arith.addf %139, %142 : vector<16x32xf32>
    %144 = arith.addf %143, %121 : vector<16x32xf32>
    %c0_67 = arith.constant 0 : index
    %c0_68 = arith.constant 0 : index
    %c0_69 = arith.constant 0 : index
    %145 = vector.load %arg17[%c0_67, %c0_68, %c0_69] : memref<2x1x32xf32, #tpu.memory_space<vmem>>, vector<1x1x32xf32>
    %146 = vector.shape_cast %145 : vector<1x1x32xf32> to vector<1x32xf32>
    %c0_70 = arith.constant 0 : index
    %c0_71 = arith.constant 0 : index
    %c0_72 = arith.constant 0 : index
    %147 = vector.load %arg18[%c0_70, %c0_71, %c0_72] : memref<2x1x32xf32, #tpu.memory_space<vmem>>, vector<1x1x32xf32>
    %148 = vector.shape_cast %147 : vector<1x1x32xf32> to vector<1x32xf32>
    %cst_73 = arith.constant dense<0.000000e+00> : vector<16xf32>
    %149 = vector.multi_reduction <add>, %144, %cst_73 [1] : vector<16x32xf32> to vector<16xf32>
    %150 = vector.shape_cast %149 : vector<16xf32> to vector<16x1xf32>
    %cst_74 = arith.constant 3.200000e+01 : f32
    %151 = vector.broadcast %cst_74 : f32 to vector<16x1xf32>
    %152 = arith.divf %150, %151 : vector<16x1xf32>
    %153 = vector.broadcast %152 : vector<16x1xf32> to vector<16x32xf32>
    %154 = arith.subf %144, %153 : vector<16x32xf32>
    %155 = arith.mulf %154, %154 : vector<16x32xf32>
    %cst_75 = arith.constant dense<0.000000e+00> : vector<16xf32>
    %156 = vector.multi_reduction <add>, %155, %cst_75 [1] : vector<16x32xf32> to vector<16xf32>
    %157 = vector.shape_cast %156 : vector<16xf32> to vector<16x1xf32>
    %cst_76 = arith.constant 3.200000e+01 : f32
    %158 = vector.broadcast %cst_76 : f32 to vector<16x1xf32>
    %159 = arith.divf %157, %158 : vector<16x1xf32>
    %160 = vector.broadcast %152 : vector<16x1xf32> to vector<16x32xf32>
    %161 = arith.subf %144, %160 : vector<16x32xf32>
    %cst_77 = arith.constant 9.99999996E-13 : f32
    %162 = vector.broadcast %cst_77 : f32 to vector<16x1xf32>
    %163 = arith.addf %159, %162 : vector<16x1xf32>
    %164 = math.rsqrt %163 : vector<16x1xf32>
    %165 = vector.broadcast %164 : vector<16x1xf32> to vector<16x32xf32>
    %166 = arith.mulf %161, %165 : vector<16x32xf32>
    %167 = vector.broadcast %146 : vector<1x32xf32> to vector<16x32xf32>
    %168 = arith.mulf %166, %167 : vector<16x32xf32>
    %169 = vector.broadcast %148 : vector<1x32xf32> to vector<16x32xf32>
    %170 = arith.addf %168, %169 : vector<16x32xf32>
    %c1 = arith.constant 1 : index
    %c0_78 = arith.constant 0 : index
    %c0_79 = arith.constant 0 : index
    %171 = vector.load %arg7[%c1, %c0_78, %c0_79] : memref<2x32x96xf32, #tpu.memory_space<vmem>>, vector<1x32x96xf32>
    %172 = vector.shape_cast %171 : vector<1x32x96xf32> to vector<32x96xf32>
    %cst_80 = arith.constant dense<0.000000e+00> : vector<16x96xf32>
    %173 = tpu.matmul %170, %172, %cst_80 {dimension_numbers = #tpu.dot_dimension_numbers<[1], [0], [0], [1], [0, 0, 1, 1], [], []>} : vector<16x32xf32>, vector<32x96xf32>, vector<16x96xf32> -> vector<16x96xf32>
    %c1_81 = arith.constant 1 : index
    %c0_82 = arith.constant 0 : index
    %c0_83 = arith.constant 0 : index
    %174 = vector.load %arg8[%c1_81, %c0_82, %c0_83] : memref<2x1x96xf32, #tpu.memory_space<vmem>>, vector<1x1x96xf32>
    %175 = vector.shape_cast %174 : vector<1x1x96xf32> to vector<1x96xf32>
    %176 = vector.broadcast %175 : vector<1x96xf32> to vector<16x96xf32>
    %177 = arith.addf %173, %176 : vector<16x96xf32>
    %178 = vector.extract_strided_slice %177 {offsets = [0, 0], sizes = [16, 16], strides = [1, 1]} : vector<16x96xf32> to vector<16x16xf32>
    %179 = vector.shape_cast %178 : vector<16x16xf32> to vector<2x8x16xf32>
    %180 = vector.extract_strided_slice %179 {offsets = [0, 7, 0], sizes = [2, 1, 16], strides = [1, 1, 1]} : vector<2x8x16xf32> to vector<2x1x16xf32>
    %181 = vector.extract_strided_slice %177 {offsets = [0, 16], sizes = [16, 16], strides = [1, 1]} : vector<16x96xf32> to vector<16x16xf32>
    %182 = vector.shape_cast %181 : vector<16x16xf32> to vector<2x8x16xf32>
    %183 = vector.extract_strided_slice %182 {offsets = [0, 7, 0], sizes = [2, 1, 16], strides = [1, 1, 1]} : vector<2x8x16xf32> to vector<2x1x16xf32>
    %184 = tpu.concatenate %180, %183 in 0 : vector<2x1x16xf32>, vector<2x1x16xf32> -> vector<4x1x16xf32>
    %185 = vector.extract_strided_slice %177 {offsets = [0, 32], sizes = [16, 16], strides = [1, 1]} : vector<16x96xf32> to vector<16x16xf32>
    %186 = vector.shape_cast %185 : vector<16x16xf32> to vector<2x8x16xf32>
    %187 = vector.extract_strided_slice %177 {offsets = [0, 48], sizes = [16, 16], strides = [1, 1]} : vector<16x96xf32> to vector<16x16xf32>
    %188 = vector.shape_cast %187 : vector<16x16xf32> to vector<2x8x16xf32>
    %189 = tpu.concatenate %186, %188 in 0 : vector<2x8x16xf32>, vector<2x8x16xf32> -> vector<4x8x16xf32>
    %190 = vector.extract_strided_slice %177 {offsets = [0, 64], sizes = [16, 16], strides = [1, 1]} : vector<16x96xf32> to vector<16x16xf32>
    %191 = vector.shape_cast %190 : vector<16x16xf32> to vector<2x8x16xf32>
    %192 = vector.extract_strided_slice %177 {offsets = [0, 80], sizes = [16, 16], strides = [1, 1]} : vector<16x96xf32> to vector<16x16xf32>
    %193 = vector.shape_cast %192 : vector<16x16xf32> to vector<2x8x16xf32>
    %194 = tpu.concatenate %191, %193 in 0 : vector<2x8x16xf32>, vector<2x8x16xf32> -> vector<4x8x16xf32>
    "tpu.trace_start"() <{level = 10 : i32, message = "bqd,bkd->bqk"}> : () -> ()
    %cst_84 = arith.constant dense<0.000000e+00> : vector<4x1x8xf32>
    %195 = tpu.matmul %184, %189, %cst_84 {dimension_numbers = #tpu.dot_dimension_numbers<[2], [2], [1], [1], [0, 0, 0, 1, 1, 1], [0], [0]>} : vector<4x1x16xf32>, vector<4x8x16xf32>, vector<4x1x8xf32> -> vector<4x1x8xf32>
    "tpu.trace_stop"() : () -> ()
    %cst_85 = arith.constant 2.500000e-01 : f32
    %196 = vector.broadcast %cst_85 : f32 to vector<4x1x8xf32>
    %197 = arith.mulf %195, %196 : vector<4x1x8xf32>
    %198 = arith.addf %197, %44 : vector<4x1x8xf32>
    %cst_86 = arith.constant dense<0xFF800000> : vector<4x1xf32>
    %199 = vector.multi_reduction <maximumf>, %198, %cst_86 [2] : vector<4x1x8xf32> to vector<4x1xf32>
    %200 = vector.shape_cast %199 : vector<4x1xf32> to vector<4x1x1xf32>
    %201 = vector.broadcast %200 : vector<4x1x1xf32> to vector<4x1x8xf32>
    %202 = arith.subf %198, %201 : vector<4x1x8xf32>
    %203 = math.exp %202 : vector<4x1x8xf32>
    %cst_87 = arith.constant dense<0.000000e+00> : vector<4x1xf32>
    %204 = vector.multi_reduction <add>, %203, %cst_87 [2] : vector<4x1x8xf32> to vector<4x1xf32>
    %205 = vector.shape_cast %204 : vector<4x1xf32> to vector<4x1x1xf32>
    %206 = tpu.reciprocal %205 {approx = true} : vector<4x1x1xf32> -> vector<4x1x1xf32>
    %207 = vector.broadcast %206 : vector<4x1x1xf32> to vector<4x1x8xf32>
    %208 = arith.mulf %203, %207 : vector<4x1x8xf32>
    "tpu.trace_start"() <{level = 10 : i32, message = "bqk,bkd->bqd"}> : () -> ()
    %cst_88 = arith.constant dense<0.000000e+00> : vector<4x1x16xf32>
    %209 = tpu.matmul %208, %194, %cst_88 {dimension_numbers = #tpu.dot_dimension_numbers<[2], [1], [1], [2], [0, 0, 0, 1, 1, 2], [0], [0]>} : vector<4x1x8xf32>, vector<4x8x16xf32>, vector<4x1x16xf32> -> vector<4x1x16xf32>
    "tpu.trace_stop"() : () -> ()
    %210 = vector.extract_strided_slice %209 {offsets = [0, 0, 0], sizes = [2, 1, 16], strides = [1, 1, 1]} : vector<4x1x16xf32> to vector<2x1x16xf32>
    %211 = vector.shape_cast %210 : vector<2x1x16xf32> to vector<2x16xf32>
    %212 = vector.extract_strided_slice %209 {offsets = [2, 0, 0], sizes = [2, 1, 16], strides = [1, 1, 1]} : vector<4x1x16xf32> to vector<2x1x16xf32>
    %213 = vector.shape_cast %212 : vector<2x1x16xf32> to vector<2x16xf32>
    %214 = tpu.concatenate %211, %213 in 1 : vector<2x16xf32>, vector<2x16xf32> -> vector<2x32xf32>
    %215 = vector.shape_cast %170 : vector<16x32xf32> to vector<2x8x32xf32>
    %216 = vector.extract_strided_slice %215 {offsets = [0, 7, 0], sizes = [2, 1, 32], strides = [1, 1, 1]} : vector<2x8x32xf32> to vector<2x1x32xf32>
    %217 = vector.shape_cast %216 : vector<2x1x32xf32> to vector<2x32xf32>
    %c1_89 = arith.constant 1 : index
    %c0_90 = arith.constant 0 : index
    %c0_91 = arith.constant 0 : index
    %218 = vector.load %arg9[%c1_89, %c0_90, %c0_91] : memref<2x32x32xf32, #tpu.memory_space<vmem>>, vector<1x32x32xf32>
    %219 = vector.shape_cast %218 : vector<1x32x32xf32> to vector<32x32xf32>
    %cst_92 = arith.constant dense<0.000000e+00> : vector<2x32xf32>
    %220 = tpu.matmul %214, %219, %cst_92 {dimension_numbers = #tpu.dot_dimension_numbers<[1], [0], [0], [1], [0, 0, 1, 1], [], []>} : vector<2x32xf32>, vector<32x32xf32>, vector<2x32xf32> -> vector<2x32xf32>
    %c1_93 = arith.constant 1 : index
    %c0_94 = arith.constant 0 : index
    %c0_95 = arith.constant 0 : index
    %221 = vector.load %arg10[%c1_93, %c0_94, %c0_95] : memref<2x1x32xf32, #tpu.memory_space<vmem>>, vector<1x1x32xf32>
    %222 = vector.shape_cast %221 : vector<1x1x32xf32> to vector<1x32xf32>
    %223 = vector.broadcast %222 : vector<1x32xf32> to vector<2x32xf32>
    %224 = arith.addf %220, %223 : vector<2x32xf32>
    %225 = arith.addf %224, %217 : vector<2x32xf32>
    %c1_96 = arith.constant 1 : index
    %c0_97 = arith.constant 0 : index
    %c0_98 = arith.constant 0 : index
    %226 = vector.load %arg11[%c1_96, %c0_97, %c0_98] : memref<2x1x32xf32, #tpu.memory_space<vmem>>, vector<1x1x32xf32>
    %227 = vector.shape_cast %226 : vector<1x1x32xf32> to vector<1x32xf32>
    %c1_99 = arith.constant 1 : index
    %c0_100 = arith.constant 0 : index
    %c0_101 = arith.constant 0 : index
    %228 = vector.load %arg12[%c1_99, %c0_100, %c0_101] : memref<2x1x32xf32, #tpu.memory_space<vmem>>, vector<1x1x32xf32>
    %229 = vector.shape_cast %228 : vector<1x1x32xf32> to vector<1x32xf32>
    %cst_102 = arith.constant dense<0.000000e+00> : vector<2xf32>
    %230 = vector.multi_reduction <add>, %225, %cst_102 [1] : vector<2x32xf32> to vector<2xf32>
    %231 = vector.shape_cast %230 : vector<2xf32> to vector<2x1xf32>
    %cst_103 = arith.constant 3.200000e+01 : f32
    %232 = vector.broadcast %cst_103 : f32 to vector<2x1xf32>
    %233 = arith.divf %231, %232 : vector<2x1xf32>
    %234 = vector.broadcast %233 : vector<2x1xf32> to vector<2x32xf32>
    %235 = arith.subf %225, %234 : vector<2x32xf32>
    %236 = arith.mulf %235, %235 : vector<2x32xf32>
    %cst_104 = arith.constant dense<0.000000e+00> : vector<2xf32>
    %237 = vector.multi_reduction <add>, %236, %cst_104 [1] : vector<2x32xf32> to vector<2xf32>
    %238 = vector.shape_cast %237 : vector<2xf32> to vector<2x1xf32>
    %cst_105 = arith.constant 3.200000e+01 : f32
    %239 = vector.broadcast %cst_105 : f32 to vector<2x1xf32>
    %240 = arith.divf %238, %239 : vector<2x1xf32>
    %241 = vector.broadcast %233 : vector<2x1xf32> to vector<2x32xf32>
    %242 = arith.subf %225, %241 : vector<2x32xf32>
    %cst_106 = arith.constant 9.99999996E-13 : f32
    %243 = vector.broadcast %cst_106 : f32 to vector<2x1xf32>
    %244 = arith.addf %240, %243 : vector<2x1xf32>
    %245 = math.rsqrt %244 : vector<2x1xf32>
    %246 = vector.broadcast %245 : vector<2x1xf32> to vector<2x32xf32>
    %247 = arith.mulf %242, %246 : vector<2x32xf32>
    %248 = vector.broadcast %227 : vector<1x32xf32> to vector<2x32xf32>
    %249 = arith.mulf %247, %248 : vector<2x32xf32>
    %250 = vector.broadcast %229 : vector<1x32xf32> to vector<2x32xf32>
    %251 = arith.addf %249, %250 : vector<2x32xf32>
    %c1_107 = arith.constant 1 : index
    %c0_108 = arith.constant 0 : index
    %c0_109 = arith.constant 0 : index
    %252 = vector.load %arg13[%c1_107, %c0_108, %c0_109] : memref<2x32x64xf32, #tpu.memory_space<vmem>>, vector<1x32x64xf32>
    %253 = vector.shape_cast %252 : vector<1x32x64xf32> to vector<32x64xf32>
    %cst_110 = arith.constant dense<0.000000e+00> : vector<2x64xf32>
    %254 = tpu.matmul %251, %253, %cst_110 {dimension_numbers = #tpu.dot_dimension_numbers<[1], [0], [0], [1], [0, 0, 1, 1], [], []>} : vector<2x32xf32>, vector<32x64xf32>, vector<2x64xf32> -> vector<2x64xf32>
    %c1_111 = arith.constant 1 : index
    %c0_112 = arith.constant 0 : index
    %c0_113 = arith.constant 0 : index
    %255 = vector.load %arg14[%c1_111, %c0_112, %c0_113] : memref<2x1x64xf32, #tpu.memory_space<vmem>>, vector<1x1x64xf32>
    %256 = vector.shape_cast %255 : vector<1x1x64xf32> to vector<1x64xf32>
    %257 = vector.broadcast %256 : vector<1x64xf32> to vector<2x64xf32>
    %258 = arith.addf %254, %257 : vector<2x64xf32>
    %cst_114 = arith.constant 5.000000e-01 : f32
    %259 = vector.broadcast %cst_114 : f32 to vector<2x64xf32>
    %260 = arith.mulf %259, %258 : vector<2x64xf32>
    %cst_115 = arith.constant 0.707106769 : f32
    %261 = vector.broadcast %cst_115 : f32 to vector<2x64xf32>
    %262 = arith.mulf %258, %261 : vector<2x64xf32>
    %263 = math.erf %262 : vector<2x64xf32>
    %cst_116 = arith.constant 1.000000e+00 : f32
    %264 = vector.broadcast %cst_116 : f32 to vector<2x64xf32>
    %265 = arith.addf %264, %263 : vector<2x64xf32>
    %266 = arith.mulf %260, %265 : vector<2x64xf32>
    %c1_117 = arith.constant 1 : index
    %c0_118 = arith.constant 0 : index
    %c0_119 = arith.constant 0 : index
    %267 = vector.load %arg15[%c1_117, %c0_118, %c0_119] : memref<2x64x32xf32, #tpu.memory_space<vmem>>, vector<1x64x32xf32>
    %268 = vector.shape_cast %267 : vector<1x64x32xf32> to vector<64x32xf32>
    %cst_120 = arith.constant dense<0.000000e+00> : vector<2x32xf32>
    %269 = tpu.matmul %266, %268, %cst_120 {dimension_numbers = #tpu.dot_dimension_numbers<[1], [0], [0], [1], [0, 0, 1, 1], [], []>} : vector<2x64xf32>, vector<64x32xf32>, vector<2x32xf32> -> vector<2x32xf32>
    %c1_121 = arith.constant 1 : index
    %c0_122 = arith.constant 0 : index
    %c0_123 = arith.constant 0 : index
    %270 = vector.load %arg16[%c1_121, %c0_122, %c0_123] : memref<2x1x32xf32, #tpu.memory_space<vmem>>, vector<1x1x32xf32>
    %271 = vector.shape_cast %270 : vector<1x1x32xf32> to vector<1x32xf32>
    %272 = vector.broadcast %271 : vector<1x32xf32> to vector<2x32xf32>
    %273 = arith.addf %269, %272 : vector<2x32xf32>
    %274 = arith.addf %273, %251 : vector<2x32xf32>
    %c1_124 = arith.constant 1 : index
    %c0_125 = arith.constant 0 : index
    %c0_126 = arith.constant 0 : index
    %275 = vector.load %arg17[%c1_124, %c0_125, %c0_126] : memref<2x1x32xf32, #tpu.memory_space<vmem>>, vector<1x1x32xf32>
    %276 = vector.shape_cast %275 : vector<1x1x32xf32> to vector<1x32xf32>
    %c1_127 = arith.constant 1 : index
    %c0_128 = arith.constant 0 : index
    %c0_129 = arith.constant 0 : index
    %277 = vector.load %arg18[%c1_127, %c0_128, %c0_129] : memref<2x1x32xf32, #tpu.memory_space<vmem>>, vector<1x1x32xf32>
    %278 = vector.shape_cast %277 : vector<1x1x32xf32> to vector<1x32xf32>
    %cst_130 = arith.constant dense<0.000000e+00> : vector<2xf32>
    %279 = vector.multi_reduction <add>, %274, %cst_130 [1] : vector<2x32xf32> to vector<2xf32>
    %280 = vector.shape_cast %279 : vector<2xf32> to vector<2x1xf32>
    %cst_131 = arith.constant 3.200000e+01 : f32
    %281 = vector.broadcast %cst_131 : f32 to vector<2x1xf32>
    %282 = arith.divf %280, %281 : vector<2x1xf32>
    %283 = vector.broadcast %282 : vector<2x1xf32> to vector<2x32xf32>
    %284 = arith.subf %274, %283 : vector<2x32xf32>
    %285 = arith.mulf %284, %284 : vector<2x32xf32>
    %cst_132 = arith.constant dense<0.000000e+00> : vector<2xf32>
    %286 = vector.multi_reduction <add>, %285, %cst_132 [1] : vector<2x32xf32> to vector<2xf32>
    %287 = vector.shape_cast %286 : vector<2xf32> to vector<2x1xf32>
    %cst_133 = arith.constant 3.200000e+01 : f32
    %288 = vector.broadcast %cst_133 : f32 to vector<2x1xf32>
    %289 = arith.divf %287, %288 : vector<2x1xf32>
    %290 = vector.broadcast %282 : vector<2x1xf32> to vector<2x32xf32>
    %291 = arith.subf %274, %290 : vector<2x32xf32>
    %cst_134 = arith.constant 9.99999996E-13 : f32
    %292 = vector.broadcast %cst_134 : f32 to vector<2x1xf32>
    %293 = arith.addf %289, %292 : vector<2x1xf32>
    %294 = math.rsqrt %293 : vector<2x1xf32>
    %295 = vector.broadcast %294 : vector<2x1xf32> to vector<2x32xf32>
    %296 = arith.mulf %291, %295 : vector<2x32xf32>
    %297 = vector.broadcast %276 : vector<1x32xf32> to vector<2x32xf32>
    %298 = arith.mulf %296, %297 : vector<2x32xf32>
    %299 = vector.broadcast %278 : vector<1x32xf32> to vector<2x32xf32>
    %300 = arith.addf %298, %299 : vector<2x32xf32>
    %c0_135 = arith.constant 0 : index
    %c0_136 = arith.constant 0 : index
    %301 = vector.load %arg19[%c0_135, %c0_136] : memref<2x32xf32, #tpu.memory_space<vmem>>, vector<2x32xf32>
    tpu.vector_store %arg19[%c0_135, %c0_136], %300 {strides = array<i32>} : memref<2x32xf32, #tpu.memory_space<vmem>>, vector<2x32xf32>,
    return
  }
}

</mosaic_0001>

<llo_original>
// kernel: num_cat_language_model_forward.1
$region0: #{num_cat_language_model_forward.1}
  #allocation0 [shape = 'u32[]', space=smem, size = 0x4, offset = 0x4, fixed_abs, tag = 'smem constant byte address 0x4 - core index']
  #allocation1 [shape = 'u32[144,128]{1,0:T(1,128)}', space=vmem, size = 0x12000, scoped, tag = 'internal scratch']
  %s0 = inlined_call_operand.vmem [shape: s32[16,1], index: 0, kind: input, shape index: {}]
  %s1 = inlined_call_operand.vmem [shape: f32[2,8], index: 1, kind: input, shape index: {}]
  %s2 = inlined_call_operand.vmem [shape: f32[50,32], index: 2, kind: input, shape index: {}]
  %s3 = inlined_call_operand.vmem [shape: f32[8,32], index: 3, kind: input, shape index: {}]
  %s4 = inlined_call_operand.vmem [shape: f32[1,32], index: 4, kind: input, shape index: {}]
  %s5 = inlined_call_operand.vmem [shape: f32[1,32], index: 5, kind: input, shape index: {}]
  %s6 = inlined_call_operand.vmem [shape: f32[1,32], index: 6, kind: input, shape index: {}]
  %s7 = inlined_call_operand.vmem [shape: f32[2,32,96], index: 7, kind: input, shape index: {}]
  %s8 = inlined_call_operand.vmem [shape: f32[2,1,96], index: 8, kind: input, shape index: {}]
  %s9 = inlined_call_operand.vmem [shape: f32[2,32,32], index: 9, kind: input, shape index: {}]
  %s10 = inlined_call_operand.vmem [shape: f32[2,1,32], index: 10, kind: input, shape index: {}]
  %s11 = inlined_call_operand.vmem [shape: f32[2,1,32], index: 11, kind: input, shape index: {}]
  %s12 = inlined_call_operand.vmem [shape: f32[2,1,32], index: 12, kind: input, shape index: {}]
  %s13 = inlined_call_operand.vmem [shape: f32[2,32,64], index: 13, kind: input, shape index: {}]
  %s14 = inlined_call_operand.vmem [shape: f32[2,1,64], index: 14, kind: input, shape index: {}]
  %s15 = inlined_call_operand.vmem [shape: f32[2,64,32], index: 15, kind: input, shape index: {}]
  %s16 = inlined_call_operand.vmem [shape: f32[2,1,32], index: 16, kind: input, shape index: {}]
  %s17 = inlined_call_operand.vmem [shape: f32[2,1,32], index: 17, kind: input, shape index: {}]
  %s18 = inlined_call_operand.vmem [shape: f32[2,1,32], index: 18, kind: input, shape index: {}]
  %s19 = inlined_call_operand.hbm [shape: f32[2,32], index: 19, kind: output, shape index: {}]
  %s20 = sld [smem:[#allocation0]]
  $region86: #{num_cat_language_model_forward.1} parent=0
    _
  %s22 = ssub.s32 1, %s20
  %s23 = scalar_select 0, %s22, %s20
  $region1: #{num_cat_language_model_forward.1} parent=0
    #allocation2 [shape = 'u8[1024]{0}', space=vmem, size = 0x400, scoped, tag = 'output window, operand 0, single buffered']
    #allocation3 [shape = 's32[1]{0}', space=sflag, size = 0x4, scoped, tag = 'scoped memory for num_cat_language_model_forward.1']
    %24 = vsyncpa [#allocation3], 0
    // Predicated region
    $region2: #{num_cat_language_model_forward.1} parent=1 // pred_check
      _
    $region3: #{num_cat_language_model_forward.1} parent=1 // pred_check_branch
      %26 = sbr.rel (0) target = $region5
    $region4: #{num_cat_language_model_forward.1} parent=1 // pred_region
      _
    $region5: #{num_cat_language_model_forward.1} parent=1 // pred_fallthru
      _
    // Predicated region
    $region6: #{num_cat_language_model_forward.1} parent=1 // pred_check
      _
    $region7: #{num_cat_language_model_forward.1} parent=1 // pred_check_branch
      %28 = sbr.rel (0) target = $region9
    $region8: #{num_cat_language_model_forward.1} parent=1 // pred_region
      _
    $region9: #{num_cat_language_model_forward.1} parent=1 // pred_fallthru
      _
    // Predicated region
    $region10: #{num_cat_language_model_forward.1} parent=1 // pred_check
      _
    $region11: #{num_cat_language_model_forward.1} parent=1 // pred_check_branch
      %30 = sbr.rel (0) target = $region13
    $region12: #{num_cat_language_model_forward.1} parent=1 // pred_region
      _
    $region13: #{num_cat_language_model_forward.1} parent=1 // pred_fallthru
      _
    // Predicated region
    $region14: #{num_cat_language_model_forward.1} parent=1 // pred_check
      _
    $region15: #{num_cat_language_model_forward.1} parent=1 // pred_check_branch
      %32 = sbr.rel (0) target = $region17
    $region16: #{num_cat_language_model_forward.1} parent=1 // pred_region
      _
    $region17: #{num_cat_language_model_forward.1} parent=1 // pred_fallthru
      _
    // Predicated region
    $region18: #{num_cat_language_model_forward.1} parent=1 // pred_check
      _
    $region19: #{num_cat_language_model_forward.1} parent=1 // pred_check_branch
      %34 = sbr.rel (0) target = $region21
    $region20: #{num_cat_language_model_forward.1} parent=1 // pred_region
      _
    $region21: #{num_cat_language_model_forward.1} parent=1 // pred_fallthru
      _
    // Predicated region
    $region22: #{num_cat_language_model_forward.1} parent=1 // pred_check
      _
    $region23: #{num_cat_language_model_forward.1} parent=1 // pred_check_branch
      %36 = sbr.rel (0) target = $region25
    $region24: #{num_cat_language_model_forward.1} parent=1 // pred_region
      _
    $region25: #{num_cat_language_model_forward.1} parent=1 // pred_fallthru
      _
    // Predicated region
    $region26: #{num_cat_language_model_forward.1} parent=1 // pred_check
      _
    $region27: #{num_cat_language_model_forward.1} parent=1 // pred_check_branch
      %38 = sbr.rel (0) target = $region29
    $region28: #{num_cat_language_model_forward.1} parent=1 // pred_region
      _
    $region29: #{num_cat_language_model_forward.1} parent=1 // pred_fallthru
      _
    // Predicated region
    $region30: #{num_cat_language_model_forward.1} parent=1 // pred_check
      _
    $region31: #{num_cat_language_model_forward.1} parent=1 // pred_check_branch
      %40 = sbr.rel (0) target = $region33
    $region32: #{num_cat_language_model_forward.1} parent=1 // pred_region
      _
    $region33: #{num_cat_language_model_forward.1} parent=1 // pred_fallthru
      _
    // Predicated region
    $region34: #{num_cat_language_model_forward.1} parent=1 // pred_check
      _
    $region35: #{num_cat_language_model_forward.1} parent=1 // pred_check_branch
      %42 = sbr.rel (0) target = $region37
    $region36: #{num_cat_language_model_forward.1} parent=1 // pred_region
      _
    $region37: #{num_cat_language_model_forward.1} parent=1 // pred_fallthru
      _
    // Predicated region
    $region38: #{num_cat_language_model_forward.1} parent=1 // pred_check
      _
    $region39: #{num_cat_language_model_forward.1} parent=1 // pred_check_branch
      %44 = sbr.rel (0) target = $region41
    $region40: #{num_cat_language_model_forward.1} parent=1 // pred_region
      _
    $region41: #{num_cat_language_model_forward.1} parent=1 // pred_fallthru
      _
    // Predicated region
    $region42: #{num_cat_language_model_forward.1} parent=1 // pred_check
      _
    $region43: #{num_cat_language_model_forward.1} parent=1 // pred_check_branch
      %46 = sbr.rel (0) target = $region45
    $region44: #{num_cat_language_model_forward.1} parent=1 // pred_region
      _
    $region45: #{num_cat_language_model_forward.1} parent=1 // pred_fallthru
      _
    // Predicated region
    $region46: #{num_cat_language_model_forward.1} parent=1 // pred_check
      _
    $region47: #{num_cat_language_model_forward.1} parent=1 // pred_check_branch
      %48 = sbr.rel (0) target = $region49
    $region48: #{num_cat_language_model_forward.1} parent=1 // pred_region
      _
    $region49: #{num_cat_language_model_forward.1} parent=1 // pred_fallthru
      _
    // Predicated region
    $region50: #{num_cat_language_model_forward.1} parent=1 // pred_check
      _
    $region51: #{num_cat_language_model_forward.1} parent=1 // pred_check_branch
      %50 = sbr.rel (0) target = $region53
    $region52: #{num_cat_language_model_forward.1} parent=1 // pred_region
      _
    $region53: #{num_cat_language_model_forward.1} parent=1 // pred_fallthru
      _
    // Predicated region
    $region54: #{num_cat_language_model_forward.1} parent=1 // pred_check
      _
    $region55: #{num_cat_language_model_forward.1} parent=1 // pred_check_branch
      %52 = sbr.rel (0) target = $region57
    $region56: #{num_cat_language_model_forward.1} parent=1 // pred_region
      _
    $region57: #{num_cat_language_model_forward.1} parent=1 // pred_fallthru
      _
    // Predicated region
    $region58: #{num_cat_language_model_forward.1} parent=1 // pred_check
      _
    $region59: #{num_cat_language_model_forward.1} parent=1 // pred_check_branch
      %54 = sbr.rel (0) target = $region61
    $region60: #{num_cat_language_model_forward.1} parent=1 // pred_region
      _
    $region61: #{num_cat_language_model_forward.1} parent=1 // pred_fallthru
      _
    // Predicated region
    $region62: #{num_cat_language_model_forward.1} parent=1 // pred_check
      _
    $region63: #{num_cat_language_model_forward.1} parent=1 // pred_check_branch
      %56 = sbr.rel (0) target = $region65
    $region64: #{num_cat_language_model_forward.1} parent=1 // pred_region
      _
    $region65: #{num_cat_language_model_forward.1} parent=1 // pred_fallthru
      _
    // Predicated region
    $region66: #{num_cat_language_model_forward.1} parent=1 // pred_check
      _
    $region67: #{num_cat_language_model_forward.1} parent=1 // pred_check_branch
      %58 = sbr.rel (0) target = $region69
    $region68: #{num_cat_language_model_forward.1} parent=1 // pred_region
      _
    $region69: #{num_cat_language_model_forward.1} parent=1 // pred_fallthru
      _
    // Predicated region
    $region70: #{num_cat_language_model_forward.1} parent=1 // pred_check
      _
    $region71: #{num_cat_language_model_forward.1} parent=1 // pred_check_branch
      %60 = sbr.rel (0) target = $region73
    $region72: #{num_cat_language_model_forward.1} parent=1 // pred_region
      _
    $region73: #{num_cat_language_model_forward.1} parent=1 // pred_fallthru
      _
    // Predicated region
    $region74: #{num_cat_language_model_forward.1} parent=1 // pred_check
      _
    $region75: #{num_cat_language_model_forward.1} parent=1 // pred_check_branch
      %62 = sbr.rel (0) target = $region77
    $region76: #{num_cat_language_model_forward.1} parent=1 // pred_region
      _
    $region77: #{num_cat_language_model_forward.1} parent=1 // pred_fallthru
      _
    %v63 = vld [vmem:[%s0] sm:$0xff]
    %v64 = vld [vmem:[%s0 + $0x8] sm:$0xff]
    %v65 = vlaneseq
    %v66 = vand.u32 %v65, 127
    %67 = vset.pattern.permute.xlu0 0
    %68 = vperm.xlu0 %67, %v63
    %v69 = vpop.permute.xlu0 %68
    %70 = vset.pattern.permute.xlu0 0
    %71 = vperm.xlu0 %70, %v64
    %v72 = vpop.permute.xlu0 %71
    %vm73 = vcmp.eq.s32.totalorder %v69, %v66
    %vm74 = vcmp.eq.s32.totalorder %v72, %v66
    %v75 = vsel %vm73, 1, 0
    %v76 = vsel %vm74, 1, 0
    %v77 = vcvt.s32.f32 %v75
    %v78 = vcvt.s32.f32 %v76
    %v79 = vld [vmem:[%s2] sm:$0xff]
    %v80 = vld [vmem:[%s2 + $0x8] sm:$0xff]
    %v81 = vld [vmem:[%s2 + $0x10] sm:$0xff]
    %v82 = vld [vmem:[%s2 + $0x18] sm:$0xff]
    %v83 = vld [vmem:[%s2 + $0x20] sm:$0xff]
    %v84 = vld [vmem:[%s2 + $0x28] sm:$0xff]
    %v85 = vld [vmem:[%s2 + $0x30] sm:$0x3]
    %v86 = vld [vmem:[%s3] sm:$0xff]
    %vm87 = vcmask 408576
    %v89 = vsel %vm87, %v77, 0
    %v92 = vsel %vm87, %v78, 0
    %vm94 = vcmask 1041408
    %v96 = vsel %vm94, %v85, 0
    %98 = vmatprep.subr.mxu0 0.0
    %99 = vmatpush1.msra.mxu0 0.0
    %100 = vmatprep.subr.mxu0 0.0
    %101 = vmatpush1.msra.mxu0 0.0
    %102 = vmatprep.subr.mxu0 0.0
    %103 = vmatpush1.msra.mxu0 0.0
    %104 = vmatprep.subr.mxu0 0.0
    %105 = vmatpush1.msra.mxu0 0.0
    %106 = vmatprep.subr.mxu0 0.0
    %107 = vmatpush1.msra.mxu0 0.0
    %108 = vmatprep.subr.mxu0 0.0
    %109 = vmatpush1.msra.mxu0 0.0
    %110 = vmatprep.subr.mxu0 0.0
    %111 = vmatpush1.msra.mxu0 0.0
    %112 = vmatprep.subr.mxu0 0.0
    %113 = vmatpush1.msra.mxu0 0.0
    %114 = vmatprep.subr.mxu0 0.0
    %115 = vmatpush1.msra.mxu0 0.0
    %116 = vmatprep.subr.mxu0 0.0
    %117 = vmatpush1.msra.mxu0 %v96
    %118 = vmatprep.subr.mxu0 0.0
    %119 = vmatpush1.msra.mxu0 %v84
    %120 = vmatprep.subr.mxu0 0.0
    %121 = vmatpush1.msra.mxu0 %v83
    %122 = vmatprep.subr.mxu0 0.0
    %123 = vmatpush1.msra.mxu0 %v82
    %124 = vmatprep.subr.mxu0 0.0
    %125 = vmatpush1.msra.mxu0 %v81
    %126 = vmatprep.subr.mxu0 0.0
    %127 = vmatpush1.msra.mxu0 %v80
    %128 = vmatprep.subr.mxu0 0.0
    %129 = vmatpush1.msra.mxu0 %v79
    %130 = vmatprep.subr.mxu0 0.0
    %131 = vmatpush2.msra.mxu0 0.0
    %132 = vmatprep.subr.mxu0 0.0
    %133 = vmatpush2.msra.mxu0 0.0
    %134 = vmatprep.subr.mxu0 0.0
    %135 = vmatpush2.msra.mxu0 0.0
    %136 = vmatprep.subr.mxu0 0.0
    %137 = vmatpush2.msra.mxu0 0.0
    %138 = vmatprep.subr.mxu0 0.0
    %139 = vmatpush2.msra.mxu0 0.0
    %140 = vmatprep.subr.mxu0 0.0
    %141 = vmatpush2.msra.mxu0 0.0
    %142 = vmatprep.subr.mxu0 0.0
    %143 = vmatpush2.msra.mxu0 0.0
    %144 = vmatprep.subr.mxu0 0.0
    %145 = vmatpush2.msra.mxu0 0.0
    %146 = vmatprep.subr.mxu0 0.0
    %147 = vmatpush2.msra.mxu0 0.0
    %148 = vmatprep.subr.mxu0 0.0
    %149 = vmatpush2.msra.mxu0 0.0
    %150 = vmatprep.subr.mxu0 0.0
    %151 = vmatpush2.msra.mxu0 0.0
    %152 = vmatprep.subr.mxu0 0.0
    %153 = vmatpush2.msra.mxu0 0.0
    %154 = vmatprep.subr.mxu0 0.0
    %155 = vmatpush2.msra.mxu0 0.0
    %156 = vmatprep.subr.mxu0 0.0
    %157 = vmatpush2.msra.mxu0 0.0
    %158 = vmatprep.subr.mxu0 0.0
    %159 = vmatpush2.msra.mxu0 0.0
    %160 = vmatprep.subr.mxu0 0.0
    %161 = vmatpush2.msra.mxu0 0.0
    %162 = vmatprep.mubr.f32.mxu0 0.0
    %163 = vmatmul.mubr.f32.gmra.mxu0 %v89
    %v164 = vpop.f32.mrf.mxu0
    %v165 = vadd.f32 %v86, %v164
    %v166 = vpop.f32.mrf.mxu0
    %167 = vmatprep.mubr.f32.mxu0 0.0
    %168 = vmatmul.mubr.f32.gmra.mxu0 %v92
    %v169 = vpop.f32.mrf.mxu0
    %v170 = vadd.f32 %v86, %v169
    %v171 = vpop.f32.mrf.mxu0
    %172 = vdwg.mxu0
    %v173 = vld [vmem:[%s4] sm:$0x1]
    %v175 = vlaneseq
    %v176 = vshrl.u32 %v175, 7
    %v177 = vsub.s32 0, %v176
    %v178 = vrot.slane %v173, %v177
    %v180 = vadd.f32 %v165, %v178
    %v181 = vadd.f32 %v170, %v178
    %v182 = vld [vmem:[%s5] sm:$0x1]
    %v183 = vld [vmem:[%s6] sm:$0x1]
    %vm184 = vcmask 261120
    %v185 = vsel %vm184, %v180, 0.0
    %186 = vadd.xlane.f32.xlu0 %v185
    %v187 = vpop.xlane.xlu0 %186
    %v188 = vsel %vm184, %v181, 0.0
    %189 = vadd.xlane.f32.xlu0 %v188
    %v190 = vpop.xlane.xlu0 %189
    %v191 = vrcp.pop 32.0
    %v192 = vmul.f32 %v187, %v191
    %v193 = vmul.f32 %v190, %v191
    %v194 = vsub.f32 %v180, %v192
    %v195 = vsub.f32 %v181, %v193
    %v196 = vmul.f32 %v194, %v194
    %v197 = vmul.f32 %v195, %v195
    %v198 = vsel %vm184, %v196, 0.0
    %199 = vadd.xlane.f32.xlu0 %v198
    %v200 = vpop.xlane.xlu0 %199
    %v201 = vsel %vm184, %v197, 0.0
    %202 = vadd.xlane.f32.xlu0 %v201
    %v203 = vpop.xlane.xlu0 %202
    %v204 = vmul.f32 %v200, %v191
    %v205 = vmul.f32 %v203, %v191
    %v206 = vadd.f32 %v204, 1e-12
    %v207 = vadd.f32 %v205, 1e-12
    %v208 = vrsqrt.pop %v206
    %v209 = vrsqrt.pop %v207
    %v210 = vmul.f32 %v194, %v208
    %v211 = vmul.f32 %v195, %v209
    %v213 = vlaneseq
    %v214 = vshrl.u32 %v213, 7
    %v215 = vsub.s32 0, %v214
    %v216 = vrot.slane %v182, %v215
    %v218 = vmul.f32 %v210, %v216
    %v219 = vmul.f32 %v211, %v216
    %v221 = vlaneseq
    %v222 = vshrl.u32 %v221, 7
    %v223 = vsub.s32 0, %v222
    %v224 = vrot.slane %v183, %v223
    %v226 = vadd.f32 %v218, %v224
    %v227 = vadd.f32 %v219, %v224
    %v228 = vld [vmem:[%s1] sm:$0x3]
    %v229 = vsub.f32 1.0, %v228
    %v230 = vmul.f32 %v229, -3.4028235e+38
    %v233 = vunpack.c.l.s4 1966171168
    %v234 = vunpack.c.0.s8 %v233
    %v235 = vlaneseq
    %v236 = vshrl.u32 %v235, 7
    %v237 = vsub.s32 %v234, %v236
    %v238 = vrot.slane %v230, %v237
    %v239 = vcombine.high %v238, %v238
    %v241 = vunpack.c.l.s4 1966171168
    %v242 = vunpack.c.0.s8 %v241
    %v243 = vlaneseq
    %v244 = vshrl.u32 %v243, 7
    %v245 = vsub.s32 %v242, %v244
    %v246 = vrot.slane %v238, %v245
    %v248 = vunpack.c.l.s4 1966171168
    %v249 = vunpack.c.0.s8 %v248
    %v250 = vlaneseq
    %v251 = vshrl.u32 %v250, 7
    %v252 = vsub.s32 %v249, %v251
    %v253 = vrot.slane %v239, %v252
    %v256 = vld [vmem:[%s7] sm:$0xff]
    %v257 = vld [vmem:[%s7 + $0x8] sm:$0xff]
    %v258 = vld [vmem:[%s7 + $0x10] sm:$0xff]
    %v259 = vld [vmem:[%s7 + $0x18] sm:$0xff]
    %v260 = vld [vmem:[%s8] sm:$0x1]
    %v262 = vlaneseq
    %v263 = vshrl.u32 %v262, 7
    %v264 = vsub.s32 0, %v263
    %v265 = vrot.slane %v260, %v264
    %v268 = vsel %vm184, %v226, 0
    %v271 = vsel %vm184, %v227, 0
    %273 = vmatprep.subr.mxu0 0.0
    %274 = vmatpush1.msra.mxu0 0.0
    %275 = vmatprep.subr.mxu0 0.0
    %276 = vmatpush1.msra.mxu0 0.0
    %277 = vmatprep.subr.mxu0 0.0
    %278 = vmatpush1.msra.mxu0 0.0
    %279 = vmatprep.subr.mxu0 0.0
    %280 = vmatpush1.msra.mxu0 0.0
    %281 = vmatprep.subr.mxu0 0.0
    %282 = vmatpush1.msra.mxu0 0.0
    %283 = vmatprep.subr.mxu0 0.0
    %284 = vmatpush1.msra.mxu0 0.0
    %285 = vmatprep.subr.mxu0 0.0
    %286 = vmatpush1.msra.mxu0 0.0
    %287 = vmatprep.subr.mxu0 0.0
    %288 = vmatpush1.msra.mxu0 0.0
    %289 = vmatprep.subr.mxu0 0.0
    %290 = vmatpush1.msra.mxu0 0.0
    %291 = vmatprep.subr.mxu0 0.0
    %292 = vmatpush1.msra.mxu0 0.0
    %293 = vmatprep.subr.mxu0 0.0
    %294 = vmatpush1.msra.mxu0 0.0
    %295 = vmatprep.subr.mxu0 0.0
    %296 = vmatpush1.msra.mxu0 0.0
    %297 = vmatprep.subr.mxu0 0.0
    %298 = vmatpush1.msra.mxu0 %v259
    %299 = vmatprep.subr.mxu0 0.0
    %300 = vmatpush1.msra.mxu0 %v258
    %301 = vmatprep.subr.mxu0 0.0
    %302 = vmatpush1.msra.mxu0 %v257
    %303 = vmatprep.subr.mxu0 0.0
    %304 = vmatpush1.msra.mxu0 %v256
    %305 = vmatprep.subr.mxu0 0.0
    %306 = vmatpush2.msra.mxu0 0.0
    %307 = vmatprep.subr.mxu0 0.0
    %308 = vmatpush2.msra.mxu0 0.0
    %309 = vmatprep.subr.mxu0 0.0
    %310 = vmatpush2.msra.mxu0 0.0
    %311 = vmatprep.subr.mxu0 0.0
    %312 = vmatpush2.msra.mxu0 0.0
    %313 = vmatprep.subr.mxu0 0.0
    %314 = vmatpush2.msra.mxu0 0.0
    %315 = vmatprep.subr.mxu0 0.0
    %316 = vmatpush2.msra.mxu0 0.0
    %317 = vmatprep.subr.mxu0 0.0
    %318 = vmatpush2.msra.mxu0 0.0
    %319 = vmatprep.subr.mxu0 0.0
    %320 = vmatpush2.msra.mxu0 0.0
    %321 = vmatprep.subr.mxu0 0.0
    %322 = vmatpush2.msra.mxu0 0.0
    %323 = vmatprep.subr.mxu0 0.0
    %324 = vmatpush2.msra.mxu0 0.0
    %325 = vmatprep.subr.mxu0 0.0
    %326 = vmatpush2.msra.mxu0 0.0
    %327 = vmatprep.subr.mxu0 0.0
    %328 = vmatpush2.msra.mxu0 0.0
    %329 = vmatprep.subr.mxu0 0.0
    %330 = vmatpush2.msra.mxu0 0.0
    %331 = vmatprep.subr.mxu0 0.0
    %332 = vmatpush2.msra.mxu0 0.0
    %333 = vmatprep.subr.mxu0 0.0
    %334 = vmatpush2.msra.mxu0 0.0
    %335 = vmatprep.subr.mxu0 0.0
    %336 = vmatpush2.msra.mxu0 0.0
    %337 = vmatprep.mubr.f32.mxu0 0.0
    %338 = vmatmul.mubr.f32.gmra.mxu0 %v268
    %v339 = vpop.f32.mrf.mxu0
    %v340 = vadd.f32 %v265, %v339
    %v341 = vpop.f32.mrf.mxu0
    %342 = vmatprep.mubr.f32.mxu0 0.0
    %343 = vmatmul.mubr.f32.gmra.mxu0 %v271
    %v344 = vpop.f32.mrf.mxu0
    %v345 = vadd.f32 %v265, %v344
    %v346 = vpop.f32.mrf.mxu0
    %347 = vdwg.mxu0
    %350 = vrot.lane.b32.xlu0 %v340, 112
    %v351 = vpop.permute.xlu0 %350
    %352 = vrot.lane.b32.xlu0 %v345, 112
    %v353 = vpop.permute.xlu0 %352
    %354 = vrot.lane.b32.xlu0 %v340, 96
    %v355 = vpop.permute.xlu0 %354
    %vm356 = vcmask 130048
    %v357 = vsel %vm356, %v340, 0
    %v359 = vsel %vm356, %v355, 0
    %361 = vmatprep.subr.mxu0 0.0
    %362 = vmatpush1.xpose.msra.mxu0 0.0
    %363 = vmatprep.subr.mxu0 0.0
    %364 = vmatpush1.xpose.msra.mxu0 0.0
    %365 = vmatprep.subr.mxu0 0.0
    %366 = vmatpush1.xpose.msra.mxu0 0.0
    %367 = vmatprep.subr.mxu0 0.0
    %368 = vmatpush1.xpose.msra.mxu0 0.0
    %369 = vmatprep.subr.mxu0 0.0
    %370 = vmatpush1.xpose.msra.mxu0 0.0
    %371 = vmatprep.subr.mxu0 0.0
    %372 = vmatpush1.xpose.msra.mxu0 0.0
    %373 = vmatprep.subr.mxu0 0.0
    %374 = vmatpush1.xpose.msra.mxu0 0.0
    %375 = vmatprep.subr.mxu0 0.0
    %376 = vmatpush1.xpose.msra.mxu0 0.0
    %377 = vmatprep.subr.mxu0 0.0
    %378 = vmatpush1.xpose.msra.mxu0 0.0
    %379 = vmatprep.subr.mxu0 0.0
    %380 = vmatpush1.xpose.msra.mxu0 0.0
    %381 = vmatprep.subr.mxu0 0.0
    %382 = vmatpush1.xpose.msra.mxu0 0.0
    %383 = vmatprep.subr.mxu0 0.0
    %384 = vmatpush1.xpose.msra.mxu0 0.0
    %385 = vmatprep.subr.mxu0 0.0
    %386 = vmatpush1.xpose.msra.mxu0 0.0
    %387 = vmatprep.subr.mxu0 0.0
    %388 = vmatpush1.xpose.msra.mxu0 0.0
    %389 = vmatprep.subr.mxu0 0.0
    %390 = vmatpush1.xpose.msra.mxu0 0.0
    %391 = vmatprep.subr.mxu0 0.0
    %392 = vmatpush1.xpose.msra.mxu0 %v359
    %393 = vmatprep.subr.mxu0 0.0
    %394 = vmatpush2.xpose.msra.mxu0 0.0
    %395 = vmatprep.subr.mxu0 0.0
    %396 = vmatpush2.xpose.msra.mxu0 0.0
    %397 = vmatprep.subr.mxu0 0.0
    %398 = vmatpush2.xpose.msra.mxu0 0.0
    %399 = vmatprep.subr.mxu0 0.0
    %400 = vmatpush2.xpose.msra.mxu0 0.0
    %401 = vmatprep.subr.mxu0 0.0
    %402 = vmatpush2.xpose.msra.mxu0 0.0
    %403 = vmatprep.subr.mxu0 0.0
    %404 = vmatpush2.xpose.msra.mxu0 0.0
    %405 = vmatprep.subr.mxu0 0.0
    %406 = vmatpush2.xpose.msra.mxu0 0.0
    %407 = vmatprep.subr.mxu0 0.0
    %408 = vmatpush2.xpose.msra.mxu0 0.0
    %409 = vmatprep.subr.mxu0 0.0
    %410 = vmatpush2.xpose.msra.mxu0 0.0
    %411 = vmatprep.subr.mxu0 0.0
    %412 = vmatpush2.xpose.msra.mxu0 0.0
    %413 = vmatprep.subr.mxu0 0.0
    %414 = vmatpush2.xpose.msra.mxu0 0.0
    %415 = vmatprep.subr.mxu0 0.0
    %416 = vmatpush2.xpose.msra.mxu0 0.0
    %417 = vmatprep.subr.mxu0 0.0
    %418 = vmatpush2.xpose.msra.mxu0 0.0
    %419 = vmatprep.subr.mxu0 0.0
    %420 = vmatpush2.xpose.msra.mxu0 0.0
    %421 = vmatprep.subr.mxu0 0.0
    %422 = vmatpush2.xpose.msra.mxu0 0.0
    %423 = vmatprep.subr.mxu0 0.0
    %424 = vmatpush2.xpose.msra.mxu0 0.0
    %425 = vmatprep.mubr.f32.mxu0 0.0
    %426 = vmatmul.mubr.f32.gmra.mxu0 %v357
    %v427 = vpop.f32.mrf.mxu0
    %v428 = vadd.f32 0.0, %v427
    %v429 = vpop.f32.mrf.mxu0
    %430 = vdwg.mxu0
    %431 = vrot.lane.b32.xlu0 %v345, 96
    %v432 = vpop.permute.xlu0 %431
    %v433 = vsel %vm356, %v345, 0
    %v435 = vsel %vm356, %v432, 0
    %437 = vmatprep.subr.mxu0 0.0
    %438 = vmatpush1.xpose.msra.mxu0 0.0
    %439 = vmatprep.subr.mxu0 0.0
    %440 = vmatpush1.xpose.msra.mxu0 0.0
    %441 = vmatprep.subr.mxu0 0.0
    %442 = vmatpush1.xpose.msra.mxu0 0.0
    %443 = vmatprep.subr.mxu0 0.0
    %444 = vmatpush1.xpose.msra.mxu0 0.0
    %445 = vmatprep.subr.mxu0 0.0
    %446 = vmatpush1.xpose.msra.mxu0 0.0
    %447 = vmatprep.subr.mxu0 0.0
    %448 = vmatpush1.xpose.msra.mxu0 0.0
    %449 = vmatprep.subr.mxu0 0.0
    %450 = vmatpush1.xpose.msra.mxu0 0.0
    %451 = vmatprep.subr.mxu0 0.0
    %452 = vmatpush1.xpose.msra.mxu0 0.0
    %453 = vmatprep.subr.mxu0 0.0
    %454 = vmatpush1.xpose.msra.mxu0 0.0
    %455 = vmatprep.subr.mxu0 0.0
    %456 = vmatpush1.xpose.msra.mxu0 0.0
    %457 = vmatprep.subr.mxu0 0.0
    %458 = vmatpush1.xpose.msra.mxu0 0.0
    %459 = vmatprep.subr.mxu0 0.0
    %460 = vmatpush1.xpose.msra.mxu0 0.0
    %461 = vmatprep.subr.mxu0 0.0
    %462 = vmatpush1.xpose.msra.mxu0 0.0
    %463 = vmatprep.subr.mxu0 0.0
    %464 = vmatpush1.xpose.msra.mxu0 0.0
    %465 = vmatprep.subr.mxu0 0.0
    %466 = vmatpush1.xpose.msra.mxu0 0.0
    %467 = vmatprep.subr.mxu0 0.0
    %468 = vmatpush1.xpose.msra.mxu0 %v435
    %469 = vmatprep.subr.mxu0 0.0
    %470 = vmatpush2.xpose.msra.mxu0 0.0
    %471 = vmatprep.subr.mxu0 0.0
    %472 = vmatpush2.xpose.msra.mxu0 0.0
    %473 = vmatprep.subr.mxu0 0.0
    %474 = vmatpush2.xpose.msra.mxu0 0.0
    %475 = vmatprep.subr.mxu0 0.0
    %476 = vmatpush2.xpose.msra.mxu0 0.0
    %477 = vmatprep.subr.mxu0 0.0
    %478 = vmatpush2.xpose.msra.mxu0 0.0
    %479 = vmatprep.subr.mxu0 0.0
    %480 = vmatpush2.xpose.msra.mxu0 0.0
    %481 = vmatprep.subr.mxu0 0.0
    %482 = vmatpush2.xpose.msra.mxu0 0.0
    %483 = vmatprep.subr.mxu0 0.0
    %484 = vmatpush2.xpose.msra.mxu0 0.0
    %485 = vmatprep.subr.mxu0 0.0
    %486 = vmatpush2.xpose.msra.mxu0 0.0
    %487 = vmatprep.subr.mxu0 0.0
    %488 = vmatpush2.xpose.msra.mxu0 0.0
    %489 = vmatprep.subr.mxu0 0.0
    %490 = vmatpush2.xpose.msra.mxu0 0.0
    %491 = vmatprep.subr.mxu0 0.0
    %492 = vmatpush2.xpose.msra.mxu0 0.0
    %493 = vmatprep.subr.mxu0 0.0
    %494 = vmatpush2.xpose.msra.mxu0 0.0
    %495 = vmatprep.subr.mxu0 0.0
    %496 = vmatpush2.xpose.msra.mxu0 0.0
    %497 = vmatprep.subr.mxu0 0.0
    %498 = vmatpush2.xpose.msra.mxu0 0.0
    %499 = vmatprep.subr.mxu0 0.0
    %500 = vmatpush2.xpose.msra.mxu0 0.0
    %501 = vmatprep.mubr.f32.mxu0 0.0
    %502 = vmatmul.mubr.f32.gmra.mxu0 %v433
    %v503 = vpop.f32.mrf.mxu0
    %v504 = vadd.f32 0.0, %v503
    %v505 = vpop.f32.mrf.mxu0
    %506 = vdwg.mxu0
    %507 = vrot.lane.b32.xlu0 %v351, 96
    %v508 = vpop.permute.xlu0 %507
    %v509 = vsel %vm356, %v351, 0
    %v511 = vsel %vm356, %v508, 0
    %513 = vmatprep.subr.mxu0 0.0
    %514 = vmatpush1.xpose.msra.mxu0 0.0
    %515 = vmatprep.subr.mxu0 0.0
    %516 = vmatpush1.xpose.msra.mxu0 0.0
    %517 = vmatprep.subr.mxu0 0.0
    %518 = vmatpush1.xpose.msra.mxu0 0.0
    %519 = vmatprep.subr.mxu0 0.0
    %520 = vmatpush1.xpose.msra.mxu0 0.0
    %521 = vmatprep.subr.mxu0 0.0
    %522 = vmatpush1.xpose.msra.mxu0 0.0
    %523 = vmatprep.subr.mxu0 0.0
    %524 = vmatpush1.xpose.msra.mxu0 0.0
    %525 = vmatprep.subr.mxu0 0.0
    %526 = vmatpush1.xpose.msra.mxu0 0.0
    %527 = vmatprep.subr.mxu0 0.0
    %528 = vmatpush1.xpose.msra.mxu0 0.0
    %529 = vmatprep.subr.mxu0 0.0
    %530 = vmatpush1.xpose.msra.mxu0 0.0
    %531 = vmatprep.subr.mxu0 0.0
    %532 = vmatpush1.xpose.msra.mxu0 0.0
    %533 = vmatprep.subr.mxu0 0.0
    %534 = vmatpush1.xpose.msra.mxu0 0.0
    %535 = vmatprep.subr.mxu0 0.0
    %536 = vmatpush1.xpose.msra.mxu0 0.0
    %537 = vmatprep.subr.mxu0 0.0
    %538 = vmatpush1.xpose.msra.mxu0 0.0
    %539 = vmatprep.subr.mxu0 0.0
    %540 = vmatpush1.xpose.msra.mxu0 0.0
    %541 = vmatprep.subr.mxu0 0.0
    %542 = vmatpush1.xpose.msra.mxu0 0.0
    %543 = vmatprep.subr.mxu0 0.0
    %544 = vmatpush1.xpose.msra.mxu0 %v511
    %545 = vmatprep.subr.mxu0 0.0
    %546 = vmatpush2.xpose.msra.mxu0 0.0
    %547 = vmatprep.subr.mxu0 0.0
    %548 = vmatpush2.xpose.msra.mxu0 0.0
    %549 = vmatprep.subr.mxu0 0.0
    %550 = vmatpush2.xpose.msra.mxu0 0.0
    %551 = vmatprep.subr.mxu0 0.0
    %552 = vmatpush2.xpose.msra.mxu0 0.0
    %553 = vmatprep.subr.mxu0 0.0
    %554 = vmatpush2.xpose.msra.mxu0 0.0
    %555 = vmatprep.subr.mxu0 0.0
    %556 = vmatpush2.xpose.msra.mxu0 0.0
    %557 = vmatprep.subr.mxu0 0.0
    %558 = vmatpush2.xpose.msra.mxu0 0.0
    %559 = vmatprep.subr.mxu0 0.0
    %560 = vmatpush2.xpose.msra.mxu0 0.0
    %561 = vmatprep.subr.mxu0 0.0
    %562 = vmatpush2.xpose.msra.mxu0 0.0
    %563 = vmatprep.subr.mxu0 0.0
    %564 = vmatpush2.xpose.msra.mxu0 0.0
    %565 = vmatprep.subr.mxu0 0.0
    %566 = vmatpush2.xpose.msra.mxu0 0.0
    %567 = vmatprep.subr.mxu0 0.0
    %568 = vmatpush2.xpose.msra.mxu0 0.0
    %569 = vmatprep.subr.mxu0 0.0
    %570 = vmatpush2.xpose.msra.mxu0 0.0
    %571 = vmatprep.subr.mxu0 0.0
    %572 = vmatpush2.xpose.msra.mxu0 0.0
    %573 = vmatprep.subr.mxu0 0.0
    %574 = vmatpush2.xpose.msra.mxu0 0.0
    %575 = vmatprep.subr.mxu0 0.0
    %576 = vmatpush2.xpose.msra.mxu0 0.0
    %577 = vmatprep.mubr.f32.mxu0 0.0
    %578 = vmatmul.mubr.f32.gmra.mxu0 %v509
    %v579 = vpop.f32.mrf.mxu0
    %v580 = vadd.f32 0.0, %v579
    %v581 = vpop.f32.mrf.mxu0
    %582 = vdwg.mxu0
    %583 = vrot.lane.b32.xlu0 %v353, 96
    %v584 = vpop.permute.xlu0 %583
    %v585 = vsel %vm356, %v353, 0
    %v587 = vsel %vm356, %v584, 0
    %589 = vmatprep.subr.mxu0 0.0
    %590 = vmatpush1.xpose.msra.mxu0 0.0
    %591 = vmatprep.subr.mxu0 0.0
    %592 = vmatpush1.xpose.msra.mxu0 0.0
    %593 = vmatprep.subr.mxu0 0.0
    %594 = vmatpush1.xpose.msra.mxu0 0.0
    %595 = vmatprep.subr.mxu0 0.0
    %596 = vmatpush1.xpose.msra.mxu0 0.0
    %597 = vmatprep.subr.mxu0 0.0
    %598 = vmatpush1.xpose.msra.mxu0 0.0
    %599 = vmatprep.subr.mxu0 0.0
    %600 = vmatpush1.xpose.msra.mxu0 0.0
    %601 = vmatprep.subr.mxu0 0.0
    %602 = vmatpush1.xpose.msra.mxu0 0.0
    %603 = vmatprep.subr.mxu0 0.0
    %604 = vmatpush1.xpose.msra.mxu0 0.0
    %605 = vmatprep.subr.mxu0 0.0
    %606 = vmatpush1.xpose.msra.mxu0 0.0
    %607 = vmatprep.subr.mxu0 0.0
    %608 = vmatpush1.xpose.msra.mxu0 0.0
    %609 = vmatprep.subr.mxu0 0.0
    %610 = vmatpush1.xpose.msra.mxu0 0.0
    %611 = vmatprep.subr.mxu0 0.0
    %612 = vmatpush1.xpose.msra.mxu0 0.0
    %613 = vmatprep.subr.mxu0 0.0
    %614 = vmatpush1.xpose.msra.mxu0 0.0
    %615 = vmatprep.subr.mxu0 0.0
    %616 = vmatpush1.xpose.msra.mxu0 0.0
    %617 = vmatprep.subr.mxu0 0.0
    %618 = vmatpush1.xpose.msra.mxu0 0.0
    %619 = vmatprep.subr.mxu0 0.0
    %620 = vmatpush1.xpose.msra.mxu0 %v587
    %621 = vmatprep.subr.mxu0 0.0
    %622 = vmatpush2.xpose.msra.mxu0 0.0
    %623 = vmatprep.subr.mxu0 0.0
    %624 = vmatpush2.xpose.msra.mxu0 0.0
    %625 = vmatprep.subr.mxu0 0.0
    %626 = vmatpush2.xpose.msra.mxu0 0.0
    %627 = vmatprep.subr.mxu0 0.0
    %628 = vmatpush2.xpose.msra.mxu0 0.0
    %629 = vmatprep.subr.mxu0 0.0
    %630 = vmatpush2.xpose.msra.mxu0 0.0
    %631 = vmatprep.subr.mxu0 0.0
    %632 = vmatpush2.xpose.msra.mxu0 0.0
    %633 = vmatprep.subr.mxu0 0.0
    %634 = vmatpush2.xpose.msra.mxu0 0.0
    %635 = vmatprep.subr.mxu0 0.0
    %636 = vmatpush2.xpose.msra.mxu0 0.0
    %637 = vmatprep.subr.mxu0 0.0
    %638 = vmatpush2.xpose.msra.mxu0 0.0
    %639 = vmatprep.subr.mxu0 0.0
    %640 = vmatpush2.xpose.msra.mxu0 0.0
    %641 = vmatprep.subr.mxu0 0.0
    %642 = vmatpush2.xpose.msra.mxu0 0.0
    %643 = vmatprep.subr.mxu0 0.0
    %644 = vmatpush2.xpose.msra.mxu0 0.0
    %645 = vmatprep.subr.mxu0 0.0
    %646 = vmatpush2.xpose.msra.mxu0 0.0
    %647 = vmatprep.subr.mxu0 0.0
    %648 = vmatpush2.xpose.msra.mxu0 0.0
    %649 = vmatprep.subr.mxu0 0.0
    %650 = vmatpush2.xpose.msra.mxu0 0.0
    %651 = vmatprep.subr.mxu0 0.0
    %652 = vmatpush2.xpose.msra.mxu0 0.0
    %653 = vmatprep.mubr.f32.mxu0 0.0
    %654 = vmatmul.mubr.f32.gmra.mxu0 %v585
    %v655 = vpop.f32.mrf.mxu0
    %v656 = vadd.f32 0.0, %v655
    %v657 = vpop.f32.mrf.mxu0
    %658 = vdwg.mxu0
    %v659 = vmul.f32 %v428, 0.25
    %v660 = vmul.f32 %v504, 0.25
    %v661 = vmul.f32 %v580, 0.25
    %v662 = vmul.f32 %v656, 0.25
    %v663 = vlaneseq
    %v664 = vshrl.u32 %v663, 7
    %v665 = vsub.s32 0, %v664
    %v666 = vrot.slane %v246, %v665
    %v667 = vlaneseq
    %v668 = vshrl.u32 %v667, 7
    %v669 = vsub.s32 0, %v668
    %v670 = vrot.slane %v253, %v669
    %v673 = vadd.f32 %v659, %v666
    %v674 = vadd.f32 %v660, %v670
    %v675 = vadd.f32 %v661, %v666
    %v676 = vadd.f32 %v662, %v670
    %vm677 = vcmask 64512
    %v678 = vsel %vm677, %v673, -inf
    %679 = vmax.xlane.f32.xlu0 %v678
    %v680 = vpop.xlane.xlu0 %679
    %v681 = vsel %vm677, %v674, -inf
    %682 = vmax.xlane.f32.xlu0 %v681
    %v683 = vpop.xlane.xlu0 %682
    %v684 = vsel %vm677, %v675, -inf
    %685 = vmax.xlane.f32.xlu0 %v684
    %v686 = vpop.xlane.xlu0 %685
    %v687 = vsel %vm677, %v676, -inf
    %688 = vmax.xlane.f32.xlu0 %v687
    %v689 = vpop.xlane.xlu0 %688
    %v690 = vsub.f32 %v673, %v680
    %v691 = vsub.f32 %v674, %v683
    %v692 = vsub.f32 %v675, %v686
    %v693 = vsub.f32 %v676, %v689
    %v694 = vmul.f32 %v690, 1.442695
    %v695 = vpow.pop %v694
    %v696 = vmul.f32 %v691, 1.442695
    %v697 = vpow.pop %v696
    %v698 = vmul.f32 %v692, 1.442695
    %v699 = vpow.pop %v698
    %v700 = vmul.f32 %v693, 1.442695
    %v701 = vpow.pop %v700
    %v702 = vsel %vm677, %v695, 0.0
    %703 = vadd.xlane.f32.xlu0 %v702
    %v704 = vpop.xlane.xlu0 %703
    %v705 = vsel %vm677, %v697, 0.0
    %706 = vadd.xlane.f32.xlu0 %v705
    %v707 = vpop.xlane.xlu0 %706
    %v708 = vsel %vm677, %v699, 0.0
    %709 = vadd.xlane.f32.xlu0 %v708
    %v710 = vpop.xlane.xlu0 %709
    %v711 = vsel %vm677, %v701, 0.0
    %712 = vadd.xlane.f32.xlu0 %v711
    %v713 = vpop.xlane.xlu0 %712
    %v714 = vrcp.pop %v704
    %v715 = vrcp.pop %v707
    %v716 = vrcp.pop %v710
    %v717 = vrcp.pop %v713
    %v718 = vmul.f32 %v695, %v714
    %v719 = vmul.f32 %v697, %v715
    %v720 = vmul.f32 %v699, %v716
    %v721 = vmul.f32 %v701, %v717
    %722 = vrot.lane.b32.xlu0 %v340, 64
    %v723 = vpop.permute.xlu0 %722
    %v726 = vsel %vm677, %v718, 0
    %728 = vmatprep.subr.mxu0 0.0
    %729 = vmatpush1.msra.mxu0 0.0
    %730 = vmatprep.subr.mxu0 0.0
    %731 = vmatpush1.msra.mxu0 0.0
    %732 = vmatprep.subr.mxu0 0.0
    %733 = vmatpush1.msra.mxu0 0.0
    %734 = vmatprep.subr.mxu0 0.0
    %735 = vmatpush1.msra.mxu0 0.0
    %736 = vmatprep.subr.mxu0 0.0
    %737 = vmatpush1.msra.mxu0 0.0
    %738 = vmatprep.subr.mxu0 0.0
    %739 = vmatpush1.msra.mxu0 0.0
    %740 = vmatprep.subr.mxu0 0.0
    %741 = vmatpush1.msra.mxu0 0.0
    %742 = vmatprep.subr.mxu0 0.0
    %743 = vmatpush1.msra.mxu0 0.0
    %744 = vmatprep.subr.mxu0 0.0
    %745 = vmatpush1.msra.mxu0 0.0
    %746 = vmatprep.subr.mxu0 0.0
    %747 = vmatpush1.msra.mxu0 0.0
    %748 = vmatprep.subr.mxu0 0.0
    %749 = vmatpush1.msra.mxu0 0.0
    %750 = vmatprep.subr.mxu0 0.0
    %751 = vmatpush1.msra.mxu0 0.0
    %752 = vmatprep.subr.mxu0 0.0
    %753 = vmatpush1.msra.mxu0 0.0
    %754 = vmatprep.subr.mxu0 0.0
    %755 = vmatpush1.msra.mxu0 0.0
    %756 = vmatprep.subr.mxu0 0.0
    %757 = vmatpush1.msra.mxu0 0.0
    %758 = vmatprep.subr.mxu0 0.0
    %759 = vmatpush1.msra.mxu0 %v723
    %760 = vmatprep.subr.mxu0 0.0
    %761 = vmatpush2.msra.mxu0 0.0
    %762 = vmatprep.subr.mxu0 0.0
    %763 = vmatpush2.msra.mxu0 0.0
    %764 = vmatprep.subr.mxu0 0.0
    %765 = vmatpush2.msra.mxu0 0.0
    %766 = vmatprep.subr.mxu0 0.0
    %767 = vmatpush2.msra.mxu0 0.0
    %768 = vmatprep.subr.mxu0 0.0
    %769 = vmatpush2.msra.mxu0 0.0
    %770 = vmatprep.subr.mxu0 0.0
    %771 = vmatpush2.msra.mxu0 0.0
    %772 = vmatprep.subr.mxu0 0.0
    %773 = vmatpush2.msra.mxu0 0.0
    %774 = vmatprep.subr.mxu0 0.0
    %775 = vmatpush2.msra.mxu0 0.0
    %776 = vmatprep.subr.mxu0 0.0
    %777 = vmatpush2.msra.mxu0 0.0
    %778 = vmatprep.subr.mxu0 0.0
    %779 = vmatpush2.msra.mxu0 0.0
    %780 = vmatprep.subr.mxu0 0.0
    %781 = vmatpush2.msra.mxu0 0.0
    %782 = vmatprep.subr.mxu0 0.0
    %783 = vmatpush2.msra.mxu0 0.0
    %784 = vmatprep.subr.mxu0 0.0
    %785 = vmatpush2.msra.mxu0 0.0
    %786 = vmatprep.subr.mxu0 0.0
    %787 = vmatpush2.msra.mxu0 0.0
    %788 = vmatprep.subr.mxu0 0.0
    %789 = vmatpush2.msra.mxu0 0.0
    %790 = vmatprep.subr.mxu0 0.0
    %791 = vmatpush2.msra.mxu0 0.0
    %792 = vmatprep.mubr.f32.mxu0 0.0
    %793 = vmatmul.mubr.f32.gmra.mxu0 %v726
    %v794 = vpop.f32.mrf.mxu0
    %v795 = vadd.f32 0.0, %v794
    %v796 = vpop.f32.mrf.mxu0
    %797 = vdwg.mxu0
    %798 = vrot.lane.b32.xlu0 %v345, 64
    %v799 = vpop.permute.xlu0 %798
    %v802 = vsel %vm677, %v719, 0
    %804 = vmatprep.subr.mxu0 0.0
    %805 = vmatpush1.msra.mxu0 0.0
    %806 = vmatprep.subr.mxu0 0.0
    %807 = vmatpush1.msra.mxu0 0.0
    %808 = vmatprep.subr.mxu0 0.0
    %809 = vmatpush1.msra.mxu0 0.0
    %810 = vmatprep.subr.mxu0 0.0
    %811 = vmatpush1.msra.mxu0 0.0
    %812 = vmatprep.subr.mxu0 0.0
    %813 = vmatpush1.msra.mxu0 0.0
    %814 = vmatprep.subr.mxu0 0.0
    %815 = vmatpush1.msra.mxu0 0.0
    %816 = vmatprep.subr.mxu0 0.0
    %817 = vmatpush1.msra.mxu0 0.0
    %818 = vmatprep.subr.mxu0 0.0
    %819 = vmatpush1.msra.mxu0 0.0
    %820 = vmatprep.subr.mxu0 0.0
    %821 = vmatpush1.msra.mxu0 0.0
    %822 = vmatprep.subr.mxu0 0.0
    %823 = vmatpush1.msra.mxu0 0.0
    %824 = vmatprep.subr.mxu0 0.0
    %825 = vmatpush1.msra.mxu0 0.0
    %826 = vmatprep.subr.mxu0 0.0
    %827 = vmatpush1.msra.mxu0 0.0
    %828 = vmatprep.subr.mxu0 0.0
    %829 = vmatpush1.msra.mxu0 0.0
    %830 = vmatprep.subr.mxu0 0.0
    %831 = vmatpush1.msra.mxu0 0.0
    %832 = vmatprep.subr.mxu0 0.0
    %833 = vmatpush1.msra.mxu0 0.0
    %834 = vmatprep.subr.mxu0 0.0
    %835 = vmatpush1.msra.mxu0 %v799
    %836 = vmatprep.subr.mxu0 0.0
    %837 = vmatpush2.msra.mxu0 0.0
    %838 = vmatprep.subr.mxu0 0.0
    %839 = vmatpush2.msra.mxu0 0.0
    %840 = vmatprep.subr.mxu0 0.0
    %841 = vmatpush2.msra.mxu0 0.0
    %842 = vmatprep.subr.mxu0 0.0
    %843 = vmatpush2.msra.mxu0 0.0
    %844 = vmatprep.subr.mxu0 0.0
    %845 = vmatpush2.msra.mxu0 0.0
    %846 = vmatprep.subr.mxu0 0.0
    %847 = vmatpush2.msra.mxu0 0.0
    %848 = vmatprep.subr.mxu0 0.0
    %849 = vmatpush2.msra.mxu0 0.0
    %850 = vmatprep.subr.mxu0 0.0
    %851 = vmatpush2.msra.mxu0 0.0
    %852 = vmatprep.subr.mxu0 0.0
    %853 = vmatpush2.msra.mxu0 0.0
    %854 = vmatprep.subr.mxu0 0.0
    %855 = vmatpush2.msra.mxu0 0.0
    %856 = vmatprep.subr.mxu0 0.0
    %857 = vmatpush2.msra.mxu0 0.0
    %858 = vmatprep.subr.mxu0 0.0
    %859 = vmatpush2.msra.mxu0 0.0
    %860 = vmatprep.subr.mxu0 0.0
    %861 = vmatpush2.msra.mxu0 0.0
    %862 = vmatprep.subr.mxu0 0.0
    %863 = vmatpush2.msra.mxu0 0.0
    %864 = vmatprep.subr.mxu0 0.0
    %865 = vmatpush2.msra.mxu0 0.0
    %866 = vmatprep.subr.mxu0 0.0
    %867 = vmatpush2.msra.mxu0 0.0
    %868 = vmatprep.mubr.f32.mxu0 0.0
    %869 = vmatmul.mubr.f32.gmra.mxu0 %v802
    %v870 = vpop.f32.mrf.mxu0
    %v871 = vadd.f32 0.0, %v870
    %v872 = vpop.f32.mrf.mxu0
    %873 = vdwg.mxu0
    %874 = vrot.lane.b32.xlu0 %v351, 64
    %v875 = vpop.permute.xlu0 %874
    %v878 = vsel %vm677, %v720, 0
    %880 = vmatprep.subr.mxu0 0.0
    %881 = vmatpush1.msra.mxu0 0.0
    %882 = vmatprep.subr.mxu0 0.0
    %883 = vmatpush1.msra.mxu0 0.0
    %884 = vmatprep.subr.mxu0 0.0
    %885 = vmatpush1.msra.mxu0 0.0
    %886 = vmatprep.subr.mxu0 0.0
    %887 = vmatpush1.msra.mxu0 0.0
    %888 = vmatprep.subr.mxu0 0.0
    %889 = vmatpush1.msra.mxu0 0.0
    %890 = vmatprep.subr.mxu0 0.0
    %891 = vmatpush1.msra.mxu0 0.0
    %892 = vmatprep.subr.mxu0 0.0
    %893 = vmatpush1.msra.mxu0 0.0
    %894 = vmatprep.subr.mxu0 0.0
    %895 = vmatpush1.msra.mxu0 0.0
    %896 = vmatprep.subr.mxu0 0.0
    %897 = vmatpush1.msra.mxu0 0.0
    %898 = vmatprep.subr.mxu0 0.0
    %899 = vmatpush1.msra.mxu0 0.0
    %900 = vmatprep.subr.mxu0 0.0
    %901 = vmatpush1.msra.mxu0 0.0
    %902 = vmatprep.subr.mxu0 0.0
    %903 = vmatpush1.msra.mxu0 0.0
    %904 = vmatprep.subr.mxu0 0.0
    %905 = vmatpush1.msra.mxu0 0.0
    %906 = vmatprep.subr.mxu0 0.0
    %907 = vmatpush1.msra.mxu0 0.0
    %908 = vmatprep.subr.mxu0 0.0
    %909 = vmatpush1.msra.mxu0 0.0
    %910 = vmatprep.subr.mxu0 0.0
    %911 = vmatpush1.msra.mxu0 %v875
    %912 = vmatprep.subr.mxu0 0.0
    %913 = vmatpush2.msra.mxu0 0.0
    %914 = vmatprep.subr.mxu0 0.0
    %915 = vmatpush2.msra.mxu0 0.0
    %916 = vmatprep.subr.mxu0 0.0
    %917 = vmatpush2.msra.mxu0 0.0
    %918 = vmatprep.subr.mxu0 0.0
    %919 = vmatpush2.msra.mxu0 0.0
    %920 = vmatprep.subr.mxu0 0.0
    %921 = vmatpush2.msra.mxu0 0.0
    %922 = vmatprep.subr.mxu0 0.0
    %923 = vmatpush2.msra.mxu0 0.0
    %924 = vmatprep.subr.mxu0 0.0
    %925 = vmatpush2.msra.mxu0 0.0
    %926 = vmatprep.subr.mxu0 0.0
    %927 = vmatpush2.msra.mxu0 0.0
    %928 = vmatprep.subr.mxu0 0.0
    %929 = vmatpush2.msra.mxu0 0.0
    %930 = vmatprep.subr.mxu0 0.0
    %931 = vmatpush2.msra.mxu0 0.0
    %932 = vmatprep.subr.mxu0 0.0
    %933 = vmatpush2.msra.mxu0 0.0
    %934 = vmatprep.subr.mxu0 0.0
    %935 = vmatpush2.msra.mxu0 0.0
    %936 = vmatprep.subr.mxu0 0.0
    %937 = vmatpush2.msra.mxu0 0.0
    %938 = vmatprep.subr.mxu0 0.0
    %939 = vmatpush2.msra.mxu0 0.0
    %940 = vmatprep.subr.mxu0 0.0
    %941 = vmatpush2.msra.mxu0 0.0
    %942 = vmatprep.subr.mxu0 0.0
    %943 = vmatpush2.msra.mxu0 0.0
    %944 = vmatprep.mubr.f32.mxu0 0.0
    %945 = vmatmul.mubr.f32.gmra.mxu0 %v878
    %v946 = vpop.f32.mrf.mxu0
    %v947 = vadd.f32 0.0, %v946
    %v948 = vpop.f32.mrf.mxu0
    %949 = vdwg.mxu0
    %950 = vrot.lane.b32.xlu0 %v353, 64
    %v951 = vpop.permute.xlu0 %950
    %v954 = vsel %vm677, %v721, 0
    %956 = vmatprep.subr.mxu0 0.0
    %957 = vmatpush1.msra.mxu0 0.0
    %958 = vmatprep.subr.mxu0 0.0
    %959 = vmatpush1.msra.mxu0 0.0
    %960 = vmatprep.subr.mxu0 0.0
    %961 = vmatpush1.msra.mxu0 0.0
    %962 = vmatprep.subr.mxu0 0.0
    %963 = vmatpush1.msra.mxu0 0.0
    %964 = vmatprep.subr.mxu0 0.0
    %965 = vmatpush1.msra.mxu0 0.0
    %966 = vmatprep.subr.mxu0 0.0
    %967 = vmatpush1.msra.mxu0 0.0
    %968 = vmatprep.subr.mxu0 0.0
    %969 = vmatpush1.msra.mxu0 0.0
    %970 = vmatprep.subr.mxu0 0.0
    %971 = vmatpush1.msra.mxu0 0.0
    %972 = vmatprep.subr.mxu0 0.0
    %973 = vmatpush1.msra.mxu0 0.0
    %974 = vmatprep.subr.mxu0 0.0
    %975 = vmatpush1.msra.mxu0 0.0
    %976 = vmatprep.subr.mxu0 0.0
    %977 = vmatpush1.msra.mxu0 0.0
    %978 = vmatprep.subr.mxu0 0.0
    %979 = vmatpush1.msra.mxu0 0.0
    %980 = vmatprep.subr.mxu0 0.0
    %981 = vmatpush1.msra.mxu0 0.0
    %982 = vmatprep.subr.mxu0 0.0
    %983 = vmatpush1.msra.mxu0 0.0
    %984 = vmatprep.subr.mxu0 0.0
    %985 = vmatpush1.msra.mxu0 0.0
    %986 = vmatprep.subr.mxu0 0.0
    %987 = vmatpush1.msra.mxu0 %v951
    %988 = vmatprep.subr.mxu0 0.0
    %989 = vmatpush2.msra.mxu0 0.0
    %990 = vmatprep.subr.mxu0 0.0
    %991 = vmatpush2.msra.mxu0 0.0
    %992 = vmatprep.subr.mxu0 0.0
    %993 = vmatpush2.msra.mxu0 0.0
    %994 = vmatprep.subr.mxu0 0.0
    %995 = vmatpush2.msra.mxu0 0.0
    %996 = vmatprep.subr.mxu0 0.0
    %997 = vmatpush2.msra.mxu0 0.0
    %998 = vmatprep.subr.mxu0 0.0
    %999 = vmatpush2.msra.mxu0 0.0
    %1000 = vmatprep.subr.mxu0 0.0
    %1001 = vmatpush2.msra.mxu0 0.0
    %1002 = vmatprep.subr.mxu0 0.0
    %1003 = vmatpush2.msra.mxu0 0.0
    %1004 = vmatprep.subr.mxu0 0.0
    %1005 = vmatpush2.msra.mxu0 0.0
    %1006 = vmatprep.subr.mxu0 0.0
    %1007 = vmatpush2.msra.mxu0 0.0
    %1008 = vmatprep.subr.mxu0 0.0
    %1009 = vmatpush2.msra.mxu0 0.0
    %1010 = vmatprep.subr.mxu0 0.0
    %1011 = vmatpush2.msra.mxu0 0.0
    %1012 = vmatprep.subr.mxu0 0.0
    %1013 = vmatpush2.msra.mxu0 0.0
    %1014 = vmatprep.subr.mxu0 0.0
    %1015 = vmatpush2.msra.mxu0 0.0
    %1016 = vmatprep.subr.mxu0 0.0
    %1017 = vmatpush2.msra.mxu0 0.0
    %1018 = vmatprep.subr.mxu0 0.0
    %1019 = vmatpush2.msra.mxu0 0.0
    %1020 = vmatprep.mubr.f32.mxu0 0.0
    %1021 = vmatmul.mubr.f32.gmra.mxu0 %v954
    %v1022 = vpop.f32.mrf.mxu0
    %v1023 = vadd.f32 0.0, %v1022
    %v1024 = vpop.f32.mrf.mxu0
    %1025 = vdwg.mxu0
    %1028 = vrot.lane.b32.xlu0 %v947, 16
    %v1029 = vpop.permute.xlu0 %1028
    %1030 = vrot.lane.b32.xlu0 %v1023, 16
    %v1031 = vpop.permute.xlu0 %1030
    %v1034 = vsel %vm356, %v795, %v1029
    %v1035 = vsel %vm356, %v871, %v1031
    %v1036 = vld [vmem:[%s9] sm:$0xff]
    %v1037 = vld [vmem:[%s9 + $0x8] sm:$0xff]
    %v1038 = vld [vmem:[%s9 + $0x10] sm:$0xff]
    %v1039 = vld [vmem:[%s9 + $0x18] sm:$0xff]
    %v1040 = vld [vmem:[%s10] sm:$0x1]
    %v1042 = vlaneseq
    %v1043 = vshrl.u32 %v1042, 7
    %v1044 = vsub.s32 0, %v1043
    %v1045 = vrot.slane %v1040, %v1044
    %v1048 = vsel %vm184, %v1034, 0
    %v1051 = vsel %vm184, %v1035, 0
    %1053 = vmatprep.subr.mxu0 0.0
    %1054 = vmatpush1.msra.mxu0 0.0
    %1055 = vmatprep.subr.mxu0 0.0
    %1056 = vmatpush1.msra.mxu0 0.0
    %1057 = vmatprep.subr.mxu0 0.0
    %1058 = vmatpush1.msra.mxu0 0.0
    %1059 = vmatprep.subr.mxu0 0.0
    %1060 = vmatpush1.msra.mxu0 0.0
    %1061 = vmatprep.subr.mxu0 0.0
    %1062 = vmatpush1.msra.mxu0 0.0
    %1063 = vmatprep.subr.mxu0 0.0
    %1064 = vmatpush1.msra.mxu0 0.0
    %1065 = vmatprep.subr.mxu0 0.0
    %1066 = vmatpush1.msra.mxu0 0.0
    %1067 = vmatprep.subr.mxu0 0.0
    %1068 = vmatpush1.msra.mxu0 0.0
    %1069 = vmatprep.subr.mxu0 0.0
    %1070 = vmatpush1.msra.mxu0 0.0
    %1071 = vmatprep.subr.mxu0 0.0
    %1072 = vmatpush1.msra.mxu0 0.0
    %1073 = vmatprep.subr.mxu0 0.0
    %1074 = vmatpush1.msra.mxu0 0.0
    %1075 = vmatprep.subr.mxu0 0.0
    %1076 = vmatpush1.msra.mxu0 0.0
    %1077 = vmatprep.subr.mxu0 0.0
    %1078 = vmatpush1.msra.mxu0 %v1039
    %1079 = vmatprep.subr.mxu0 0.0
    %1080 = vmatpush1.msra.mxu0 %v1038
    %1081 = vmatprep.subr.mxu0 0.0
    %1082 = vmatpush1.msra.mxu0 %v1037
    %1083 = vmatprep.subr.mxu0 0.0
    %1084 = vmatpush1.msra.mxu0 %v1036
    %1085 = vmatprep.subr.mxu0 0.0
    %1086 = vmatpush2.msra.mxu0 0.0
    %1087 = vmatprep.subr.mxu0 0.0
    %1088 = vmatpush2.msra.mxu0 0.0
    %1089 = vmatprep.subr.mxu0 0.0
    %1090 = vmatpush2.msra.mxu0 0.0
    %1091 = vmatprep.subr.mxu0 0.0
    %1092 = vmatpush2.msra.mxu0 0.0
    %1093 = vmatprep.subr.mxu0 0.0
    %1094 = vmatpush2.msra.mxu0 0.0
    %1095 = vmatprep.subr.mxu0 0.0
    %1096 = vmatpush2.msra.mxu0 0.0
    %1097 = vmatprep.subr.mxu0 0.0
    %1098 = vmatpush2.msra.mxu0 0.0
    %1099 = vmatprep.subr.mxu0 0.0
    %1100 = vmatpush2.msra.mxu0 0.0
    %1101 = vmatprep.subr.mxu0 0.0
    %1102 = vmatpush2.msra.mxu0 0.0
    %1103 = vmatprep.subr.mxu0 0.0
    %1104 = vmatpush2.msra.mxu0 0.0
    %1105 = vmatprep.subr.mxu0 0.0
    %1106 = vmatpush2.msra.mxu0 0.0
    %1107 = vmatprep.subr.mxu0 0.0
    %1108 = vmatpush2.msra.mxu0 0.0
    %1109 = vmatprep.subr.mxu0 0.0
    %1110 = vmatpush2.msra.mxu0 0.0
    %1111 = vmatprep.subr.mxu0 0.0
    %1112 = vmatpush2.msra.mxu0 0.0
    %1113 = vmatprep.subr.mxu0 0.0
    %1114 = vmatpush2.msra.mxu0 0.0
    %1115 = vmatprep.subr.mxu0 0.0
    %1116 = vmatpush2.msra.mxu0 0.0
    %1117 = vmatprep.mubr.f32.mxu0 0.0
    %1118 = vmatmul.mubr.f32.gmra.mxu0 %v1048
    %v1119 = vpop.f32.mrf.mxu0
    %v1120 = vadd.f32 %v1045, %v1119
    %v1121 = vpop.f32.mrf.mxu0
    %1122 = vmatprep.mubr.f32.mxu0 0.0
    %1123 = vmatmul.mubr.f32.gmra.mxu0 %v1051
    %v1124 = vpop.f32.mrf.mxu0
    %v1125 = vadd.f32 %v1045, %v1124
    %v1126 = vpop.f32.mrf.mxu0
    %1127 = vdwg.mxu0
    %v1128 = vadd.f32 %v1120, %v226
    %v1129 = vadd.f32 %v1125, %v227
    %v1130 = vld [vmem:[%s11] sm:$0x1]
    %v1131 = vld [vmem:[%s12] sm:$0x1]
    %v1132 = vsel %vm184, %v1128, 0.0
    %1133 = vadd.xlane.f32.xlu0 %v1132
    %v1134 = vpop.xlane.xlu0 %1133
    %v1135 = vsel %vm184, %v1129, 0.0
    %1136 = vadd.xlane.f32.xlu0 %v1135
    %v1137 = vpop.xlane.xlu0 %1136
    %v1138 = vmul.f32 %v1134, %v191
    %v1139 = vmul.f32 %v1137, %v191
    %v1140 = vsub.f32 %v1128, %v1138
    %v1141 = vsub.f32 %v1129, %v1139
    %v1142 = vmul.f32 %v1140, %v1140
    %v1143 = vmul.f32 %v1141, %v1141
    %v1144 = vsel %vm184, %v1142, 0.0
    %1145 = vadd.xlane.f32.xlu0 %v1144
    %v1146 = vpop.xlane.xlu0 %1145
    %v1147 = vsel %vm184, %v1143, 0.0
    %1148 = vadd.xlane.f32.xlu0 %v1147
    %v1149 = vpop.xlane.xlu0 %1148
    %v1150 = vmul.f32 %v1146, %v191
    %v1151 = vmul.f32 %v1149, %v191
    %v1152 = vadd.f32 %v1150, 1e-12
    %v1153 = vadd.f32 %v1151, 1e-12
    %v1154 = vrsqrt.pop %v1152
    %v1155 = vrsqrt.pop %v1153
    %v1156 = vmul.f32 %v1140, %v1154
    %v1157 = vmul.f32 %v1141, %v1155
    %v1159 = vlaneseq
    %v1160 = vshrl.u32 %v1159, 7
    %v1161 = vsub.s32 0, %v1160
    %v1162 = vrot.slane %v1130, %v1161
    %v1164 = vmul.f32 %v1156, %v1162
    %v1165 = vmul.f32 %v1157, %v1162
    %v1167 = vlaneseq
    %v1168 = vshrl.u32 %v1167, 7
    %v1169 = vsub.s32 0, %v1168
    %v1170 = vrot.slane %v1131, %v1169
    %v1172 = vadd.f32 %v1164, %v1170
    %v1173 = vadd.f32 %v1165, %v1170
    %v1174 = vld [vmem:[%s13] sm:$0xff]
    %v1175 = vld [vmem:[%s13 + $0x8] sm:$0xff]
    %v1176 = vld [vmem:[%s13 + $0x10] sm:$0xff]
    %v1177 = vld [vmem:[%s13 + $0x18] sm:$0xff]
    %v1178 = vld [vmem:[%s14] sm:$0x1]
    %v1180 = vlaneseq
    %v1181 = vshrl.u32 %v1180, 7
    %v1182 = vsub.s32 0, %v1181
    %v1183 = vrot.slane %v1178, %v1182
    %v1186 = vsel %vm184, %v1172, 0
    %v1189 = vsel %vm184, %v1173, 0
    %1191 = vmatprep.subr.mxu0 0.0
    %1192 = vmatpush1.msra.mxu0 0.0
    %1193 = vmatprep.subr.mxu0 0.0
    %1194 = vmatpush1.msra.mxu0 0.0
    %1195 = vmatprep.subr.mxu0 0.0
    %1196 = vmatpush1.msra.mxu0 0.0
    %1197 = vmatprep.subr.mxu0 0.0
    %1198 = vmatpush1.msra.mxu0 0.0
    %1199 = vmatprep.subr.mxu0 0.0
    %1200 = vmatpush1.msra.mxu0 0.0
    %1201 = vmatprep.subr.mxu0 0.0
    %1202 = vmatpush1.msra.mxu0 0.0
    %1203 = vmatprep.subr.mxu0 0.0
    %1204 = vmatpush1.msra.mxu0 0.0
    %1205 = vmatprep.subr.mxu0 0.0
    %1206 = vmatpush1.msra.mxu0 0.0
    %1207 = vmatprep.subr.mxu0 0.0
    %1208 = vmatpush1.msra.mxu0 0.0
    %1209 = vmatprep.subr.mxu0 0.0
    %1210 = vmatpush1.msra.mxu0 0.0
    %1211 = vmatprep.subr.mxu0 0.0
    %1212 = vmatpush1.msra.mxu0 0.0
    %1213 = vmatprep.subr.mxu0 0.0
    %1214 = vmatpush1.msra.mxu0 0.0
    %1215 = vmatprep.subr.mxu0 0.0
    %1216 = vmatpush1.msra.mxu0 %v1177
    %1217 = vmatprep.subr.mxu0 0.0
    %1218 = vmatpush1.msra.mxu0 %v1176
    %1219 = vmatprep.subr.mxu0 0.0
    %1220 = vmatpush1.msra.mxu0 %v1175
    %1221 = vmatprep.subr.mxu0 0.0
    %1222 = vmatpush1.msra.mxu0 %v1174
    %1223 = vmatprep.subr.mxu0 0.0
    %1224 = vmatpush2.msra.mxu0 0.0
    %1225 = vmatprep.subr.mxu0 0.0
    %1226 = vmatpush2.msra.mxu0 0.0
    %1227 = vmatprep.subr.mxu0 0.0
    %1228 = vmatpush2.msra.mxu0 0.0
    %1229 = vmatprep.subr.mxu0 0.0
    %1230 = vmatpush2.msra.mxu0 0.0
    %1231 = vmatprep.subr.mxu0 0.0
    %1232 = vmatpush2.msra.mxu0 0.0
    %1233 = vmatprep.subr.mxu0 0.0
    %1234 = vmatpush2.msra.mxu0 0.0
    %1235 = vmatprep.subr.mxu0 0.0
    %1236 = vmatpush2.msra.mxu0 0.0
    %1237 = vmatprep.subr.mxu0 0.0
    %1238 = vmatpush2.msra.mxu0 0.0
    %1239 = vmatprep.subr.mxu0 0.0
    %1240 = vmatpush2.msra.mxu0 0.0
    %1241 = vmatprep.subr.mxu0 0.0
    %1242 = vmatpush2.msra.mxu0 0.0
    %1243 = vmatprep.subr.mxu0 0.0
    %1244 = vmatpush2.msra.mxu0 0.0
    %1245 = vmatprep.subr.mxu0 0.0
    %1246 = vmatpush2.msra.mxu0 0.0
    %1247 = vmatprep.subr.mxu0 0.0
    %1248 = vmatpush2.msra.mxu0 0.0
    %1249 = vmatprep.subr.mxu0 0.0
    %1250 = vmatpush2.msra.mxu0 0.0
    %1251 = vmatprep.subr.mxu0 0.0
    %1252 = vmatpush2.msra.mxu0 0.0
    %1253 = vmatprep.subr.mxu0 0.0
    %1254 = vmatpush2.msra.mxu0 0.0
    %1255 = vmatprep.mubr.f32.mxu0 0.0
    %1256 = vmatmul.mubr.f32.gmra.mxu0 %v1186
    %v1257 = vpop.f32.mrf.mxu0
    %v1258 = vadd.f32 %v1183, %v1257
    %v1259 = vpop.f32.mrf.mxu0
    %1260 = vmatprep.mubr.f32.mxu0 0.0
    %1261 = vmatmul.mubr.f32.gmra.mxu0 %v1189
    %v1262 = vpop.f32.mrf.mxu0
    %v1263 = vadd.f32 %v1183, %v1262
    %v1264 = vpop.f32.mrf.mxu0
    %1265 = vdwg.mxu0
    %v1266 = vmul.f32 %v1258, 0.5
    %v1267 = vmul.f32 %v1263, 0.5
    %v1268 = vmul.f32 %v1258, 0.70710677
    %v1269 = vmul.f32 %v1263, 0.70710677
    %v1270 = verf.f32.pop %v1268
    %v1271 = verf.f32.pop %v1269
    %v1272 = vadd.f32 %v1270, 1.0
    %v1273 = vadd.f32 %v1271, 1.0
    %v1274 = vmul.f32 %v1266, %v1272
    %v1275 = vmul.f32 %v1267, %v1273
    %v1276 = vld [vmem:[%s15] sm:$0xff]
    %v1277 = vld [vmem:[%s15 + $0x8] sm:$0xff]
    %v1278 = vld [vmem:[%s15 + $0x10] sm:$0xff]
    %v1279 = vld [vmem:[%s15 + $0x18] sm:$0xff]
    %v1280 = vld [vmem:[%s15 + $0x20] sm:$0xff]
    %v1281 = vld [vmem:[%s15 + $0x28] sm:$0xff]
    %v1282 = vld [vmem:[%s15 + $0x30] sm:$0xff]
    %v1283 = vld [vmem:[%s15 + $0x38] sm:$0xff]
    %v1284 = vld [vmem:[%s16] sm:$0x1]
    %v1286 = vlaneseq
    %v1287 = vshrl.u32 %v1286, 7
    %v1288 = vsub.s32 0, %v1287
    %v1289 = vrot.slane %v1284, %v1288
    %vm1291 = vcmask 523264
    %v1293 = vsel %vm1291, %v1274, 0
    %v1296 = vsel %vm1291, %v1275, 0
    %1298 = vmatprep.subr.mxu0 0.0
    %1299 = vmatpush1.msra.mxu0 0.0
    %1300 = vmatprep.subr.mxu0 0.0
    %1301 = vmatpush1.msra.mxu0 0.0
    %1302 = vmatprep.subr.mxu0 0.0
    %1303 = vmatpush1.msra.mxu0 0.0
    %1304 = vmatprep.subr.mxu0 0.0
    %1305 = vmatpush1.msra.mxu0 0.0
    %1306 = vmatprep.subr.mxu0 0.0
    %1307 = vmatpush1.msra.mxu0 0.0
    %1308 = vmatprep.subr.mxu0 0.0
    %1309 = vmatpush1.msra.mxu0 0.0
    %1310 = vmatprep.subr.mxu0 0.0
    %1311 = vmatpush1.msra.mxu0 0.0
    %1312 = vmatprep.subr.mxu0 0.0
    %1313 = vmatpush1.msra.mxu0 0.0
    %1314 = vmatprep.subr.mxu0 0.0
    %1315 = vmatpush1.msra.mxu0 %v1283
    %1316 = vmatprep.subr.mxu0 0.0
    %1317 = vmatpush1.msra.mxu0 %v1282
    %1318 = vmatprep.subr.mxu0 0.0
    %1319 = vmatpush1.msra.mxu0 %v1281
    %1320 = vmatprep.subr.mxu0 0.0
    %1321 = vmatpush1.msra.mxu0 %v1280
    %1322 = vmatprep.subr.mxu0 0.0
    %1323 = vmatpush1.msra.mxu0 %v1279
    %1324 = vmatprep.subr.mxu0 0.0
    %1325 = vmatpush1.msra.mxu0 %v1278
    %1326 = vmatprep.subr.mxu0 0.0
    %1327 = vmatpush1.msra.mxu0 %v1277
    %1328 = vmatprep.subr.mxu0 0.0
    %1329 = vmatpush1.msra.mxu0 %v1276
    %1330 = vmatprep.subr.mxu0 0.0
    %1331 = vmatpush2.msra.mxu0 0.0
    %1332 = vmatprep.subr.mxu0 0.0
    %1333 = vmatpush2.msra.mxu0 0.0
    %1334 = vmatprep.subr.mxu0 0.0
    %1335 = vmatpush2.msra.mxu0 0.0
    %1336 = vmatprep.subr.mxu0 0.0
    %1337 = vmatpush2.msra.mxu0 0.0
    %1338 = vmatprep.subr.mxu0 0.0
    %1339 = vmatpush2.msra.mxu0 0.0
    %1340 = vmatprep.subr.mxu0 0.0
    %1341 = vmatpush2.msra.mxu0 0.0
    %1342 = vmatprep.subr.mxu0 0.0
    %1343 = vmatpush2.msra.mxu0 0.0
    %1344 = vmatprep.subr.mxu0 0.0
    %1345 = vmatpush2.msra.mxu0 0.0
    %1346 = vmatprep.subr.mxu0 0.0
    %1347 = vmatpush2.msra.mxu0 0.0
    %1348 = vmatprep.subr.mxu0 0.0
    %1349 = vmatpush2.msra.mxu0 0.0
    %1350 = vmatprep.subr.mxu0 0.0
    %1351 = vmatpush2.msra.mxu0 0.0
    %1352 = vmatprep.subr.mxu0 0.0
    %1353 = vmatpush2.msra.mxu0 0.0
    %1354 = vmatprep.subr.mxu0 0.0
    %1355 = vmatpush2.msra.mxu0 0.0
    %1356 = vmatprep.subr.mxu0 0.0
    %1357 = vmatpush2.msra.mxu0 0.0
    %1358 = vmatprep.subr.mxu0 0.0
    %1359 = vmatpush2.msra.mxu0 0.0
    %1360 = vmatprep.subr.mxu0 0.0
    %1361 = vmatpush2.msra.mxu0 0.0
    %1362 = vmatprep.mubr.f32.mxu0 0.0
    %1363 = vmatmul.mubr.f32.gmra.mxu0 %v1293
    %v1364 = vpop.f32.mrf.mxu0
    %v1365 = vadd.f32 %v1289, %v1364
    %v1366 = vpop.f32.mrf.mxu0
    %1367 = vmatprep.mubr.f32.mxu0 0.0
    %1368 = vmatmul.mubr.f32.gmra.mxu0 %v1296
    %v1369 = vpop.f32.mrf.mxu0
    %v1370 = vadd.f32 %v1289, %v1369
    %v1371 = vpop.f32.mrf.mxu0
    %1372 = vdwg.mxu0
    %v1373 = vadd.f32 %v1365, %v1172
    %v1374 = vadd.f32 %v1370, %v1173
    %v1375 = vld [vmem:[%s17] sm:$0x1]
    %v1376 = vld [vmem:[%s18] sm:$0x1]
    %v1377 = vsel %vm184, %v1373, 0.0
    %1378 = vadd.xlane.f32.xlu0 %v1377
    %v1379 = vpop.xlane.xlu0 %1378
    %v1380 = vsel %vm184, %v1374, 0.0
    %1381 = vadd.xlane.f32.xlu0 %v1380
    %v1382 = vpop.xlane.xlu0 %1381
    %v1383 = vmul.f32 %v1379, %v191
    %v1384 = vmul.f32 %v1382, %v191
    %v1385 = vsub.f32 %v1373, %v1383
    %v1386 = vsub.f32 %v1374, %v1384
    %v1387 = vmul.f32 %v1385, %v1385
    %v1388 = vmul.f32 %v1386, %v1386
    %v1389 = vsel %vm184, %v1387, 0.0
    %1390 = vadd.xlane.f32.xlu0 %v1389
    %v1391 = vpop.xlane.xlu0 %1390
    %v1392 = vsel %vm184, %v1388, 0.0
    %1393 = vadd.xlane.f32.xlu0 %v1392
    %v1394 = vpop.xlane.xlu0 %1393
    %v1395 = vmul.f32 %v1391, %v191
    %v1396 = vmul.f32 %v1394, %v191
    %v1397 = vadd.f32 %v1395, 1e-12
    %v1398 = vadd.f32 %v1396, 1e-12
    %v1399 = vrsqrt.pop %v1397
    %v1400 = vrsqrt.pop %v1398
    %v1401 = vmul.f32 %v1385, %v1399
    %v1402 = vmul.f32 %v1386, %v1400
    %v1404 = vlaneseq
    %v1405 = vshrl.u32 %v1404, 7
    %v1406 = vsub.s32 0, %v1405
    %v1407 = vrot.slane %v1375, %v1406
    %v1409 = vmul.f32 %v1401, %v1407
    %v1410 = vmul.f32 %v1402, %v1407
    %v1412 = vlaneseq
    %v1413 = vshrl.u32 %v1412, 7
    %v1414 = vsub.s32 0, %v1413
    %v1415 = vrot.slane %v1376, %v1414
    %v1417 = vadd.f32 %v1409, %v1415
    %v1418 = vadd.f32 %v1410, %v1415
    %s1419 = scalar_lea.vmem %s7, 32
    %v1420 = vld [vmem:[%s1419] sm:$0xff]
    %v1421 = vld [vmem:[%s1419 + $0x8] sm:$0xff]
    %v1422 = vld [vmem:[%s1419 + $0x10] sm:$0xff]
    %v1423 = vld [vmem:[%s1419 + $0x18] sm:$0xff]
    %s1424 = scalar_lea.vmem %s8, 1
    %v1425 = vld [vmem:[%s1424] sm:$0x1]
    %v1427 = vlaneseq
    %v1428 = vshrl.u32 %v1427, 7
    %v1429 = vsub.s32 0, %v1428
    %v1430 = vrot.slane %v1425, %v1429
    %v1433 = vsel %vm184, %v1417, 0
    %v1436 = vsel %vm184, %v1418, 0
    %1438 = vmatprep.subr.mxu0 0.0
    %1439 = vmatpush1.msra.mxu0 0.0
    %1440 = vmatprep.subr.mxu0 0.0
    %1441 = vmatpush1.msra.mxu0 0.0
    %1442 = vmatprep.subr.mxu0 0.0
    %1443 = vmatpush1.msra.mxu0 0.0
    %1444 = vmatprep.subr.mxu0 0.0
    %1445 = vmatpush1.msra.mxu0 0.0
    %1446 = vmatprep.subr.mxu0 0.0
    %1447 = vmatpush1.msra.mxu0 0.0
    %1448 = vmatprep.subr.mxu0 0.0
    %1449 = vmatpush1.msra.mxu0 0.0
    %1450 = vmatprep.subr.mxu0 0.0
    %1451 = vmatpush1.msra.mxu0 0.0
    %1452 = vmatprep.subr.mxu0 0.0
    %1453 = vmatpush1.msra.mxu0 0.0
    %1454 = vmatprep.subr.mxu0 0.0
    %1455 = vmatpush1.msra.mxu0 0.0
    %1456 = vmatprep.subr.mxu0 0.0
    %1457 = vmatpush1.msra.mxu0 0.0
    %1458 = vmatprep.subr.mxu0 0.0
    %1459 = vmatpush1.msra.mxu0 0.0
    %1460 = vmatprep.subr.mxu0 0.0
    %1461 = vmatpush1.msra.mxu0 0.0
    %1462 = vmatprep.subr.mxu0 0.0
    %1463 = vmatpush1.msra.mxu0 %v1423
    %1464 = vmatprep.subr.mxu0 0.0
    %1465 = vmatpush1.msra.mxu0 %v1422
    %1466 = vmatprep.subr.mxu0 0.0
    %1467 = vmatpush1.msra.mxu0 %v1421
    %1468 = vmatprep.subr.mxu0 0.0
    %1469 = vmatpush1.msra.mxu0 %v1420
    %1470 = vmatprep.subr.mxu0 0.0
    %1471 = vmatpush2.msra.mxu0 0.0
    %1472 = vmatprep.subr.mxu0 0.0
    %1473 = vmatpush2.msra.mxu0 0.0
    %1474 = vmatprep.subr.mxu0 0.0
    %1475 = vmatpush2.msra.mxu0 0.0
    %1476 = vmatprep.subr.mxu0 0.0
    %1477 = vmatpush2.msra.mxu0 0.0
    %1478 = vmatprep.subr.mxu0 0.0
    %1479 = vmatpush2.msra.mxu0 0.0
    %1480 = vmatprep.subr.mxu0 0.0
    %1481 = vmatpush2.msra.mxu0 0.0
    %1482 = vmatprep.subr.mxu0 0.0
    %1483 = vmatpush2.msra.mxu0 0.0
    %1484 = vmatprep.subr.mxu0 0.0
    %1485 = vmatpush2.msra.mxu0 0.0
    %1486 = vmatprep.subr.mxu0 0.0
    %1487 = vmatpush2.msra.mxu0 0.0
    %1488 = vmatprep.subr.mxu0 0.0
    %1489 = vmatpush2.msra.mxu0 0.0
    %1490 = vmatprep.subr.mxu0 0.0
    %1491 = vmatpush2.msra.mxu0 0.0
    %1492 = vmatprep.subr.mxu0 0.0
    %1493 = vmatpush2.msra.mxu0 0.0
    %1494 = vmatprep.subr.mxu0 0.0
    %1495 = vmatpush2.msra.mxu0 0.0
    %1496 = vmatprep.subr.mxu0 0.0
    %1497 = vmatpush2.msra.mxu0 0.0
    %1498 = vmatprep.subr.mxu0 0.0
    %1499 = vmatpush2.msra.mxu0 0.0
    %1500 = vmatprep.subr.mxu0 0.0
    %1501 = vmatpush2.msra.mxu0 0.0
    %1502 = vmatprep.mubr.f32.mxu0 0.0
    %1503 = vmatmul.mubr.f32.gmra.mxu0 %v1433
    %v1504 = vpop.f32.mrf.mxu0
    %v1505 = vadd.f32 %v1430, %v1504
    %v1506 = vpop.f32.mrf.mxu0
    %1507 = vmatprep.mubr.f32.mxu0 0.0
    %1508 = vmatmul.mubr.f32.gmra.mxu0 %v1436
    %v1509 = vpop.f32.mrf.mxu0
    %v1510 = vadd.f32 %v1430, %v1509
    %v1511 = vpop.f32.mrf.mxu0
    %1512 = vdwg.mxu0
    %1515 = vrot.lane.b32.xlu0 %v1505, 112
    %v1516 = vpop.permute.xlu0 %1515
    %1517 = vrot.lane.b32.xlu0 %v1510, 112
    %v1518 = vpop.permute.xlu0 %1517
    %v1519 = vrot.slane %v1505, 7
    %1520 = vrot.lane.b32.xlu0 %v1505, 96
    %v1521 = vpop.permute.xlu0 %1520
    %v1522 = vsel %vm356, %v1519, 0
    %v1524 = vsel %vm356, %v1521, 0
    %1526 = vmatprep.subr.mxu0 0.0
    %1527 = vmatpush1.xpose.msra.mxu0 0.0
    %1528 = vmatprep.subr.mxu0 0.0
    %1529 = vmatpush1.xpose.msra.mxu0 0.0
    %1530 = vmatprep.subr.mxu0 0.0
    %1531 = vmatpush1.xpose.msra.mxu0 0.0
    %1532 = vmatprep.subr.mxu0 0.0
    %1533 = vmatpush1.xpose.msra.mxu0 0.0
    %1534 = vmatprep.subr.mxu0 0.0
    %1535 = vmatpush1.xpose.msra.mxu0 0.0
    %1536 = vmatprep.subr.mxu0 0.0
    %1537 = vmatpush1.xpose.msra.mxu0 0.0
    %1538 = vmatprep.subr.mxu0 0.0
    %1539 = vmatpush1.xpose.msra.mxu0 0.0
    %1540 = vmatprep.subr.mxu0 0.0
    %1541 = vmatpush1.xpose.msra.mxu0 0.0
    %1542 = vmatprep.subr.mxu0 0.0
    %1543 = vmatpush1.xpose.msra.mxu0 0.0
    %1544 = vmatprep.subr.mxu0 0.0
    %1545 = vmatpush1.xpose.msra.mxu0 0.0
    %1546 = vmatprep.subr.mxu0 0.0
    %1547 = vmatpush1.xpose.msra.mxu0 0.0
    %1548 = vmatprep.subr.mxu0 0.0
    %1549 = vmatpush1.xpose.msra.mxu0 0.0
    %1550 = vmatprep.subr.mxu0 0.0
    %1551 = vmatpush1.xpose.msra.mxu0 0.0
    %1552 = vmatprep.subr.mxu0 0.0
    %1553 = vmatpush1.xpose.msra.mxu0 0.0
    %1554 = vmatprep.subr.mxu0 0.0
    %1555 = vmatpush1.xpose.msra.mxu0 0.0
    %1556 = vmatprep.subr.mxu0 0.0
    %1557 = vmatpush1.xpose.msra.mxu0 %v1524
    %1558 = vmatprep.subr.mxu0 0.0
    %1559 = vmatpush2.xpose.msra.mxu0 0.0
    %1560 = vmatprep.subr.mxu0 0.0
    %1561 = vmatpush2.xpose.msra.mxu0 0.0
    %1562 = vmatprep.subr.mxu0 0.0
    %1563 = vmatpush2.xpose.msra.mxu0 0.0
    %1564 = vmatprep.subr.mxu0 0.0
    %1565 = vmatpush2.xpose.msra.mxu0 0.0
    %1566 = vmatprep.subr.mxu0 0.0
    %1567 = vmatpush2.xpose.msra.mxu0 0.0
    %1568 = vmatprep.subr.mxu0 0.0
    %1569 = vmatpush2.xpose.msra.mxu0 0.0
    %1570 = vmatprep.subr.mxu0 0.0
    %1571 = vmatpush2.xpose.msra.mxu0 0.0
    %1572 = vmatprep.subr.mxu0 0.0
    %1573 = vmatpush2.xpose.msra.mxu0 0.0
    %1574 = vmatprep.subr.mxu0 0.0
    %1575 = vmatpush2.xpose.msra.mxu0 0.0
    %1576 = vmatprep.subr.mxu0 0.0
    %1577 = vmatpush2.xpose.msra.mxu0 0.0
    %1578 = vmatprep.subr.mxu0 0.0
    %1579 = vmatpush2.xpose.msra.mxu0 0.0
    %1580 = vmatprep.subr.mxu0 0.0
    %1581 = vmatpush2.xpose.msra.mxu0 0.0
    %1582 = vmatprep.subr.mxu0 0.0
    %1583 = vmatpush2.xpose.msra.mxu0 0.0
    %1584 = vmatprep.subr.mxu0 0.0
    %1585 = vmatpush2.xpose.msra.mxu0 0.0
    %1586 = vmatprep.subr.mxu0 0.0
    %1587 = vmatpush2.xpose.msra.mxu0 0.0
    %1588 = vmatprep.subr.mxu0 0.0
    %1589 = vmatpush2.xpose.msra.mxu0 0.0
    %1590 = vmatprep.mubr.f32.mxu0 0.0
    %1591 = vmatmul.mubr.f32.gmra.mxu0 %v1522
    %v1592 = vpop.f32.mrf.mxu0
    %v1593 = vadd.f32 0.0, %v1592
    %v1594 = vpop.f32.mrf.mxu0
    %1595 = vdwg.mxu0
    %v1596 = vrot.slane %v1510, 7
    %1597 = vrot.lane.b32.xlu0 %v1510, 96
    %v1598 = vpop.permute.xlu0 %1597
    %v1599 = vsel %vm356, %v1596, 0
    %v1601 = vsel %vm356, %v1598, 0
    %1603 = vmatprep.subr.mxu0 0.0
    %1604 = vmatpush1.xpose.msra.mxu0 0.0
    %1605 = vmatprep.subr.mxu0 0.0
    %1606 = vmatpush1.xpose.msra.mxu0 0.0
    %1607 = vmatprep.subr.mxu0 0.0
    %1608 = vmatpush1.xpose.msra.mxu0 0.0
    %1609 = vmatprep.subr.mxu0 0.0
    %1610 = vmatpush1.xpose.msra.mxu0 0.0
    %1611 = vmatprep.subr.mxu0 0.0
    %1612 = vmatpush1.xpose.msra.mxu0 0.0
    %1613 = vmatprep.subr.mxu0 0.0
    %1614 = vmatpush1.xpose.msra.mxu0 0.0
    %1615 = vmatprep.subr.mxu0 0.0
    %1616 = vmatpush1.xpose.msra.mxu0 0.0
    %1617 = vmatprep.subr.mxu0 0.0
    %1618 = vmatpush1.xpose.msra.mxu0 0.0
    %1619 = vmatprep.subr.mxu0 0.0
    %1620 = vmatpush1.xpose.msra.mxu0 0.0
    %1621 = vmatprep.subr.mxu0 0.0
    %1622 = vmatpush1.xpose.msra.mxu0 0.0
    %1623 = vmatprep.subr.mxu0 0.0
    %1624 = vmatpush1.xpose.msra.mxu0 0.0
    %1625 = vmatprep.subr.mxu0 0.0
    %1626 = vmatpush1.xpose.msra.mxu0 0.0
    %1627 = vmatprep.subr.mxu0 0.0
    %1628 = vmatpush1.xpose.msra.mxu0 0.0
    %1629 = vmatprep.subr.mxu0 0.0
    %1630 = vmatpush1.xpose.msra.mxu0 0.0
    %1631 = vmatprep.subr.mxu0 0.0
    %1632 = vmatpush1.xpose.msra.mxu0 0.0
    %1633 = vmatprep.subr.mxu0 0.0
    %1634 = vmatpush1.xpose.msra.mxu0 %v1601
    %1635 = vmatprep.subr.mxu0 0.0
    %1636 = vmatpush2.xpose.msra.mxu0 0.0
    %1637 = vmatprep.subr.mxu0 0.0
    %1638 = vmatpush2.xpose.msra.mxu0 0.0
    %1639 = vmatprep.subr.mxu0 0.0
    %1640 = vmatpush2.xpose.msra.mxu0 0.0
    %1641 = vmatprep.subr.mxu0 0.0
    %1642 = vmatpush2.xpose.msra.mxu0 0.0
    %1643 = vmatprep.subr.mxu0 0.0
    %1644 = vmatpush2.xpose.msra.mxu0 0.0
    %1645 = vmatprep.subr.mxu0 0.0
    %1646 = vmatpush2.xpose.msra.mxu0 0.0
    %1647 = vmatprep.subr.mxu0 0.0
    %1648 = vmatpush2.xpose.msra.mxu0 0.0
    %1649 = vmatprep.subr.mxu0 0.0
    %1650 = vmatpush2.xpose.msra.mxu0 0.0
    %1651 = vmatprep.subr.mxu0 0.0
    %1652 = vmatpush2.xpose.msra.mxu0 0.0
    %1653 = vmatprep.subr.mxu0 0.0
    %1654 = vmatpush2.xpose.msra.mxu0 0.0
    %1655 = vmatprep.subr.mxu0 0.0
    %1656 = vmatpush2.xpose.msra.mxu0 0.0
    %1657 = vmatprep.subr.mxu0 0.0
    %1658 = vmatpush2.xpose.msra.mxu0 0.0
    %1659 = vmatprep.subr.mxu0 0.0
    %1660 = vmatpush2.xpose.msra.mxu0 0.0
    %1661 = vmatprep.subr.mxu0 0.0
    %1662 = vmatpush2.xpose.msra.mxu0 0.0
    %1663 = vmatprep.subr.mxu0 0.0
    %1664 = vmatpush2.xpose.msra.mxu0 0.0
    %1665 = vmatprep.subr.mxu0 0.0
    %1666 = vmatpush2.xpose.msra.mxu0 0.0
    %1667 = vmatprep.mubr.f32.mxu0 0.0
    %1668 = vmatmul.mubr.f32.gmra.mxu0 %v1599
    %v1669 = vpop.f32.mrf.mxu0
    %v1670 = vadd.f32 0.0, %v1669
    %v1671 = vpop.f32.mrf.mxu0
    %1672 = vdwg.mxu0
    %v1673 = vrot.slane %v1516, 7
    %1674 = vrot.lane.b32.xlu0 %v1516, 96
    %v1675 = vpop.permute.xlu0 %1674
    %v1676 = vsel %vm356, %v1673, 0
    %v1678 = vsel %vm356, %v1675, 0
    %1680 = vmatprep.subr.mxu0 0.0
    %1681 = vmatpush1.xpose.msra.mxu0 0.0
    %1682 = vmatprep.subr.mxu0 0.0
    %1683 = vmatpush1.xpose.msra.mxu0 0.0
    %1684 = vmatprep.subr.mxu0 0.0
    %1685 = vmatpush1.xpose.msra.mxu0 0.0
    %1686 = vmatprep.subr.mxu0 0.0
    %1687 = vmatpush1.xpose.msra.mxu0 0.0
    %1688 = vmatprep.subr.mxu0 0.0
    %1689 = vmatpush1.xpose.msra.mxu0 0.0
    %1690 = vmatprep.subr.mxu0 0.0
    %1691 = vmatpush1.xpose.msra.mxu0 0.0
    %1692 = vmatprep.subr.mxu0 0.0
    %1693 = vmatpush1.xpose.msra.mxu0 0.0
    %1694 = vmatprep.subr.mxu0 0.0
    %1695 = vmatpush1.xpose.msra.mxu0 0.0
    %1696 = vmatprep.subr.mxu0 0.0
    %1697 = vmatpush1.xpose.msra.mxu0 0.0
    %1698 = vmatprep.subr.mxu0 0.0
    %1699 = vmatpush1.xpose.msra.mxu0 0.0
    %1700 = vmatprep.subr.mxu0 0.0
    %1701 = vmatpush1.xpose.msra.mxu0 0.0
    %1702 = vmatprep.subr.mxu0 0.0
    %1703 = vmatpush1.xpose.msra.mxu0 0.0
    %1704 = vmatprep.subr.mxu0 0.0
    %1705 = vmatpush1.xpose.msra.mxu0 0.0
    %1706 = vmatprep.subr.mxu0 0.0
    %1707 = vmatpush1.xpose.msra.mxu0 0.0
    %1708 = vmatprep.subr.mxu0 0.0
    %1709 = vmatpush1.xpose.msra.mxu0 0.0
    %1710 = vmatprep.subr.mxu0 0.0
    %1711 = vmatpush1.xpose.msra.mxu0 %v1678
    %1712 = vmatprep.subr.mxu0 0.0
    %1713 = vmatpush2.xpose.msra.mxu0 0.0
    %1714 = vmatprep.subr.mxu0 0.0
    %1715 = vmatpush2.xpose.msra.mxu0 0.0
    %1716 = vmatprep.subr.mxu0 0.0
    %1717 = vmatpush2.xpose.msra.mxu0 0.0
    %1718 = vmatprep.subr.mxu0 0.0
    %1719 = vmatpush2.xpose.msra.mxu0 0.0
    %1720 = vmatprep.subr.mxu0 0.0
    %1721 = vmatpush2.xpose.msra.mxu0 0.0
    %1722 = vmatprep.subr.mxu0 0.0
    %1723 = vmatpush2.xpose.msra.mxu0 0.0
    %1724 = vmatprep.subr.mxu0 0.0
    %1725 = vmatpush2.xpose.msra.mxu0 0.0
    %1726 = vmatprep.subr.mxu0 0.0
    %1727 = vmatpush2.xpose.msra.mxu0 0.0
    %1728 = vmatprep.subr.mxu0 0.0
    %1729 = vmatpush2.xpose.msra.mxu0 0.0
    %1730 = vmatprep.subr.mxu0 0.0
    %1731 = vmatpush2.xpose.msra.mxu0 0.0
    %1732 = vmatprep.subr.mxu0 0.0
    %1733 = vmatpush2.xpose.msra.mxu0 0.0
    %1734 = vmatprep.subr.mxu0 0.0
    %1735 = vmatpush2.xpose.msra.mxu0 0.0
    %1736 = vmatprep.subr.mxu0 0.0
    %1737 = vmatpush2.xpose.msra.mxu0 0.0
    %1738 = vmatprep.subr.mxu0 0.0
    %1739 = vmatpush2.xpose.msra.mxu0 0.0
    %1740 = vmatprep.subr.mxu0 0.0
    %1741 = vmatpush2.xpose.msra.mxu0 0.0
    %1742 = vmatprep.subr.mxu0 0.0
    %1743 = vmatpush2.xpose.msra.mxu0 0.0
    %1744 = vmatprep.mubr.f32.mxu0 0.0
    %1745 = vmatmul.mubr.f32.gmra.mxu0 %v1676
    %v1746 = vpop.f32.mrf.mxu0
    %v1747 = vadd.f32 0.0, %v1746
    %v1748 = vpop.f32.mrf.mxu0
    %1749 = vdwg.mxu0
    %v1750 = vrot.slane %v1518, 7
    %1751 = vrot.lane.b32.xlu0 %v1518, 96
    %v1752 = vpop.permute.xlu0 %1751
    %v1753 = vsel %vm356, %v1750, 0
    %v1755 = vsel %vm356, %v1752, 0
    %1757 = vmatprep.subr.mxu0 0.0
    %1758 = vmatpush1.xpose.msra.mxu0 0.0
    %1759 = vmatprep.subr.mxu0 0.0
    %1760 = vmatpush1.xpose.msra.mxu0 0.0
    %1761 = vmatprep.subr.mxu0 0.0
    %1762 = vmatpush1.xpose.msra.mxu0 0.0
    %1763 = vmatprep.subr.mxu0 0.0
    %1764 = vmatpush1.xpose.msra.mxu0 0.0
    %1765 = vmatprep.subr.mxu0 0.0
    %1766 = vmatpush1.xpose.msra.mxu0 0.0
    %1767 = vmatprep.subr.mxu0 0.0
    %1768 = vmatpush1.xpose.msra.mxu0 0.0
    %1769 = vmatprep.subr.mxu0 0.0
    %1770 = vmatpush1.xpose.msra.mxu0 0.0
    %1771 = vmatprep.subr.mxu0 0.0
    %1772 = vmatpush1.xpose.msra.mxu0 0.0
    %1773 = vmatprep.subr.mxu0 0.0
    %1774 = vmatpush1.xpose.msra.mxu0 0.0
    %1775 = vmatprep.subr.mxu0 0.0
    %1776 = vmatpush1.xpose.msra.mxu0 0.0
    %1777 = vmatprep.subr.mxu0 0.0
    %1778 = vmatpush1.xpose.msra.mxu0 0.0
    %1779 = vmatprep.subr.mxu0 0.0
    %1780 = vmatpush1.xpose.msra.mxu0 0.0
    %1781 = vmatprep.subr.mxu0 0.0
    %1782 = vmatpush1.xpose.msra.mxu0 0.0
    %1783 = vmatprep.subr.mxu0 0.0
    %1784 = vmatpush1.xpose.msra.mxu0 0.0
    %1785 = vmatprep.subr.mxu0 0.0
    %1786 = vmatpush1.xpose.msra.mxu0 0.0
    %1787 = vmatprep.subr.mxu0 0.0
    %1788 = vmatpush1.xpose.msra.mxu0 %v1755
    %1789 = vmatprep.subr.mxu0 0.0
    %1790 = vmatpush2.xpose.msra.mxu0 0.0
    %1791 = vmatprep.subr.mxu0 0.0
    %1792 = vmatpush2.xpose.msra.mxu0 0.0
    %1793 = vmatprep.subr.mxu0 0.0
    %1794 = vmatpush2.xpose.msra.mxu0 0.0
    %1795 = vmatprep.subr.mxu0 0.0
    %1796 = vmatpush2.xpose.msra.mxu0 0.0
    %1797 = vmatprep.subr.mxu0 0.0
    %1798 = vmatpush2.xpose.msra.mxu0 0.0
    %1799 = vmatprep.subr.mxu0 0.0
    %1800 = vmatpush2.xpose.msra.mxu0 0.0
    %1801 = vmatprep.subr.mxu0 0.0
    %1802 = vmatpush2.xpose.msra.mxu0 0.0
    %1803 = vmatprep.subr.mxu0 0.0
    %1804 = vmatpush2.xpose.msra.mxu0 0.0
    %1805 = vmatprep.subr.mxu0 0.0
    %1806 = vmatpush2.xpose.msra.mxu0 0.0
    %1807 = vmatprep.subr.mxu0 0.0
    %1808 = vmatpush2.xpose.msra.mxu0 0.0
    %1809 = vmatprep.subr.mxu0 0.0
    %1810 = vmatpush2.xpose.msra.mxu0 0.0
    %1811 = vmatprep.subr.mxu0 0.0
    %1812 = vmatpush2.xpose.msra.mxu0 0.0
    %1813 = vmatprep.subr.mxu0 0.0
    %1814 = vmatpush2.xpose.msra.mxu0 0.0
    %1815 = vmatprep.subr.mxu0 0.0
    %1816 = vmatpush2.xpose.msra.mxu0 0.0
    %1817 = vmatprep.subr.mxu0 0.0
    %1818 = vmatpush2.xpose.msra.mxu0 0.0
    %1819 = vmatprep.subr.mxu0 0.0
    %1820 = vmatpush2.xpose.msra.mxu0 0.0
    %1821 = vmatprep.mubr.f32.mxu0 0.0
    %1822 = vmatmul.mubr.f32.gmra.mxu0 %v1753
    %v1823 = vpop.f32.mrf.mxu0
    %v1824 = vadd.f32 0.0, %v1823
    %v1825 = vpop.f32.mrf.mxu0
    %1826 = vdwg.mxu0
    %v1827 = vmul.f32 %v1593, 0.25
    %v1828 = vmul.f32 %v1670, 0.25
    %v1829 = vmul.f32 %v1747, 0.25
    %v1830 = vmul.f32 %v1824, 0.25
    %v1831 = vadd.f32 %v1827, %v246
    %v1832 = vadd.f32 %v1828, %v253
    %v1833 = vadd.f32 %v1829, %v246
    %v1834 = vadd.f32 %v1830, %v253
    %vm1835 = vcmask 57344
    %v1836 = vsel %vm1835, %v1831, -inf
    %1837 = vmax.xlane.f32.xlu0 %v1836
    %v1838 = vpop.xlane.xlu0 %1837
    %v1839 = vsel %vm1835, %v1832, -inf
    %1840 = vmax.xlane.f32.xlu0 %v1839
    %v1841 = vpop.xlane.xlu0 %1840
    %v1842 = vsel %vm1835, %v1833, -inf
    %1843 = vmax.xlane.f32.xlu0 %v1842
    %v1844 = vpop.xlane.xlu0 %1843
    %v1845 = vsel %vm1835, %v1834, -inf
    %1846 = vmax.xlane.f32.xlu0 %v1845
    %v1847 = vpop.xlane.xlu0 %1846
    %v1848 = vsub.f32 %v1831, %v1838
    %v1849 = vsub.f32 %v1832, %v1841
    %v1850 = vsub.f32 %v1833, %v1844
    %v1851 = vsub.f32 %v1834, %v1847
    %v1852 = vmul.f32 %v1848, 1.442695
    %v1853 = vpow.pop %v1852
    %v1854 = vmul.f32 %v1849, 1.442695
    %v1855 = vpow.pop %v1854
    %v1856 = vmul.f32 %v1850, 1.442695
    %v1857 = vpow.pop %v1856
    %v1858 = vmul.f32 %v1851, 1.442695
    %v1859 = vpow.pop %v1858
    %v1860 = vsel %vm1835, %v1853, 0.0
    %1861 = vadd.xlane.f32.xlu0 %v1860
    %v1862 = vpop.xlane.xlu0 %1861
    %v1863 = vsel %vm1835, %v1855, 0.0
    %1864 = vadd.xlane.f32.xlu0 %v1863
    %v1865 = vpop.xlane.xlu0 %1864
    %v1866 = vsel %vm1835, %v1857, 0.0
    %1867 = vadd.xlane.f32.xlu0 %v1866
    %v1868 = vpop.xlane.xlu0 %1867
    %v1869 = vsel %vm1835, %v1859, 0.0
    %1870 = vadd.xlane.f32.xlu0 %v1869
    %v1871 = vpop.xlane.xlu0 %1870
    %v1872 = vrcp.pop %v1862
    %v1873 = vrcp.pop %v1865
    %v1874 = vrcp.pop %v1868
    %v1875 = vrcp.pop %v1871
    %v1876 = vmul.f32 %v1853, %v1872
    %v1877 = vmul.f32 %v1855, %v1873
    %v1878 = vmul.f32 %v1857, %v1874
    %v1879 = vmul.f32 %v1859, %v1875
    %1880 = vrot.lane.b32.xlu0 %v1505, 64
    %v1881 = vpop.permute.xlu0 %1880
    %v1884 = vsel %vm677, %v1876, 0
    %1886 = vmatprep.subr.mxu0 0.0
    %1887 = vmatpush1.msra.mxu0 0.0
    %1888 = vmatprep.subr.mxu0 0.0
    %1889 = vmatpush1.msra.mxu0 0.0
    %1890 = vmatprep.subr.mxu0 0.0
    %1891 = vmatpush1.msra.mxu0 0.0
    %1892 = vmatprep.subr.mxu0 0.0
    %1893 = vmatpush1.msra.mxu0 0.0
    %1894 = vmatprep.subr.mxu0 0.0
    %1895 = vmatpush1.msra.mxu0 0.0
    %1896 = vmatprep.subr.mxu0 0.0
    %1897 = vmatpush1.msra.mxu0 0.0
    %1898 = vmatprep.subr.mxu0 0.0
    %1899 = vmatpush1.msra.mxu0 0.0
    %1900 = vmatprep.subr.mxu0 0.0
    %1901 = vmatpush1.msra.mxu0 0.0
    %1902 = vmatprep.subr.mxu0 0.0
    %1903 = vmatpush1.msra.mxu0 0.0
    %1904 = vmatprep.subr.mxu0 0.0
    %1905 = vmatpush1.msra.mxu0 0.0
    %1906 = vmatprep.subr.mxu0 0.0
    %1907 = vmatpush1.msra.mxu0 0.0
    %1908 = vmatprep.subr.mxu0 0.0
    %1909 = vmatpush1.msra.mxu0 0.0
    %1910 = vmatprep.subr.mxu0 0.0
    %1911 = vmatpush1.msra.mxu0 0.0
    %1912 = vmatprep.subr.mxu0 0.0
    %1913 = vmatpush1.msra.mxu0 0.0
    %1914 = vmatprep.subr.mxu0 0.0
    %1915 = vmatpush1.msra.mxu0 0.0
    %1916 = vmatprep.subr.mxu0 0.0
    %1917 = vmatpush1.msra.mxu0 %v1881
    %1918 = vmatprep.subr.mxu0 0.0
    %1919 = vmatpush2.msra.mxu0 0.0
    %1920 = vmatprep.subr.mxu0 0.0
    %1921 = vmatpush2.msra.mxu0 0.0
    %1922 = vmatprep.subr.mxu0 0.0
    %1923 = vmatpush2.msra.mxu0 0.0
    %1924 = vmatprep.subr.mxu0 0.0
    %1925 = vmatpush2.msra.mxu0 0.0
    %1926 = vmatprep.subr.mxu0 0.0
    %1927 = vmatpush2.msra.mxu0 0.0
    %1928 = vmatprep.subr.mxu0 0.0
    %1929 = vmatpush2.msra.mxu0 0.0
    %1930 = vmatprep.subr.mxu0 0.0
    %1931 = vmatpush2.msra.mxu0 0.0
    %1932 = vmatprep.subr.mxu0 0.0
    %1933 = vmatpush2.msra.mxu0 0.0
    %1934 = vmatprep.subr.mxu0 0.0
    %1935 = vmatpush2.msra.mxu0 0.0
    %1936 = vmatprep.subr.mxu0 0.0
    %1937 = vmatpush2.msra.mxu0 0.0
    %1938 = vmatprep.subr.mxu0 0.0
    %1939 = vmatpush2.msra.mxu0 0.0
    %1940 = vmatprep.subr.mxu0 0.0
    %1941 = vmatpush2.msra.mxu0 0.0
    %1942 = vmatprep.subr.mxu0 0.0
    %1943 = vmatpush2.msra.mxu0 0.0
    %1944 = vmatprep.subr.mxu0 0.0
    %1945 = vmatpush2.msra.mxu0 0.0
    %1946 = vmatprep.subr.mxu0 0.0
    %1947 = vmatpush2.msra.mxu0 0.0
    %1948 = vmatprep.subr.mxu0 0.0
    %1949 = vmatpush2.msra.mxu0 0.0
    %1950 = vmatprep.mubr.f32.mxu0 0.0
    %1951 = vmatmul.mubr.f32.gmra.mxu0 %v1884
    %v1952 = vpop.f32.mrf.mxu0
    %v1953 = vadd.f32 0.0, %v1952
    %v1954 = vpop.f32.mrf.mxu0
    %1955 = vdwg.mxu0
    %1956 = vrot.lane.b32.xlu0 %v1510, 64
    %v1957 = vpop.permute.xlu0 %1956
    %v1960 = vsel %vm677, %v1877, 0
    %1962 = vmatprep.subr.mxu0 0.0
    %1963 = vmatpush1.msra.mxu0 0.0
    %1964 = vmatprep.subr.mxu0 0.0
    %1965 = vmatpush1.msra.mxu0 0.0
    %1966 = vmatprep.subr.mxu0 0.0
    %1967 = vmatpush1.msra.mxu0 0.0
    %1968 = vmatprep.subr.mxu0 0.0
    %1969 = vmatpush1.msra.mxu0 0.0
    %1970 = vmatprep.subr.mxu0 0.0
    %1971 = vmatpush1.msra.mxu0 0.0
    %1972 = vmatprep.subr.mxu0 0.0
    %1973 = vmatpush1.msra.mxu0 0.0
    %1974 = vmatprep.subr.mxu0 0.0
    %1975 = vmatpush1.msra.mxu0 0.0
    %1976 = vmatprep.subr.mxu0 0.0
    %1977 = vmatpush1.msra.mxu0 0.0
    %1978 = vmatprep.subr.mxu0 0.0
    %1979 = vmatpush1.msra.mxu0 0.0
    %1980 = vmatprep.subr.mxu0 0.0
    %1981 = vmatpush1.msra.mxu0 0.0
    %1982 = vmatprep.subr.mxu0 0.0
    %1983 = vmatpush1.msra.mxu0 0.0
    %1984 = vmatprep.subr.mxu0 0.0
    %1985 = vmatpush1.msra.mxu0 0.0
    %1986 = vmatprep.subr.mxu0 0.0
    %1987 = vmatpush1.msra.mxu0 0.0
    %1988 = vmatprep.subr.mxu0 0.0
    %1989 = vmatpush1.msra.mxu0 0.0
    %1990 = vmatprep.subr.mxu0 0.0
    %1991 = vmatpush1.msra.mxu0 0.0
    %1992 = vmatprep.subr.mxu0 0.0
    %1993 = vmatpush1.msra.mxu0 %v1957
    %1994 = vmatprep.subr.mxu0 0.0
    %1995 = vmatpush2.msra.mxu0 0.0
    %1996 = vmatprep.subr.mxu0 0.0
    %1997 = vmatpush2.msra.mxu0 0.0
    %1998 = vmatprep.subr.mxu0 0.0
    %1999 = vmatpush2.msra.mxu0 0.0
    %2000 = vmatprep.subr.mxu0 0.0
    %2001 = vmatpush2.msra.mxu0 0.0
    %2002 = vmatprep.subr.mxu0 0.0
    %2003 = vmatpush2.msra.mxu0 0.0
    %2004 = vmatprep.subr.mxu0 0.0
    %2005 = vmatpush2.msra.mxu0 0.0
    %2006 = vmatprep.subr.mxu0 0.0
    %2007 = vmatpush2.msra.mxu0 0.0
    %2008 = vmatprep.subr.mxu0 0.0
    %2009 = vmatpush2.msra.mxu0 0.0
    %2010 = vmatprep.subr.mxu0 0.0
    %2011 = vmatpush2.msra.mxu0 0.0
    %2012 = vmatprep.subr.mxu0 0.0
    %2013 = vmatpush2.msra.mxu0 0.0
    %2014 = vmatprep.subr.mxu0 0.0
    %2015 = vmatpush2.msra.mxu0 0.0
    %2016 = vmatprep.subr.mxu0 0.0
    %2017 = vmatpush2.msra.mxu0 0.0
    %2018 = vmatprep.subr.mxu0 0.0
    %2019 = vmatpush2.msra.mxu0 0.0
    %2020 = vmatprep.subr.mxu0 0.0
    %2021 = vmatpush2.msra.mxu0 0.0
    %2022 = vmatprep.subr.mxu0 0.0
    %2023 = vmatpush2.msra.mxu0 0.0
    %2024 = vmatprep.subr.mxu0 0.0
    %2025 = vmatpush2.msra.mxu0 0.0
    %2026 = vmatprep.mubr.f32.mxu0 0.0
    %2027 = vmatmul.mubr.f32.gmra.mxu0 %v1960
    %v2028 = vpop.f32.mrf.mxu0
    %v2029 = vadd.f32 0.0, %v2028
    %v2030 = vpop.f32.mrf.mxu0
    %2031 = vdwg.mxu0
    %2032 = vrot.lane.b32.xlu0 %v1516, 64
    %v2033 = vpop.permute.xlu0 %2032
    %v2036 = vsel %vm677, %v1878, 0
    %2038 = vmatprep.subr.mxu0 0.0
    %2039 = vmatpush1.msra.mxu0 0.0
    %2040 = vmatprep.subr.mxu0 0.0
    %2041 = vmatpush1.msra.mxu0 0.0
    %2042 = vmatprep.subr.mxu0 0.0
    %2043 = vmatpush1.msra.mxu0 0.0
    %2044 = vmatprep.subr.mxu0 0.0
    %2045 = vmatpush1.msra.mxu0 0.0
    %2046 = vmatprep.subr.mxu0 0.0
    %2047 = vmatpush1.msra.mxu0 0.0
    %2048 = vmatprep.subr.mxu0 0.0
    %2049 = vmatpush1.msra.mxu0 0.0
    %2050 = vmatprep.subr.mxu0 0.0
    %2051 = vmatpush1.msra.mxu0 0.0
    %2052 = vmatprep.subr.mxu0 0.0
    %2053 = vmatpush1.msra.mxu0 0.0
    %2054 = vmatprep.subr.mxu0 0.0
    %2055 = vmatpush1.msra.mxu0 0.0
    %2056 = vmatprep.subr.mxu0 0.0
    %2057 = vmatpush1.msra.mxu0 0.0
    %2058 = vmatprep.subr.mxu0 0.0
    %2059 = vmatpush1.msra.mxu0 0.0
    %2060 = vmatprep.subr.mxu0 0.0
    %2061 = vmatpush1.msra.mxu0 0.0
    %2062 = vmatprep.subr.mxu0 0.0
    %2063 = vmatpush1.msra.mxu0 0.0
    %2064 = vmatprep.subr.mxu0 0.0
    %2065 = vmatpush1.msra.mxu0 0.0
    %2066 = vmatprep.subr.mxu0 0.0
    %2067 = vmatpush1.msra.mxu0 0.0
    %2068 = vmatprep.subr.mxu0 0.0
    %2069 = vmatpush1.msra.mxu0 %v2033
    %2070 = vmatprep.subr.mxu0 0.0
    %2071 = vmatpush2.msra.mxu0 0.0
    %2072 = vmatprep.subr.mxu0 0.0
    %2073 = vmatpush2.msra.mxu0 0.0
    %2074 = vmatprep.subr.mxu0 0.0
    %2075 = vmatpush2.msra.mxu0 0.0
    %2076 = vmatprep.subr.mxu0 0.0
    %2077 = vmatpush2.msra.mxu0 0.0
    %2078 = vmatprep.subr.mxu0 0.0
    %2079 = vmatpush2.msra.mxu0 0.0
    %2080 = vmatprep.subr.mxu0 0.0
    %2081 = vmatpush2.msra.mxu0 0.0
    %2082 = vmatprep.subr.mxu0 0.0
    %2083 = vmatpush2.msra.mxu0 0.0
    %2084 = vmatprep.subr.mxu0 0.0
    %2085 = vmatpush2.msra.mxu0 0.0
    %2086 = vmatprep.subr.mxu0 0.0
    %2087 = vmatpush2.msra.mxu0 0.0
    %2088 = vmatprep.subr.mxu0 0.0
    %2089 = vmatpush2.msra.mxu0 0.0
    %2090 = vmatprep.subr.mxu0 0.0
    %2091 = vmatpush2.msra.mxu0 0.0
    %2092 = vmatprep.subr.mxu0 0.0
    %2093 = vmatpush2.msra.mxu0 0.0
    %2094 = vmatprep.subr.mxu0 0.0
    %2095 = vmatpush2.msra.mxu0 0.0
    %2096 = vmatprep.subr.mxu0 0.0
    %2097 = vmatpush2.msra.mxu0 0.0
    %2098 = vmatprep.subr.mxu0 0.0
    %2099 = vmatpush2.msra.mxu0 0.0
    %2100 = vmatprep.subr.mxu0 0.0
    %2101 = vmatpush2.msra.mxu0 0.0
    %2102 = vmatprep.mubr.f32.mxu0 0.0
    %2103 = vmatmul.mubr.f32.gmra.mxu0 %v2036
    %v2104 = vpop.f32.mrf.mxu0
    %v2105 = vadd.f32 0.0, %v2104
    %v2106 = vpop.f32.mrf.mxu0
    %2107 = vdwg.mxu0
    %2108 = vrot.lane.b32.xlu0 %v1518, 64
    %v2109 = vpop.permute.xlu0 %2108
    %v2112 = vsel %vm677, %v1879, 0
    %2114 = vmatprep.subr.mxu0 0.0
    %2115 = vmatpush1.msra.mxu0 0.0
    %2116 = vmatprep.subr.mxu0 0.0
    %2117 = vmatpush1.msra.mxu0 0.0
    %2118 = vmatprep.subr.mxu0 0.0
    %2119 = vmatpush1.msra.mxu0 0.0
    %2120 = vmatprep.subr.mxu0 0.0
    %2121 = vmatpush1.msra.mxu0 0.0
    %2122 = vmatprep.subr.mxu0 0.0
    %2123 = vmatpush1.msra.mxu0 0.0
    %2124 = vmatprep.subr.mxu0 0.0
    %2125 = vmatpush1.msra.mxu0 0.0
    %2126 = vmatprep.subr.mxu0 0.0
    %2127 = vmatpush1.msra.mxu0 0.0
    %2128 = vmatprep.subr.mxu0 0.0
    %2129 = vmatpush1.msra.mxu0 0.0
    %2130 = vmatprep.subr.mxu0 0.0
    %2131 = vmatpush1.msra.mxu0 0.0
    %2132 = vmatprep.subr.mxu0 0.0
    %2133 = vmatpush1.msra.mxu0 0.0
    %2134 = vmatprep.subr.mxu0 0.0
    %2135 = vmatpush1.msra.mxu0 0.0
    %2136 = vmatprep.subr.mxu0 0.0
    %2137 = vmatpush1.msra.mxu0 0.0
    %2138 = vmatprep.subr.mxu0 0.0
    %2139 = vmatpush1.msra.mxu0 0.0
    %2140 = vmatprep.subr.mxu0 0.0
    %2141 = vmatpush1.msra.mxu0 0.0
    %2142 = vmatprep.subr.mxu0 0.0
    %2143 = vmatpush1.msra.mxu0 0.0
    %2144 = vmatprep.subr.mxu0 0.0
    %2145 = vmatpush1.msra.mxu0 %v2109
    %2146 = vmatprep.subr.mxu0 0.0
    %2147 = vmatpush2.msra.mxu0 0.0
    %2148 = vmatprep.subr.mxu0 0.0
    %2149 = vmatpush2.msra.mxu0 0.0
    %2150 = vmatprep.subr.mxu0 0.0
    %2151 = vmatpush2.msra.mxu0 0.0
    %2152 = vmatprep.subr.mxu0 0.0
    %2153 = vmatpush2.msra.mxu0 0.0
    %2154 = vmatprep.subr.mxu0 0.0
    %2155 = vmatpush2.msra.mxu0 0.0
    %2156 = vmatprep.subr.mxu0 0.0
    %2157 = vmatpush2.msra.mxu0 0.0
    %2158 = vmatprep.subr.mxu0 0.0
    %2159 = vmatpush2.msra.mxu0 0.0
    %2160 = vmatprep.subr.mxu0 0.0
    %2161 = vmatpush2.msra.mxu0 0.0
    %2162 = vmatprep.subr.mxu0 0.0
    %2163 = vmatpush2.msra.mxu0 0.0
    %2164 = vmatprep.subr.mxu0 0.0
    %2165 = vmatpush2.msra.mxu0 0.0
    %2166 = vmatprep.subr.mxu0 0.0
    %2167 = vmatpush2.msra.mxu0 0.0
    %2168 = vmatprep.subr.mxu0 0.0
    %2169 = vmatpush2.msra.mxu0 0.0
    %2170 = vmatprep.subr.mxu0 0.0
    %2171 = vmatpush2.msra.mxu0 0.0
    %2172 = vmatprep.subr.mxu0 0.0
    %2173 = vmatpush2.msra.mxu0 0.0
    %2174 = vmatprep.subr.mxu0 0.0
    %2175 = vmatpush2.msra.mxu0 0.0
    %2176 = vmatprep.subr.mxu0 0.0
    %2177 = vmatpush2.msra.mxu0 0.0
    %2178 = vmatprep.mubr.f32.mxu0 0.0
    %2179 = vmatmul.mubr.f32.gmra.mxu0 %v2112
    %v2180 = vpop.f32.mrf.mxu0
    %v2181 = vadd.f32 0.0, %v2180
    %v2182 = vpop.f32.mrf.mxu0
    %2183 = vdwg.mxu0
    %v2186 = vrot.slane %v2029, 7
    %vm2187 = vcmask 1041409
    %v2188 = vsel %vm2187, %v2186, %v1953
    %v2192 = vrot.slane %v2181, 7
    %v2193 = vsel %vm2187, %v2192, %v2105
    %2194 = vrot.lane.b32.xlu0 %v2193, 16
    %v2195 = vpop.permute.xlu0 %2194
    %v2197 = vsel %vm356, %v2188, %v2195
    %s2198 = scalar_lea.vmem %s9, 32
    %v2199 = vld [vmem:[%s2198] sm:$0xff]
    %v2200 = vld [vmem:[%s2198 + $0x8] sm:$0xff]
    %v2201 = vld [vmem:[%s2198 + $0x10] sm:$0xff]
    %v2202 = vld [vmem:[%s2198 + $0x18] sm:$0xff]
    %s2203 = scalar_lea.vmem %s10, 1
    %v2204 = vld [vmem:[%s2203] sm:$0x1]
    %v2206 = vlaneseq
    %v2207 = vshrl.u32 %v2206, 7
    %v2208 = vsub.s32 0, %v2207
    %v2209 = vrot.slane %v2204, %v2208
    %v2212 = vsel %vm184, %v2197, 0
    %2214 = vmatprep.subr.mxu0 0.0
    %2215 = vmatpush1.msra.mxu0 0.0
    %2216 = vmatprep.subr.mxu0 0.0
    %2217 = vmatpush1.msra.mxu0 0.0
    %2218 = vmatprep.subr.mxu0 0.0
    %2219 = vmatpush1.msra.mxu0 0.0
    %2220 = vmatprep.subr.mxu0 0.0
    %2221 = vmatpush1.msra.mxu0 0.0
    %2222 = vmatprep.subr.mxu0 0.0
    %2223 = vmatpush1.msra.mxu0 0.0
    %2224 = vmatprep.subr.mxu0 0.0
    %2225 = vmatpush1.msra.mxu0 0.0
    %2226 = vmatprep.subr.mxu0 0.0
    %2227 = vmatpush1.msra.mxu0 0.0
    %2228 = vmatprep.subr.mxu0 0.0
    %2229 = vmatpush1.msra.mxu0 0.0
    %2230 = vmatprep.subr.mxu0 0.0
    %2231 = vmatpush1.msra.mxu0 0.0
    %2232 = vmatprep.subr.mxu0 0.0
    %2233 = vmatpush1.msra.mxu0 0.0
    %2234 = vmatprep.subr.mxu0 0.0
    %2235 = vmatpush1.msra.mxu0 0.0
    %2236 = vmatprep.subr.mxu0 0.0
    %2237 = vmatpush1.msra.mxu0 0.0
    %2238 = vmatprep.subr.mxu0 0.0
    %2239 = vmatpush1.msra.mxu0 %v2202
    %2240 = vmatprep.subr.mxu0 0.0
    %2241 = vmatpush1.msra.mxu0 %v2201
    %2242 = vmatprep.subr.mxu0 0.0
    %2243 = vmatpush1.msra.mxu0 %v2200
    %2244 = vmatprep.subr.mxu0 0.0
    %2245 = vmatpush1.msra.mxu0 %v2199
    %2246 = vmatprep.subr.mxu0 0.0
    %2247 = vmatpush2.msra.mxu0 0.0
    %2248 = vmatprep.subr.mxu0 0.0
    %2249 = vmatpush2.msra.mxu0 0.0
    %2250 = vmatprep.subr.mxu0 0.0
    %2251 = vmatpush2.msra.mxu0 0.0
    %2252 = vmatprep.subr.mxu0 0.0
    %2253 = vmatpush2.msra.mxu0 0.0
    %2254 = vmatprep.subr.mxu0 0.0
    %2255 = vmatpush2.msra.mxu0 0.0
    %2256 = vmatprep.subr.mxu0 0.0
    %2257 = vmatpush2.msra.mxu0 0.0
    %2258 = vmatprep.subr.mxu0 0.0
    %2259 = vmatpush2.msra.mxu0 0.0
    %2260 = vmatprep.subr.mxu0 0.0
    %2261 = vmatpush2.msra.mxu0 0.0
    %2262 = vmatprep.subr.mxu0 0.0
    %2263 = vmatpush2.msra.mxu0 0.0
    %2264 = vmatprep.subr.mxu0 0.0
    %2265 = vmatpush2.msra.mxu0 0.0
    %2266 = vmatprep.subr.mxu0 0.0
    %2267 = vmatpush2.msra.mxu0 0.0
    %2268 = vmatprep.subr.mxu0 0.0
    %2269 = vmatpush2.msra.mxu0 0.0
    %2270 = vmatprep.subr.mxu0 0.0
    %2271 = vmatpush2.msra.mxu0 0.0
    %2272 = vmatprep.subr.mxu0 0.0
    %2273 = vmatpush2.msra.mxu0 0.0
    %2274 = vmatprep.subr.mxu0 0.0
    %2275 = vmatpush2.msra.mxu0 0.0
    %2276 = vmatprep.subr.mxu0 0.0
    %2277 = vmatpush2.msra.mxu0 0.0
    %2278 = vmatprep.mubr.f32.mxu0 0.0
    %2279 = vmatmul.mubr.f32.gmra.mxu0 %v2212
    %v2280 = vpop.f32.mrf.mxu0
    %v2281 = vadd.f32 %v2209, %v2280
    %v2282 = vpop.f32.mrf.mxu0
    %2283 = vdwg.mxu0
    %v2284 = vrot.slane %v1417, 7
    %v2285 = vrot.slane %v1418, 6
    %v2286 = vsel %vm2187, %v2285, %v2284
    %v2288 = vadd.f32 %v2281, %v2286
    %s2289 = scalar_lea.vmem %s11, 1
    %v2290 = vld [vmem:[%s2289] sm:$0x1]
    %s2291 = scalar_lea.vmem %s12, 1
    %v2292 = vld [vmem:[%s2291] sm:$0x1]
    %vm2293 = vcmask 254976
    %v2294 = vsel %vm2293, %v2288, 0.0
    %2295 = vadd.xlane.f32.xlu0 %v2294
    %v2296 = vpop.xlane.xlu0 %2295
    %v2297 = vmul.f32 %v2296, %v191
    %v2298 = vsub.f32 %v2288, %v2297
    %v2299 = vmul.f32 %v2298, %v2298
    %v2300 = vsel %vm2293, %v2299, 0.0
    %2301 = vadd.xlane.f32.xlu0 %v2300
    %v2302 = vpop.xlane.xlu0 %2301
    %v2303 = vmul.f32 %v2302, %v191
    %v2304 = vadd.f32 %v2303, 1e-12
    %v2305 = vrsqrt.pop %v2304
    %v2306 = vmul.f32 %v2298, %v2305
    %v2308 = vlaneseq
    %v2309 = vshrl.u32 %v2308, 7
    %v2310 = vsub.s32 0, %v2309
    %v2311 = vrot.slane %v2290, %v2310
    %v2313 = vmul.f32 %v2306, %v2311
    %v2315 = vlaneseq
    %v2316 = vshrl.u32 %v2315, 7
    %v2317 = vsub.s32 0, %v2316
    %v2318 = vrot.slane %v2292, %v2317
    %v2320 = vadd.f32 %v2313, %v2318
    %s2321 = scalar_lea.vmem %s13, 32
    %v2322 = vld [vmem:[%s2321] sm:$0xff]
    %v2323 = vld [vmem:[%s2321 + $0x8] sm:$0xff]
    %v2324 = vld [vmem:[%s2321 + $0x10] sm:$0xff]
    %v2325 = vld [vmem:[%s2321 + $0x18] sm:$0xff]
    %s2326 = scalar_lea.vmem %s14, 1
    %v2327 = vld [vmem:[%s2326] sm:$0x1]
    %v2329 = vlaneseq
    %v2330 = vshrl.u32 %v2329, 7
    %v2331 = vsub.s32 0, %v2330
    %v2332 = vrot.slane %v2327, %v2331
    %v2335 = vsel %vm184, %v2320, 0
    %2337 = vmatprep.subr.mxu0 0.0
    %2338 = vmatpush1.msra.mxu0 0.0
    %2339 = vmatprep.subr.mxu0 0.0
    %2340 = vmatpush1.msra.mxu0 0.0
    %2341 = vmatprep.subr.mxu0 0.0
    %2342 = vmatpush1.msra.mxu0 0.0
    %2343 = vmatprep.subr.mxu0 0.0
    %2344 = vmatpush1.msra.mxu0 0.0
    %2345 = vmatprep.subr.mxu0 0.0
    %2346 = vmatpush1.msra.mxu0 0.0
    %2347 = vmatprep.subr.mxu0 0.0
    %2348 = vmatpush1.msra.mxu0 0.0
    %2349 = vmatprep.subr.mxu0 0.0
    %2350 = vmatpush1.msra.mxu0 0.0
    %2351 = vmatprep.subr.mxu0 0.0
    %2352 = vmatpush1.msra.mxu0 0.0
    %2353 = vmatprep.subr.mxu0 0.0
    %2354 = vmatpush1.msra.mxu0 0.0
    %2355 = vmatprep.subr.mxu0 0.0
    %2356 = vmatpush1.msra.mxu0 0.0
    %2357 = vmatprep.subr.mxu0 0.0
    %2358 = vmatpush1.msra.mxu0 0.0
    %2359 = vmatprep.subr.mxu0 0.0
    %2360 = vmatpush1.msra.mxu0 0.0
    %2361 = vmatprep.subr.mxu0 0.0
    %2362 = vmatpush1.msra.mxu0 %v2325
    %2363 = vmatprep.subr.mxu0 0.0
    %2364 = vmatpush1.msra.mxu0 %v2324
    %2365 = vmatprep.subr.mxu0 0.0
    %2366 = vmatpush1.msra.mxu0 %v2323
    %2367 = vmatprep.subr.mxu0 0.0
    %2368 = vmatpush1.msra.mxu0 %v2322
    %2369 = vmatprep.subr.mxu0 0.0
    %2370 = vmatpush2.msra.mxu0 0.0
    %2371 = vmatprep.subr.mxu0 0.0
    %2372 = vmatpush2.msra.mxu0 0.0
    %2373 = vmatprep.subr.mxu0 0.0
    %2374 = vmatpush2.msra.mxu0 0.0
    %2375 = vmatprep.subr.mxu0 0.0
    %2376 = vmatpush2.msra.mxu0 0.0
    %2377 = vmatprep.subr.mxu0 0.0
    %2378 = vmatpush2.msra.mxu0 0.0
    %2379 = vmatprep.subr.mxu0 0.0
    %2380 = vmatpush2.msra.mxu0 0.0
    %2381 = vmatprep.subr.mxu0 0.0
    %2382 = vmatpush2.msra.mxu0 0.0
    %2383 = vmatprep.subr.mxu0 0.0
    %2384 = vmatpush2.msra.mxu0 0.0
    %2385 = vmatprep.subr.mxu0 0.0
    %2386 = vmatpush2.msra.mxu0 0.0
    %2387 = vmatprep.subr.mxu0 0.0
    %2388 = vmatpush2.msra.mxu0 0.0
    %2389 = vmatprep.subr.mxu0 0.0
    %2390 = vmatpush2.msra.mxu0 0.0
    %2391 = vmatprep.subr.mxu0 0.0
    %2392 = vmatpush2.msra.mxu0 0.0
    %2393 = vmatprep.subr.mxu0 0.0
    %2394 = vmatpush2.msra.mxu0 0.0
    %2395 = vmatprep.subr.mxu0 0.0
    %2396 = vmatpush2.msra.mxu0 0.0
    %2397 = vmatprep.subr.mxu0 0.0
    %2398 = vmatpush2.msra.mxu0 0.0
    %2399 = vmatprep.subr.mxu0 0.0
    %2400 = vmatpush2.msra.mxu0 0.0
    %2401 = vmatprep.mubr.f32.mxu0 0.0
    %2402 = vmatmul.mubr.f32.gmra.mxu0 %v2335
    %v2403 = vpop.f32.mrf.mxu0
    %v2404 = vadd.f32 %v2332, %v2403
    %v2405 = vpop.f32.mrf.mxu0
    %2406 = vdwg.mxu0
    %v2407 = vmul.f32 %v2404, 0.5
    %v2408 = vmul.f32 %v2404, 0.70710677
    %v2409 = verf.f32.pop %v2408
    %v2410 = vadd.f32 %v2409, 1.0
    %v2411 = vmul.f32 %v2407, %v2410
    %s2412 = scalar_lea.vmem %s15, 64
    %v2413 = vld [vmem:[%s2412] sm:$0xff]
    %v2414 = vld [vmem:[%s2412 + $0x8] sm:$0xff]
    %v2415 = vld [vmem:[%s2412 + $0x10] sm:$0xff]
    %v2416 = vld [vmem:[%s2412 + $0x18] sm:$0xff]
    %v2417 = vld [vmem:[%s2412 + $0x20] sm:$0xff]
    %v2418 = vld [vmem:[%s2412 + $0x28] sm:$0xff]
    %v2419 = vld [vmem:[%s2412 + $0x30] sm:$0xff]
    %v2420 = vld [vmem:[%s2412 + $0x38] sm:$0xff]
    %s2421 = scalar_lea.vmem %s16, 1
    %v2422 = vld [vmem:[%s2421] sm:$0x1]
    %v2424 = vlaneseq
    %v2425 = vshrl.u32 %v2424, 7
    %v2426 = vsub.s32 0, %v2425
    %v2427 = vrot.slane %v2422, %v2426
    %v2430 = vsel %vm1291, %v2411, 0
    %2432 = vmatprep.subr.mxu0 0.0
    %2433 = vmatpush1.msra.mxu0 0.0
    %2434 = vmatprep.subr.mxu0 0.0
    %2435 = vmatpush1.msra.mxu0 0.0
    %2436 = vmatprep.subr.mxu0 0.0
    %2437 = vmatpush1.msra.mxu0 0.0
    %2438 = vmatprep.subr.mxu0 0.0
    %2439 = vmatpush1.msra.mxu0 0.0
    %2440 = vmatprep.subr.mxu0 0.0
    %2441 = vmatpush1.msra.mxu0 0.0
    %2442 = vmatprep.subr.mxu0 0.0
    %2443 = vmatpush1.msra.mxu0 0.0
    %2444 = vmatprep.subr.mxu0 0.0
    %2445 = vmatpush1.msra.mxu0 0.0
    %2446 = vmatprep.subr.mxu0 0.0
    %2447 = vmatpush1.msra.mxu0 0.0
    %2448 = vmatprep.subr.mxu0 0.0
    %2449 = vmatpush1.msra.mxu0 %v2420
    %2450 = vmatprep.subr.mxu0 0.0
    %2451 = vmatpush1.msra.mxu0 %v2419
    %2452 = vmatprep.subr.mxu0 0.0
    %2453 = vmatpush1.msra.mxu0 %v2418
    %2454 = vmatprep.subr.mxu0 0.0
    %2455 = vmatpush1.msra.mxu0 %v2417
    %2456 = vmatprep.subr.mxu0 0.0
    %2457 = vmatpush1.msra.mxu0 %v2416
    %2458 = vmatprep.subr.mxu0 0.0
    %2459 = vmatpush1.msra.mxu0 %v2415
    %2460 = vmatprep.subr.mxu0 0.0
    %2461 = vmatpush1.msra.mxu0 %v2414
    %2462 = vmatprep.subr.mxu0 0.0
    %2463 = vmatpush1.msra.mxu0 %v2413
    %2464 = vmatprep.subr.mxu0 0.0
    %2465 = vmatpush2.msra.mxu0 0.0
    %2466 = vmatprep.subr.mxu0 0.0
    %2467 = vmatpush2.msra.mxu0 0.0
    %2468 = vmatprep.subr.mxu0 0.0
    %2469 = vmatpush2.msra.mxu0 0.0
    %2470 = vmatprep.subr.mxu0 0.0
    %2471 = vmatpush2.msra.mxu0 0.0
    %2472 = vmatprep.subr.mxu0 0.0
    %2473 = vmatpush2.msra.mxu0 0.0
    %2474 = vmatprep.subr.mxu0 0.0
    %2475 = vmatpush2.msra.mxu0 0.0
    %2476 = vmatprep.subr.mxu0 0.0
    %2477 = vmatpush2.msra.mxu0 0.0
    %2478 = vmatprep.subr.mxu0 0.0
    %2479 = vmatpush2.msra.mxu0 0.0
    %2480 = vmatprep.subr.mxu0 0.0
    %2481 = vmatpush2.msra.mxu0 0.0
    %2482 = vmatprep.subr.mxu0 0.0
    %2483 = vmatpush2.msra.mxu0 0.0
    %2484 = vmatprep.subr.mxu0 0.0
    %2485 = vmatpush2.msra.mxu0 0.0
    %2486 = vmatprep.subr.mxu0 0.0
    %2487 = vmatpush2.msra.mxu0 0.0
    %2488 = vmatprep.subr.mxu0 0.0
    %2489 = vmatpush2.msra.mxu0 0.0
    %2490 = vmatprep.subr.mxu0 0.0
    %2491 = vmatpush2.msra.mxu0 0.0
    %2492 = vmatprep.subr.mxu0 0.0
    %2493 = vmatpush2.msra.mxu0 0.0
    %2494 = vmatprep.subr.mxu0 0.0
    %2495 = vmatpush2.msra.mxu0 0.0
    %2496 = vmatprep.mubr.f32.mxu0 0.0
    %2497 = vmatmul.mubr.f32.gmra.mxu0 %v2430
    %v2498 = vpop.f32.mrf.mxu0
    %v2499 = vadd.f32 %v2427, %v2498
    %v2500 = vpop.f32.mrf.mxu0
    %2501 = vdwg.mxu0
    %v2502 = vadd.f32 %v2499, %v2320
    %s2503 = scalar_lea.vmem %s17, 1
    %v2504 = vld [vmem:[%s2503] sm:$0x1]
    %s2505 = scalar_lea.vmem %s18, 1
    %v2506 = vld [vmem:[%s2505] sm:$0x1]
    %v2507 = vsel %vm2293, %v2502, 0.0
    %2508 = vadd.xlane.f32.xlu0 %v2507
    %v2509 = vpop.xlane.xlu0 %2508
    %v2510 = vmul.f32 %v2509, %v191
    %v2511 = vsub.f32 %v2502, %v2510
    %v2512 = vmul.f32 %v2511, %v2511
    %v2513 = vsel %vm2293, %v2512, 0.0
    %2514 = vadd.xlane.f32.xlu0 %v2513
    %v2515 = vpop.xlane.xlu0 %2514
    %v2516 = vmul.f32 %v2515, %v191
    %v2517 = vadd.f32 %v2516, 1e-12
    %v2518 = vrsqrt.pop %v2517
    %v2519 = vmul.f32 %v2511, %v2518
    %v2521 = vlaneseq
    %v2522 = vshrl.u32 %v2521, 7
    %v2523 = vsub.s32 0, %v2522
    %v2524 = vrot.slane %v2504, %v2523
    %v2526 = vmul.f32 %v2519, %v2524
    %v2528 = vlaneseq
    %v2529 = vshrl.u32 %v2528, 7
    %v2530 = vsub.s32 0, %v2529
    %v2531 = vrot.slane %v2506, %v2530
    %v2533 = vadd.f32 %v2526, %v2531
    %2534 = vst.msk [vmem:[#allocation2] sm:$0x3] %vm2293, %v2533
    // Predicated region
    $region78: #{num_cat_language_model_forward.1} parent=1 // pred_check
      _
    $region79: #{num_cat_language_model_forward.1} parent=1 // pred_check_branch
      %2536 = sbr.rel (0) target = $region81
    $region80: #{num_cat_language_model_forward.1} parent=1 // pred_region
      %s2538 = ssub.s32 32, 32
      %2539 = vsyncadd [#allocation3], %s2538
      %s2541 = sshll.u32 [#allocation2], 4
      %s2542 = int_to_ptr.vmem [resolvable:$true] %s2541
      %2544 = dma.vmem_to_hbm [thread:$0]  %s2542, 32, %s19, [#allocation3]
    $region81: #{num_cat_language_model_forward.1} parent=1 // pred_fallthru
      _
    // Predicated region
    $region82: #{num_cat_language_model_forward.1} parent=1 // pred_check
      _
    $region83: #{num_cat_language_model_forward.1} parent=1 // pred_check_branch
      %2546 = sbr.rel (0) target = $region85
    $region84: #{num_cat_language_model_forward.1} parent=1 // pred_region
      %2547 = dma.done [#allocation3], 32
    $region85: #{num_cat_language_model_forward.1} parent=1 // pred_fallthru
      _
    %2548 = vsyncpa [#allocation3], 1

</llo_original>
